<compile_context>
chip_gen: v7x
topology: tpu7x:2x2x1
jax: 0.10.0
libtpu: 0.0.40
codegen_flags: <defaults>
</compile_context>

<pallas_src>
import numpy as np

import jax
import jax.numpy as jnp
from jax import lax
from jax.experimental import pallas as pl
from jax.experimental.pallas import tpu as pltpu

EPS = 1e-5  # nn.InstanceNorm3d default eps (affine=False, no running stats)


def _spatial_shift_matrices(h, w):
    """S[kh, kw, p_in, p_out] = 1 iff flattened input position p_in is the
    (kh-1, kw-1)-shifted neighbour of output position p_out.  'same' zero
    padding over H/W is implicit: out-of-range taps simply have no entry."""
    s = np.zeros((3, 3, h * w, h * w), np.float32)
    ho, wo = np.meshgrid(np.arange(h), np.arange(w), indexing="ij")
    p_out = (ho * w + wo).ravel()
    for kh in range(3):
        for kw in range(3):
            hi = (ho + kh - 1).ravel()
            wi = (wo + kw - 1).ravel()
            ok = (hi >= 0) & (hi < h) & (wi >= 0) & (wi < w)
            s[kh, kw, (hi * w + wi)[ok], p_out[ok]] = 1.0
    return s


def _banded_weights_hw(w, smat):
    """(3,3,3,Cin,Cout) conv weights -> (3, H*W*Cin, H*W*Cout) H/W-banded
    weights: one matmul against band kd performs all nine (kh, kw) taps of
    that depth slice at once, with 'same' zero padding over H/W built in."""
    kd, _, _, cin, cout = w.shape
    hw = smat.shape[-1]
    bw = jnp.einsum("xypq,kxyio->kpiqo", jnp.asarray(smat, w.dtype), w)
    return bw.reshape(kd, hw * cin, hw * cout)


def conv_block_3d_fwd(x_ncdhw, w1, b1, w2, b2):
    """ConvBlock3D forward.  Input/output in PyTorch NCDHW layout.

    Conv biases are dropped on purpose: InstanceNorm3d(affine=False,
    track_running_stats=False) removes any per-channel constant exactly."""
    del b1, b2

    N, Cin, D, H, W = x_ncdhw.shape
    Cout = w1.shape[-1]
    HW = H * W
    HWCin, HWCout = HW * Cin, HW * Cout
    inv_n = 1.0 / float(D * HW)

    # NCDHW -> (N, D, H*W*Cin) channels-last slab, bf16 for the MXU
    # (halves input DMA bytes; MXU consumes bf16 operands anyway).
    x = jnp.transpose(x_ncdhw, (0, 2, 3, 4, 1)).reshape(N, D, HWCin)
    x = x.astype(jnp.bfloat16)

    smat = _spatial_shift_matrices(H, W)                       # static numpy
    bw1 = _banded_weights_hw(w1, smat).astype(jnp.bfloat16)    # (3,HWCin,HWCout)
    bw2 = _banded_weights_hw(w2, smat).astype(jnp.bfloat16)    # (3,HWCout,HWCout)

    # Per-channel reduce / broadcast 0/1 matrices for InstanceNorm statistics
    # (linear in HWCout; the old (W*Cout)^2 group matrix was quadratic).
    ch = np.arange(HWCout) % Cout
    red_np = (ch[:, None] == np.arange(Cout)[None, :]).astype(np.float32)
    red = jnp.asarray(red_np)        # (HWCout, Cout)
    bcast = jnp.asarray(red_np.T)    # (Cout, HWCout)

    def kernel(x_ref, bw1_ref, bw2_ref, red_ref, bcast_ref, o_ref,
               xp1_ref, xp2_ref):
        red_m = red_ref[...]
        bcast_m = bcast_ref[...]

        def conv_in_relu(xp_ref, bw_ref):
            # 3x3x3 conv = 3 banded matmuls over contiguous D-windows.
            acc = jnp.dot(xp_ref[0:D, :], bw_ref[0],
                          preferred_element_type=jnp.float32)
            acc = acc + jnp.dot(xp_ref[1:D + 1, :], bw_ref[1],
                                preferred_element_type=jnp.float32)
            acc = acc + jnp.dot(xp_ref[2:D + 2, :], bw_ref[2],
                                preferred_element_type=jnp.float32)
            # InstanceNorm3d (affine=False) + ReLU, one-pass stats
            # (var = E[x^2] - mean^2); per-channel gather/broadcast via tiny
            # 0/1 matmuls so all elementwise work stays on the lane-dense slab.
            col_sum = jnp.sum(acc, axis=0, keepdims=True)         # (1, HWCout)
            col_ssq = jnp.sum(acc * acc, axis=0, keepdims=True)   # (1, HWCout)
            mean = jnp.dot(col_sum, red_m,
                           preferred_element_type=jnp.float32) * inv_n
            ex2 = jnp.dot(col_ssq, red_m,
                          preferred_element_type=jnp.float32) * inv_n
            scale = lax.rsqrt(ex2 - mean * mean + EPS)             # (1, Cout)
            shift = mean * scale                                   # (1, Cout)
            scale_b = jnp.dot(scale, bcast_m,
                              preferred_element_type=jnp.float32)  # (1, HWCout)
            shift_b = jnp.dot(shift, bcast_m,
                              preferred_element_type=jnp.float32)
            return jnp.maximum(acc * scale_b - shift_b, 0.0)

        # Zero only the two 1-row D-halo faces (tiny, megacore-safe).  The
        # interior rows are fully overwritten below on every grid step.
        z1 = jnp.zeros((1, HWCin), jnp.bfloat16)
        z2 = jnp.zeros((1, HWCout), jnp.bfloat16)
        xp1_ref[0:1, :] = z1
        xp1_ref[D + 1:D + 2, :] = z1
        xp2_ref[0:1, :] = z2
        xp2_ref[D + 1:D + 2, :] = z2

        # ---- stage 1: conv1 + norm1 + relu1 (input already bf16) -----------
        xp1_ref[1:D + 1, :] = x_ref[0]
        y1 = conv_in_relu(xp1_ref, bw1_ref)                 # (D, HWCout) f32

        # ---- stage 2: ScConv stand-in (3x3x3 conv) + norm2 + relu2 ---------
        xp2_ref[1:D + 1, :] = y1.astype(jnp.bfloat16)       # one cast per stage
        o_ref[0] = conv_in_relu(xp2_ref, bw2_ref)           # lane-dense store

    out = pl.pallas_call(
        kernel,
        out_shape=jax.ShapeDtypeStruct((N, D, HWCout), jnp.float32),
        grid_spec=pltpu.PrefetchScalarGridSpec(
            num_scalar_prefetch=0,
            grid=(N,),
            in_specs=[
                pl.BlockSpec((1, D, HWCin), lambda n: (n, 0, 0)),
                pl.BlockSpec((3, HWCin, HWCout), lambda n: (0, 0, 0)),
                pl.BlockSpec((3, HWCout, HWCout), lambda n: (0, 0, 0)),
                pl.BlockSpec((HWCout, Cout), lambda n: (0, 0)),
                pl.BlockSpec((Cout, HWCout), lambda n: (0, 0)),
            ],
            out_specs=pl.BlockSpec((1, D, HWCout), lambda n: (n, 0, 0)),
            scratch_shapes=[
                pltpu.VMEM((D + 2, HWCin), jnp.bfloat16),    # stage-1 D-halo
                pltpu.VMEM((D + 2, HWCout), jnp.bfloat16),   # stage-2 D-halo
            ],
        ),
        compiler_params=pltpu.CompilerParams(
            dimension_semantics=("parallel",)),
    )(x, bw1, bw2, red, bcast)

    # (N, D, H*W*Cout) -> (N, Cout, D, H, W)
    out = out.reshape(N, D, H, W, Cout)
    return jnp.transpose(out, (0, 4, 1, 2, 3))


conv_block_3d = jax.jit(conv_block_3d_fwd)


# ------------------------------------------------------------------ reference
def _instance_norm_relu(y):
    mean = jnp.mean(y, axis=(2, 3, 4), keepdims=True)
    var = jnp.mean((y - mean) ** 2, axis=(2, 3, 4), keepdims=True)
    return jnp.maximum((y - mean) * lax.rsqrt(var + EPS), 0.0)


def _ref_conv(x_ncdhw, w, b):
    w_oidhw = jnp.transpose(w, (4, 3, 0, 1, 2))
    y = lax.conv_general_dilated(
        x_ncdhw, w_oidhw, window_strides=(1, 1, 1),
        padding=[(1, 1)] * 3,
        dimension_numbers=("NCDHW", "OIDHW", "NCDHW"),
        preferred_element_type=jnp.float32)
    return y + b.reshape(1, -1, 1, 1, 1)


def _bf16(t):
    # mirror the kernel's bf16 rounding of MXU operands (f32 accumulation)
    return t.astype(jnp.bfloat16).astype(jnp.float32)


def _reference(x, w1, b1, w2, b2):
    y = _instance_norm_relu(_ref_conv(_bf16(x), _bf16(w1), b1))
    y = _instance_norm_relu(_ref_conv(_bf16(y), _bf16(w2), b2))
    return y


if __name__ == "__main__":
    N, Cin, Cout, D, H, W = 2, 4, 8, 8, 8, 8
    key = jax.random.PRNGKey(0)
    k1, k2, k3, k4, k5 = jax.random.split(key, 5)

    x = jax.random.normal(k1, (N, Cin, D, H, W), jnp.float32)
    # Conv weights stored as (kd, kh, kw, Cin, Cout); biases as (Cout,).
    w1 = jax.random.normal(k2, (3, 3, 3, Cin, Cout), jnp.float32) * 0.1
    b1 = jax.random.normal(k3, (Cout,), jnp.float32) * 0.1
    w2 = jax.random.normal(k4, (3, 3, 3, Cout, Cout), jnp.float32) * 0.1
    b2 = jax.random.normal(k5, (Cout,), jnp.float32) * 0.1

    out = jax.block_until_ready(conv_block_3d(x, w1, b1, w2, b2))
    ref = _reference(x, w1, b1, w2, b2)

    assert out.shape == (N, Cout, D, H, W)
    err = float(jnp.max(jnp.abs(out - ref)))
    assert err < 2e-2, f"mismatch vs reference (max abs err = {err})"
    print("KERNEL_OK")
</pallas_src>

<mosaic_0001>
module attributes {stable_mosaic.version = 11 : i64} {
  func.func @kernel(%arg0: i32, %arg1: memref<1x8x256xbf16, #tpu.memory_space<vmem>>, %arg2: memref<3x256x512xbf16, #tpu.memory_space<vmem>>, %arg3: memref<3x512x512xbf16, #tpu.memory_space<vmem>>, %arg4: memref<512x8xf32, #tpu.memory_space<vmem>>, %arg5: memref<8x512xf32, #tpu.memory_space<vmem>>, %arg6: memref<1x8x512xf32, #tpu.memory_space<vmem>>, %arg7: memref<10x256xbf16, #tpu.memory_space<vmem>>, %arg8: memref<10x512xbf16, #tpu.memory_space<vmem>>) attributes {dimension_semantics = [#tpu.dimension_semantics<parallel>], iteration_bounds = array<i64: 2>, scalar_prefetch = 0 : i64, scratch_operands = 2 : i64, tpu.core_type = #tpu.core_type<tc>, window_params = [{transform_indices = @transform_0, window_bounds = array<i64: 1, 8, 256>}, {pipeline_mode = #tpu.pipeline_mode<synchronous>, transform_indices = @transform_1, window_bounds = array<i64: 3, 256, 512>}, {pipeline_mode = #tpu.pipeline_mode<synchronous>, transform_indices = @transform_2, window_bounds = array<i64: 3, 512, 512>}, {pipeline_mode = #tpu.pipeline_mode<synchronous>, transform_indices = @transform_3, window_bounds = array<i64: 512, 8>}, {pipeline_mode = #tpu.pipeline_mode<synchronous>, transform_indices = @transform_4, window_bounds = array<i64: 8, 512>}, {transform_indices = @transform_5, window_bounds = array<i64: 1, 8, 512>}]} {
    %c0 = arith.constant 0 : index
    %c0_0 = arith.constant 0 : index
    %0 = vector.load %arg4[%c0, %c0_0] : memref<512x8xf32, #tpu.memory_space<vmem>>, vector<512x8xf32>
    %c0_1 = arith.constant 0 : index
    %c0_2 = arith.constant 0 : index
    %1 = vector.load %arg5[%c0_1, %c0_2] : memref<8x512xf32, #tpu.memory_space<vmem>>, vector<8x512xf32>
    %cst = arith.constant 0.000000e+00 : bf16
    %2 = vector.broadcast %cst : bf16 to vector<1x256xbf16>
    %cst_3 = arith.constant 0.000000e+00 : bf16
    %3 = vector.broadcast %cst_3 : bf16 to vector<1x512xbf16>
    %c0_4 = arith.constant 0 : index
    %c0_5 = arith.constant 0 : index
    %4 = vector.load %arg7[%c0_4, %c0_5] : memref<10x256xbf16, #tpu.memory_space<vmem>>, vector<1x256xbf16>
    tpu.vector_store %arg7[%c0_4, %c0_5], %2 {strides = array<i32>} : memref<10x256xbf16, #tpu.memory_space<vmem>>, vector<1x256xbf16>,
    %c9 = arith.constant 9 : index
    %c0_6 = arith.constant 0 : index
    %5 = vector.load %arg7[%c9, %c0_6] : memref<10x256xbf16, #tpu.memory_space<vmem>>, vector<1x256xbf16>
    tpu.vector_store %arg7[%c9, %c0_6], %2 {strides = array<i32>} : memref<10x256xbf16, #tpu.memory_space<vmem>>, vector<1x256xbf16>,
    %c0_7 = arith.constant 0 : index
    %c0_8 = arith.constant 0 : index
    %6 = vector.load %arg8[%c0_7, %c0_8] : memref<10x512xbf16, #tpu.memory_space<vmem>>, vector<1x512xbf16>
    tpu.vector_store %arg8[%c0_7, %c0_8], %3 {strides = array<i32>} : memref<10x512xbf16, #tpu.memory_space<vmem>>, vector<1x512xbf16>,
    %c9_9 = arith.constant 9 : index
    %c0_10 = arith.constant 0 : index
    %7 = vector.load %arg8[%c9_9, %c0_10] : memref<10x512xbf16, #tpu.memory_space<vmem>>, vector<1x512xbf16>
    tpu.vector_store %arg8[%c9_9, %c0_10], %3 {strides = array<i32>} : memref<10x512xbf16, #tpu.memory_space<vmem>>, vector<1x512xbf16>,
    %c0_11 = arith.constant 0 : index
    %c0_12 = arith.constant 0 : index
    %c0_13 = arith.constant 0 : index
    %8 = vector.load %arg1[%c0_11, %c0_12, %c0_13] : memref<1x8x256xbf16, #tpu.memory_space<vmem>>, vector<1x8x256xbf16>
    %9 = vector.shape_cast %8 : vector<1x8x256xbf16> to vector<8x256xbf16>
    %c1 = arith.constant 1 : index
    %c0_14 = arith.constant 0 : index
    %10 = vector.load %arg7[%c1, %c0_14] : memref<10x256xbf16, #tpu.memory_space<vmem>>, vector<8x256xbf16>
    tpu.vector_store %arg7[%c1, %c0_14], %9 {strides = array<i32>} : memref<10x256xbf16, #tpu.memory_space<vmem>>, vector<8x256xbf16>,
    %c0_15 = arith.constant 0 : index
    %c0_16 = arith.constant 0 : index
    %11 = vector.load %arg7[%c0_15, %c0_16] : memref<10x256xbf16, #tpu.memory_space<vmem>>, vector<8x256xbf16>
    %c0_17 = arith.constant 0 : index
    %c0_18 = arith.constant 0 : index
    %c0_19 = arith.constant 0 : index
    %12 = vector.load %arg2[%c0_17, %c0_18, %c0_19] : memref<3x256x512xbf16, #tpu.memory_space<vmem>>, vector<1x256x512xbf16>
    %13 = vector.shape_cast %12 : vector<1x256x512xbf16> to vector<256x512xbf16>
    %cst_20 = arith.constant dense<0.000000e+00> : vector<8x512xf32>
    %14 = tpu.matmul %11, %13, %cst_20 {dimension_numbers = #tpu.dot_dimension_numbers<[1], [0], [0], [1], [0, 0, 1, 1], [], []>} : vector<8x256xbf16>, vector<256x512xbf16>, vector<8x512xf32> -> vector<8x512xf32>
    %c1_21 = arith.constant 1 : index
    %c0_22 = arith.constant 0 : index
    %15 = vector.load %arg7[%c1_21, %c0_22] : memref<10x256xbf16, #tpu.memory_space<vmem>>, vector<8x256xbf16>
    %c1_23 = arith.constant 1 : index
    %c0_24 = arith.constant 0 : index
    %c0_25 = arith.constant 0 : index
    %16 = vector.load %arg2[%c1_23, %c0_24, %c0_25] : memref<3x256x512xbf16, #tpu.memory_space<vmem>>, vector<1x256x512xbf16>
    %17 = vector.shape_cast %16 : vector<1x256x512xbf16> to vector<256x512xbf16>
    %cst_26 = arith.constant dense<0.000000e+00> : vector<8x512xf32>
    %18 = tpu.matmul %15, %17, %cst_26 {dimension_numbers = #tpu.dot_dimension_numbers<[1], [0], [0], [1], [0, 0, 1, 1], [], []>} : vector<8x256xbf16>, vector<256x512xbf16>, vector<8x512xf32> -> vector<8x512xf32>
    %19 = arith.addf %14, %18 : vector<8x512xf32>
    %c2 = arith.constant 2 : index
    %c0_27 = arith.constant 0 : index
    %20 = vector.load %arg7[%c2, %c0_27] : memref<10x256xbf16, #tpu.memory_space<vmem>>, vector<8x256xbf16>
    %c2_28 = arith.constant 2 : index
    %c0_29 = arith.constant 0 : index
    %c0_30 = arith.constant 0 : index
    %21 = vector.load %arg2[%c2_28, %c0_29, %c0_30] : memref<3x256x512xbf16, #tpu.memory_space<vmem>>, vector<1x256x512xbf16>
    %22 = vector.shape_cast %21 : vector<1x256x512xbf16> to vector<256x512xbf16>
    %cst_31 = arith.constant dense<0.000000e+00> : vector<8x512xf32>
    %23 = tpu.matmul %20, %22, %cst_31 {dimension_numbers = #tpu.dot_dimension_numbers<[1], [0], [0], [1], [0, 0, 1, 1], [], []>} : vector<8x256xbf16>, vector<256x512xbf16>, vector<8x512xf32> -> vector<8x512xf32>
    %24 = arith.addf %19, %23 : vector<8x512xf32>
    %cst_32 = arith.constant dense<0.000000e+00> : vector<512xf32>
    %25 = vector.multi_reduction <add>, %24, %cst_32 [0] : vector<8x512xf32> to vector<512xf32>
    %26 = vector.shape_cast %25 : vector<512xf32> to vector<1x512xf32>
    %27 = arith.mulf %24, %24 : vector<8x512xf32>
    %cst_33 = arith.constant dense<0.000000e+00> : vector<512xf32>
    %28 = vector.multi_reduction <add>, %27, %cst_33 [0] : vector<8x512xf32> to vector<512xf32>
    %29 = vector.shape_cast %28 : vector<512xf32> to vector<1x512xf32>
    %cst_34 = arith.constant dense<0.000000e+00> : vector<1x8xf32>
    %30 = tpu.matmul %26, %0, %cst_34 {dimension_numbers = #tpu.dot_dimension_numbers<[1], [0], [0], [1], [0, 0, 1, 1], [], []>} : vector<1x512xf32>, vector<512x8xf32>, vector<1x8xf32> -> vector<1x8xf32>
    %cst_35 = arith.constant 0.001953125 : f32
    %31 = vector.broadcast %cst_35 : f32 to vector<1x8xf32>
    %32 = arith.mulf %30, %31 : vector<1x8xf32>
    %cst_36 = arith.constant dense<0.000000e+00> : vector<1x8xf32>
    %33 = tpu.matmul %29, %0, %cst_36 {dimension_numbers = #tpu.dot_dimension_numbers<[1], [0], [0], [1], [0, 0, 1, 1], [], []>} : vector<1x512xf32>, vector<512x8xf32>, vector<1x8xf32> -> vector<1x8xf32>
    %cst_37 = arith.constant 0.001953125 : f32
    %34 = vector.broadcast %cst_37 : f32 to vector<1x8xf32>
    %35 = arith.mulf %33, %34 : vector<1x8xf32>
    %36 = arith.mulf %32, %32 : vector<1x8xf32>
    %37 = arith.subf %35, %36 : vector<1x8xf32>
    %cst_38 = arith.constant 9.99999974E-6 : f32
    %38 = vector.broadcast %cst_38 : f32 to vector<1x8xf32>
    %39 = arith.addf %37, %38 : vector<1x8xf32>
    %40 = math.rsqrt %39 : vector<1x8xf32>
    %41 = arith.mulf %32, %40 : vector<1x8xf32>
    %cst_39 = arith.constant dense<0.000000e+00> : vector<1x512xf32>
    %42 = tpu.matmul %40, %1, %cst_39 {dimension_numbers = #tpu.dot_dimension_numbers<[1], [0], [0], [1], [0, 0, 1, 1], [], []>} : vector<1x8xf32>, vector<8x512xf32>, vector<1x512xf32> -> vector<1x512xf32>
    %cst_40 = arith.constant dense<0.000000e+00> : vector<1x512xf32>
    %43 = tpu.matmul %41, %1, %cst_40 {dimension_numbers = #tpu.dot_dimension_numbers<[1], [0], [0], [1], [0, 0, 1, 1], [], []>} : vector<1x8xf32>, vector<8x512xf32>, vector<1x512xf32> -> vector<1x512xf32>
    %44 = vector.broadcast %42 : vector<1x512xf32> to vector<8x512xf32>
    %45 = arith.mulf %24, %44 : vector<8x512xf32>
    %46 = vector.broadcast %43 : vector<1x512xf32> to vector<8x512xf32>
    %47 = arith.subf %45, %46 : vector<8x512xf32>
    %cst_41 = arith.constant 0.000000e+00 : f32
    %48 = vector.broadcast %cst_41 : f32 to vector<8x512xf32>
    %49 = arith.maximumf %47, %48 : vector<8x512xf32>
    %50 = arith.truncf %49 : vector<8x512xf32> to vector<8x512xbf16>
    %c1_42 = arith.constant 1 : index
    %c0_43 = arith.constant 0 : index
    %51 = vector.load %arg8[%c1_42, %c0_43] : memref<10x512xbf16, #tpu.memory_space<vmem>>, vector<8x512xbf16>
    tpu.vector_store %arg8[%c1_42, %c0_43], %50 {strides = array<i32>} : memref<10x512xbf16, #tpu.memory_space<vmem>>, vector<8x512xbf16>,
    %c0_44 = arith.constant 0 : index
    %c0_45 = arith.constant 0 : index
    %52 = vector.load %arg8[%c0_44, %c0_45] : memref<10x512xbf16, #tpu.memory_space<vmem>>, vector<8x512xbf16>
    %c0_46 = arith.constant 0 : index
    %c0_47 = arith.constant 0 : index
    %c0_48 = arith.constant 0 : index
    %53 = vector.load %arg3[%c0_46, %c0_47, %c0_48] : memref<3x512x512xbf16, #tpu.memory_space<vmem>>, vector<1x512x512xbf16>
    %54 = vector.shape_cast %53 : vector<1x512x512xbf16> to vector<512x512xbf16>
    %cst_49 = arith.constant dense<0.000000e+00> : vector<8x512xf32>
    %55 = tpu.matmul %52, %54, %cst_49 {dimension_numbers = #tpu.dot_dimension_numbers<[1], [0], [0], [1], [0, 0, 1, 1], [], []>} : vector<8x512xbf16>, vector<512x512xbf16>, vector<8x512xf32> -> vector<8x512xf32>
    %c1_50 = arith.constant 1 : index
    %c0_51 = arith.constant 0 : index
    %56 = vector.load %arg8[%c1_50, %c0_51] : memref<10x512xbf16, #tpu.memory_space<vmem>>, vector<8x512xbf16>
    %c1_52 = arith.constant 1 : index
    %c0_53 = arith.constant 0 : index
    %c0_54 = arith.constant 0 : index
    %57 = vector.load %arg3[%c1_52, %c0_53, %c0_54] : memref<3x512x512xbf16, #tpu.memory_space<vmem>>, vector<1x512x512xbf16>
    %58 = vector.shape_cast %57 : vector<1x512x512xbf16> to vector<512x512xbf16>
    %cst_55 = arith.constant dense<0.000000e+00> : vector<8x512xf32>
    %59 = tpu.matmul %56, %58, %cst_55 {dimension_numbers = #tpu.dot_dimension_numbers<[1], [0], [0], [1], [0, 0, 1, 1], [], []>} : vector<8x512xbf16>, vector<512x512xbf16>, vector<8x512xf32> -> vector<8x512xf32>
    %60 = arith.addf %55, %59 : vector<8x512xf32>
    %c2_56 = arith.constant 2 : index
    %c0_57 = arith.constant 0 : index
    %61 = vector.load %arg8[%c2_56, %c0_57] : memref<10x512xbf16, #tpu.memory_space<vmem>>, vector<8x512xbf16>
    %c2_58 = arith.constant 2 : index
    %c0_59 = arith.constant 0 : index
    %c0_60 = arith.constant 0 : index
    %62 = vector.load %arg3[%c2_58, %c0_59, %c0_60] : memref<3x512x512xbf16, #tpu.memory_space<vmem>>, vector<1x512x512xbf16>
    %63 = vector.shape_cast %62 : vector<1x512x512xbf16> to vector<512x512xbf16>
    %cst_61 = arith.constant dense<0.000000e+00> : vector<8x512xf32>
    %64 = tpu.matmul %61, %63, %cst_61 {dimension_numbers = #tpu.dot_dimension_numbers<[1], [0], [0], [1], [0, 0, 1, 1], [], []>} : vector<8x512xbf16>, vector<512x512xbf16>, vector<8x512xf32> -> vector<8x512xf32>
    %65 = arith.addf %60, %64 : vector<8x512xf32>
    %cst_62 = arith.constant dense<0.000000e+00> : vector<512xf32>
    %66 = vector.multi_reduction <add>, %65, %cst_62 [0] : vector<8x512xf32> to vector<512xf32>
    %67 = vector.shape_cast %66 : vector<512xf32> to vector<1x512xf32>
    %68 = arith.mulf %65, %65 : vector<8x512xf32>
    %cst_63 = arith.constant dense<0.000000e+00> : vector<512xf32>
    %69 = vector.multi_reduction <add>, %68, %cst_63 [0] : vector<8x512xf32> to vector<512xf32>
    %70 = vector.shape_cast %69 : vector<512xf32> to vector<1x512xf32>
    %cst_64 = arith.constant dense<0.000000e+00> : vector<1x8xf32>
    %71 = tpu.matmul %67, %0, %cst_64 {dimension_numbers = #tpu.dot_dimension_numbers<[1], [0], [0], [1], [0, 0, 1, 1], [], []>} : vector<1x512xf32>, vector<512x8xf32>, vector<1x8xf32> -> vector<1x8xf32>
    %cst_65 = arith.constant 0.001953125 : f32
    %72 = vector.broadcast %cst_65 : f32 to vector<1x8xf32>
    %73 = arith.mulf %71, %72 : vector<1x8xf32>
    %cst_66 = arith.constant dense<0.000000e+00> : vector<1x8xf32>
    %74 = tpu.matmul %70, %0, %cst_66 {dimension_numbers = #tpu.dot_dimension_numbers<[1], [0], [0], [1], [0, 0, 1, 1], [], []>} : vector<1x512xf32>, vector<512x8xf32>, vector<1x8xf32> -> vector<1x8xf32>
    %cst_67 = arith.constant 0.001953125 : f32
    %75 = vector.broadcast %cst_67 : f32 to vector<1x8xf32>
    %76 = arith.mulf %74, %75 : vector<1x8xf32>
    %77 = arith.mulf %73, %73 : vector<1x8xf32>
    %78 = arith.subf %76, %77 : vector<1x8xf32>
    %cst_68 = arith.constant 9.99999974E-6 : f32
    %79 = vector.broadcast %cst_68 : f32 to vector<1x8xf32>
    %80 = arith.addf %78, %79 : vector<1x8xf32>
    %81 = math.rsqrt %80 : vector<1x8xf32>
    %82 = arith.mulf %73, %81 : vector<1x8xf32>
    %cst_69 = arith.constant dense<0.000000e+00> : vector<1x512xf32>
    %83 = tpu.matmul %81, %1, %cst_69 {dimension_numbers = #tpu.dot_dimension_numbers<[1], [0], [0], [1], [0, 0, 1, 1], [], []>} : vector<1x8xf32>, vector<8x512xf32>, vector<1x512xf32> -> vector<1x512xf32>
    %cst_70 = arith.constant dense<0.000000e+00> : vector<1x512xf32>
    %84 = tpu.matmul %82, %1, %cst_70 {dimension_numbers = #tpu.dot_dimension_numbers<[1], [0], [0], [1], [0, 0, 1, 1], [], []>} : vector<1x8xf32>, vector<8x512xf32>, vector<1x512xf32> -> vector<1x512xf32>
    %85 = vector.broadcast %83 : vector<1x512xf32> to vector<8x512xf32>
    %86 = arith.mulf %65, %85 : vector<8x512xf32>
    %87 = vector.broadcast %84 : vector<1x512xf32> to vector<8x512xf32>
    %88 = arith.subf %86, %87 : vector<8x512xf32>
    %cst_71 = arith.constant 0.000000e+00 : f32
    %89 = vector.broadcast %cst_71 : f32 to vector<8x512xf32>
    %90 = arith.maximumf %88, %89 : vector<8x512xf32>
    %c0_72 = arith.constant 0 : index
    %c0_73 = arith.constant 0 : index
    %c0_74 = arith.constant 0 : index
    %91 = vector.load %arg6[%c0_72, %c0_73, %c0_74] : memref<1x8x512xf32, #tpu.memory_space<vmem>>, vector<1x8x512xf32>
    %92 = vector.shape_cast %91 : vector<1x8x512xf32> to vector<8x512xf32>
    %93 = vector.shape_cast %90 : vector<8x512xf32> to vector<1x8x512xf32>
    tpu.vector_store %arg6[%c0_72, %c0_73, %c0_74], %93 {strides = array<i32>} : memref<1x8x512xf32, #tpu.memory_space<vmem>>, vector<1x8x512xf32>,
    return
  }
  func.func @transform_0(%arg0: i32) -> (i32, i32, i32) {
    %c0_i32 = arith.constant 0 : i32
    %c0_i32_0 = arith.constant 0 : i32
    %c0_i32_1 = arith.constant 0 : i32
    return %arg0, %c0_i32, %c0_i32_0 : i32, i32, i32
  }
  func.func @transform_1(%arg0: i32) -> (i32, i32, i32) {
    %c0_i32 = arith.constant 0 : i32
    %c0_i32_0 = arith.constant 0 : i32
    %c0_i32_1 = arith.constant 0 : i32
    %c0_i32_2 = arith.constant 0 : i32
    return %c0_i32, %c0_i32_0, %c0_i32_1 : i32, i32, i32
  }
  func.func @transform_2(%arg0: i32) -> (i32, i32, i32) {
    %c0_i32 = arith.constant 0 : i32
    %c0_i32_0 = arith.constant 0 : i32
    %c0_i32_1 = arith.constant 0 : i32
    %c0_i32_2 = arith.constant 0 : i32
    return %c0_i32, %c0_i32_0, %c0_i32_1 : i32, i32, i32
  }
  func.func @transform_3(%arg0: i32) -> (i32, i32) {
    %c0_i32 = arith.constant 0 : i32
    %c0_i32_0 = arith.constant 0 : i32
    %c0_i32_1 = arith.constant 0 : i32
    return %c0_i32, %c0_i32_0 : i32, i32
  }
  func.func @transform_4(%arg0: i32) -> (i32, i32) {
    %c0_i32 = arith.constant 0 : i32
    %c0_i32_0 = arith.constant 0 : i32
    %c0_i32_1 = arith.constant 0 : i32
    return %c0_i32, %c0_i32_0 : i32, i32
  }
  func.func @transform_5(%arg0: i32) -> (i32, i32, i32) {
    %c0_i32 = arith.constant 0 : i32
    %c0_i32_0 = arith.constant 0 : i32
    %c0_i32_1 = arith.constant 0 : i32
    return %arg0, %c0_i32, %c0_i32_0 : i32, i32, i32
  }
}

</mosaic_0001>

<llo_original>
// kernel: conv_block_3d_fwd.1
$region0: #{conv_block_3d_fwd.1}
  #allocation0 [shape = 'u32[]', space=smem, size = 0x4, offset = 0x4, fixed_abs, tag = 'smem constant byte address 0x4 - core index']
  #allocation1 [shape = 'u32[144,128]{1,0:T(1,128)}', space=vmem, size = 0x12000, scoped, tag = 'internal scratch']
  #allocation2 [shape = 'bf16[10,256]{1,0:T(8,128)(2,1)}', space=vmem, size = 0x2000, scoped, tag = 'scratch operand']
  #allocation3 [shape = 'bf16[10,512]{1,0:T(8,128)(2,1)}', space=vmem, size = 0x4000, scoped, tag = 'scratch operand']
  %s0 = inlined_call_operand.vmem [shape: bf16[2,8,256], index: 0, kind: input, shape index: {}]
  %s1 = inlined_call_operand.vmem [shape: bf16[3,256,512], index: 1, kind: input, shape index: {}]
  %s2 = inlined_call_operand.vmem [shape: bf16[3,512,512], index: 2, kind: input, shape index: {}]
  %s3 = inlined_call_operand.vmem [shape: f32[512,8], index: 3, kind: input, shape index: {}]
  %s4 = inlined_call_operand.vmem [shape: f32[8,512], index: 4, kind: input, shape index: {}]
  %s5 = inlined_call_operand.vmem [shape: f32[2,8,512], index: 5, kind: output, shape index: {}]
  %s6 = sld [smem:[#allocation0]]
  $region53: #{conv_block_3d_fwd.1} parent=0
    _
  %s8 = ssub.s32 1, %s6
  %s9 = scalar_select 0, %s8, %s6
  loop: start=0, step=1, limit=4
  $region2: #{conv_block_3d_fwd.1} parent=0 // loop_pre_header
    _
  $region3: #{conv_block_3d_fwd.1} parent=0 // loop_header
    %s11 = sphi 0, %s15
    %p12 = scmp.ge.s32.totalorder %s11, 4
    %s21 = sphi 0, %s23
    %s24 = sphi 0, %s21
    %s25 = sphi 0, %s24
    %s41 = sphi 0, %s25
    %s45 = sphi 0, %s45
    %s47 = sphi 0, %s45
    %s48 = sphi 0, %s47
    %s62 = sphi 0, %s48
    %s66 = sphi 0, %s66
    %s68 = sphi 0, %s66
    %s69 = sphi 0, %s68
    %s83 = sphi 0, %s69
    %s87 = sphi 0, %s87
    %s89 = sphi 0, %s87
    %s90 = sphi 0, %s89
    %s104 = sphi 0, %s90
    %s108 = sphi 0, %s108
    %s110 = sphi 0, %s108
    %s111 = sphi 0, %s110
    %s125 = sphi 0, %s111
    %s131 = sphi 0, %s133
    %s134 = sphi 0, %s131
    %s135 = sphi 0, %s134
    %s151 = sphi 0, %s135
  $region4: #{conv_block_3d_fwd.1} parent=0 // loop_header_branch
    %14 = sbr.rel (%p12) target = $region8
  $region5: #{conv_block_3d_fwd.1} parent=0 // loop_body
    %s16 = ssub.s32 %s11, 1
    %s17 = ssub.s32 %s11, 2
    %s18 = sadd.s32 %s11, 1
    %s19 = ssub.s32 %s11, %s18
    %p20 = scmp.eq.s32.totalorder %s19, 0
    %s22 = sadd.s32 %s21, 1
    %s23 = scalar_select %p20, %s21, %s22
    %p26 = pneg %p20
    %p27 = scmp.eq.s32.totalorder %s11, 1
    %p28 = por %p26, %p27
    %p29 = scmp.ne.s32.totalorder %s21, %s24
    %p30 = scmp.eq.s32.totalorder %s11, 0
    %p31 = por %p29, %p30
    %p32 = scmp.ne.s32.totalorder %s21, %s24
    %p33 = scmp.eq.s32.totalorder %s16, 1
    %p34 = por %p32, %p33
    %p35 = scmp.ne.s32.totalorder %s24, %s25
    %p36 = scmp.eq.s32.totalorder %s16, 0
    %p37 = por %p35, %p36
    %p38 = scmp.ne.s32.totalorder %s24, %s25
    %p39 = scmp.eq.s32.totalorder %s17, 1
    %p40 = por %p38, %p39
    %p42 = scmp.ne.s32.totalorder %s25, %s41
    %p43 = scmp.eq.s32.totalorder %s17, 0
    %p44 = por %p42, %p43
    %s46 = sadd.s32 %s45, 1
    %p49 = scmp.eq.s32.totalorder %s11, 1
    %p50 = scmp.ne.s32.totalorder %s45, %s47
    %p51 = scmp.eq.s32.totalorder %s11, 0
    %p52 = por %p50, %p51
    %p53 = scmp.ne.s32.totalorder %s45, %s47
    %p54 = scmp.eq.s32.totalorder %s16, 1
    %p55 = por %p53, %p54
    %p56 = scmp.ne.s32.totalorder %s47, %s48
    %p57 = scmp.eq.s32.totalorder %s16, 0
    %p58 = por %p56, %p57
    %p59 = scmp.ne.s32.totalorder %s47, %s48
    %p60 = scmp.eq.s32.totalorder %s17, 1
    %p61 = por %p59, %p60
    %p63 = scmp.ne.s32.totalorder %s48, %s62
    %p64 = scmp.eq.s32.totalorder %s17, 0
    %p65 = por %p63, %p64
    %s67 = sadd.s32 %s66, 1
    %p70 = scmp.eq.s32.totalorder %s11, 1
    %p71 = scmp.ne.s32.totalorder %s66, %s68
    %p72 = scmp.eq.s32.totalorder %s11, 0
    %p73 = por %p71, %p72
    %p74 = scmp.ne.s32.totalorder %s66, %s68
    %p75 = scmp.eq.s32.totalorder %s16, 1
    %p76 = por %p74, %p75
    %p77 = scmp.ne.s32.totalorder %s68, %s69
    %p78 = scmp.eq.s32.totalorder %s16, 0
    %p79 = por %p77, %p78
    %p80 = scmp.ne.s32.totalorder %s68, %s69
    %p81 = scmp.eq.s32.totalorder %s17, 1
    %p82 = por %p80, %p81
    %p84 = scmp.ne.s32.totalorder %s69, %s83
    %p85 = scmp.eq.s32.totalorder %s17, 0
    %p86 = por %p84, %p85
    %s88 = sadd.s32 %s87, 1
    %p91 = scmp.eq.s32.totalorder %s11, 1
    %p92 = scmp.ne.s32.totalorder %s87, %s89
    %p93 = scmp.eq.s32.totalorder %s11, 0
    %p94 = por %p92, %p93
    %p95 = scmp.ne.s32.totalorder %s87, %s89
    %p96 = scmp.eq.s32.totalorder %s16, 1
    %p97 = por %p95, %p96
    %p98 = scmp.ne.s32.totalorder %s89, %s90
    %p99 = scmp.eq.s32.totalorder %s16, 0
    %p100 = por %p98, %p99
    %p101 = scmp.ne.s32.totalorder %s89, %s90
    %p102 = scmp.eq.s32.totalorder %s17, 1
    %p103 = por %p101, %p102
    %p105 = scmp.ne.s32.totalorder %s90, %s104
    %p106 = scmp.eq.s32.totalorder %s17, 0
    %p107 = por %p105, %p106
    %s109 = sadd.s32 %s108, 1
    %p112 = scmp.eq.s32.totalorder %s11, 1
    %p113 = scmp.ne.s32.totalorder %s108, %s110
    %p114 = scmp.eq.s32.totalorder %s11, 0
    %p115 = por %p113, %p114
    %p116 = scmp.ne.s32.totalorder %s108, %s110
    %p117 = scmp.eq.s32.totalorder %s16, 1
    %p118 = por %p116, %p117
    %p119 = scmp.ne.s32.totalorder %s110, %s111
    %p120 = scmp.eq.s32.totalorder %s16, 0
    %p121 = por %p119, %p120
    %p122 = scmp.ne.s32.totalorder %s110, %s111
    %p123 = scmp.eq.s32.totalorder %s17, 1
    %p124 = por %p122, %p123
    %p126 = scmp.ne.s32.totalorder %s111, %s125
    %p127 = scmp.eq.s32.totalorder %s17, 0
    %p128 = por %p126, %p127
    %s129 = ssub.s32 %s11, %s18
    %p130 = scmp.eq.s32.totalorder %s129, 0
    %s132 = sadd.s32 %s131, 1
    %s133 = scalar_select %p130, %s131, %s132
    %p136 = pneg %p130
    %p137 = scmp.eq.s32.totalorder %s11, 1
    %p138 = por %p136, %p137
    %p139 = scmp.ne.s32.totalorder %s131, %s134
    %p140 = scmp.eq.s32.totalorder %s11, 0
    %p141 = por %p139, %p140
    %p142 = scmp.ne.s32.totalorder %s131, %s134
    %p143 = scmp.eq.s32.totalorder %s16, 1
    %p144 = por %p142, %p143
    %p145 = scmp.ne.s32.totalorder %s134, %s135
    %p146 = scmp.eq.s32.totalorder %s16, 0
    %p147 = por %p145, %p146
    %p148 = scmp.ne.s32.totalorder %s134, %s135
    %p149 = scmp.eq.s32.totalorder %s17, 1
    %p150 = por %p148, %p149
    %p152 = scmp.ne.s32.totalorder %s135, %s151
    %p153 = scmp.eq.s32.totalorder %s17, 0
    %p154 = por %p152, %p153
    %p155 = scmp.le.s32.totalorder 1, %s11
    %p156 = scmp.lt.s32.totalorder %s11, 3
    %p157 = pnand %p155, %p156
    %p158 = pneg %p157
    // Predicated region
    $region9: #{conv_block_3d_fwd.1} parent=5 // pred_check
      _
    $region10: #{conv_block_3d_fwd.1} parent=5 // pred_check_branch
      %160 = sbr.rel (%p157) target = $region12
    $region11: #{conv_block_3d_fwd.1} parent=5 // pred_region
      %s161 = ssub.s32 %s11, 1
      // Predicated region
      $region13: #{conv_block_3d_fwd.1} parent=11 // pred_check
        %p162 = pneg %p58
      $region14: #{conv_block_3d_fwd.1} parent=11 // pred_check_branch
        %164 = sbr.rel (%p162) target = $region16
      $region15: #{conv_block_3d_fwd.1} parent=11 // pred_region
        _
      $region16: #{conv_block_3d_fwd.1} parent=11 // pred_fallthru
        _
      // Predicated region
      $region17: #{conv_block_3d_fwd.1} parent=11 // pred_check
        %p165 = pneg %p79
      $region18: #{conv_block_3d_fwd.1} parent=11 // pred_check_branch
        %167 = sbr.rel (%p165) target = $region20
      $region19: #{conv_block_3d_fwd.1} parent=11 // pred_region
        _
      $region20: #{conv_block_3d_fwd.1} parent=11 // pred_fallthru
        _
      // Predicated region
      $region21: #{conv_block_3d_fwd.1} parent=11 // pred_check
        %p168 = pneg %p100
      $region22: #{conv_block_3d_fwd.1} parent=11 // pred_check_branch
        %170 = sbr.rel (%p168) target = $region24
      $region23: #{conv_block_3d_fwd.1} parent=11 // pred_region
        _
      $region24: #{conv_block_3d_fwd.1} parent=11 // pred_fallthru
        _
      // Predicated region
      $region25: #{conv_block_3d_fwd.1} parent=11 // pred_check
        %p171 = pneg %p121
      $region26: #{conv_block_3d_fwd.1} parent=11 // pred_check_branch
        %173 = sbr.rel (%p171) target = $region28
      $region27: #{conv_block_3d_fwd.1} parent=11 // pred_region
        _
      $region28: #{conv_block_3d_fwd.1} parent=11 // pred_fallthru
        _
    $region12: #{conv_block_3d_fwd.1} parent=5 // pred_fallthru
      _
    %p174 = scmp.lt.s32.totalorder %s11, 2
    // Predicated region
    $region29: #{conv_block_3d_fwd.1} parent=5 // pred_check
      %p175 = pneg %p174
    $region30: #{conv_block_3d_fwd.1} parent=5 // pred_check_branch
      %177 = sbr.rel (%p175) target = $region32
    $region31: #{conv_block_3d_fwd.1} parent=5 // pred_region
      // Predicated region
      $region33: #{conv_block_3d_fwd.1} parent=31 // pred_check
        %p178 = pneg %p31
      $region34: #{conv_block_3d_fwd.1} parent=31 // pred_check_branch
        %180 = sbr.rel (%p178) target = $region36
      $region35: #{conv_block_3d_fwd.1} parent=31 // pred_region
        %p181 = scmp.lt.s32.totalorder %s11, 1
        %s182 = scalar_select %p181, %s11, 1
        %s183 = smul.addr %s182, 2
        %s184 = smul.addr %s183, 4
        %s185 = scalar_lea.vmem %s0, %s184
      $region36: #{conv_block_3d_fwd.1} parent=31 // pred_fallthru
        _
    $region32: #{conv_block_3d_fwd.1} parent=5 // pred_fallthru
      _
    %p186 = scmp.le.s32.totalorder 1, %s11
    %p187 = scmp.lt.s32.totalorder %s11, 3
    %p188 = pnand %p186, %p187
    %p189 = pneg %p188
    // Predicated region
    $region37: #{conv_block_3d_fwd.1} parent=5 // pred_check
      _
    $region38: #{conv_block_3d_fwd.1} parent=5 // pred_check_branch
      %191 = sbr.rel (%p188) target = $region40
    $region39: #{conv_block_3d_fwd.1} parent=5 // pred_region
      %s192 = ssub.s32 %s11, 1
      %p193 = scmp.lt.s32.totalorder %s16, 1
      %s194 = scalar_select %p193, %s16, 1
      %s195 = smul.addr %s194, 2
      %s196 = smul.addr %s195, 4
      %s197 = scalar_lea.vmem %s0, %s196
      %p198 = pneg %p37
      %p199 = pneg %p34
      %p200 = pneg %p58
      %p201 = pneg %p55
      %p202 = pneg %p79
      %p203 = pneg %p76
      %p204 = pneg %p100
      %p205 = pneg %p97
      %p206 = pneg %p121
      %p207 = pneg %p118
      %p208 = pneg %p147
      %p209 = pneg %p144
      %p210 = scmp.lt.s32.totalorder %s16, 1
      %s211 = scalar_select %p210, %s16, 1
      %s212 = smul.addr %s211, 4
      %s213 = smul.addr %s212, 8
      %s214 = scalar_lea.vmem %s5, %s213
      %p215 = scmp.lt.s32.totalorder %s16, 1
      %s216 = scalar_select %p215, %s16, 1
      %s217 = smul.addr %s216, 2
      %s218 = smul.addr %s217, 4
      %s219 = scalar_lea.vmem %s0, %s218
      %p220 = scmp.lt.s32.totalorder %s16, 1
      %s221 = scalar_select %p220, %s16, 1
      %s222 = smul.addr %s221, 4
      %s223 = smul.addr %s222, 8
      %s224 = scalar_lea.vmem %s5, %s223
      %v226 = vld [vmem:[%s3] sm:$0xff]
      %v227 = vld [vmem:[%s3 + $0x8] sm:$0xff]
      %v228 = vld [vmem:[%s3 + $0x10] sm:$0xff]
      %v229 = vld [vmem:[%s3 + $0x18] sm:$0xff]
      %v230 = vld [vmem:[%s3 + $0x20] sm:$0xff]
      %v231 = vld [vmem:[%s3 + $0x28] sm:$0xff]
      %v232 = vld [vmem:[%s3 + $0x30] sm:$0xff]
      %v233 = vld [vmem:[%s3 + $0x38] sm:$0xff]
      %v234 = vld [vmem:[%s3 + $0x40] sm:$0xff]
      %v235 = vld [vmem:[%s3 + $0x48] sm:$0xff]
      %v236 = vld [vmem:[%s3 + $0x50] sm:$0xff]
      %v237 = vld [vmem:[%s3 + $0x58] sm:$0xff]
      %v238 = vld [vmem:[%s3 + $0x60] sm:$0xff]
      %v239 = vld [vmem:[%s3 + $0x68] sm:$0xff]
      %v240 = vld [vmem:[%s3 + $0x70] sm:$0xff]
      %v241 = vld [vmem:[%s3 + $0x78] sm:$0xff]
      %v242 = vld [vmem:[%s3 + $0x80] sm:$0xff]
      %v243 = vld [vmem:[%s3 + $0x88] sm:$0xff]
      %v244 = vld [vmem:[%s3 + $0x90] sm:$0xff]
      %v245 = vld [vmem:[%s3 + $0x98] sm:$0xff]
      %v246 = vld [vmem:[%s3 + $0xa0] sm:$0xff]
      %v247 = vld [vmem:[%s3 + $0xa8] sm:$0xff]
      %v248 = vld [vmem:[%s3 + $0xb0] sm:$0xff]
      %v249 = vld [vmem:[%s3 + $0xb8] sm:$0xff]
      %v250 = vld [vmem:[%s3 + $0xc0] sm:$0xff]
      %v251 = vld [vmem:[%s3 + $0xc8] sm:$0xff]
      %v252 = vld [vmem:[%s3 + $0xd0] sm:$0xff]
      %v253 = vld [vmem:[%s3 + $0xd8] sm:$0xff]
      %v254 = vld [vmem:[%s3 + $0xe0] sm:$0xff]
      %v255 = vld [vmem:[%s3 + $0xe8] sm:$0xff]
      %v256 = vld [vmem:[%s3 + $0xf0] sm:$0xff]
      %v257 = vld [vmem:[%s3 + $0xf8] sm:$0xff]
      %v258 = vld [vmem:[%s3 + $0x100] sm:$0xff]
      %v259 = vld [vmem:[%s3 + $0x108] sm:$0xff]
      %v260 = vld [vmem:[%s3 + $0x110] sm:$0xff]
      %v261 = vld [vmem:[%s3 + $0x118] sm:$0xff]
      %v262 = vld [vmem:[%s3 + $0x120] sm:$0xff]
      %v263 = vld [vmem:[%s3 + $0x128] sm:$0xff]
      %v264 = vld [vmem:[%s3 + $0x130] sm:$0xff]
      %v265 = vld [vmem:[%s3 + $0x138] sm:$0xff]
      %v266 = vld [vmem:[%s3 + $0x140] sm:$0xff]
      %v267 = vld [vmem:[%s3 + $0x148] sm:$0xff]
      %v268 = vld [vmem:[%s3 + $0x150] sm:$0xff]
      %v269 = vld [vmem:[%s3 + $0x158] sm:$0xff]
      %v270 = vld [vmem:[%s3 + $0x160] sm:$0xff]
      %v271 = vld [vmem:[%s3 + $0x168] sm:$0xff]
      %v272 = vld [vmem:[%s3 + $0x170] sm:$0xff]
      %v273 = vld [vmem:[%s3 + $0x178] sm:$0xff]
      %v274 = vld [vmem:[%s3 + $0x180] sm:$0xff]
      %v275 = vld [vmem:[%s3 + $0x188] sm:$0xff]
      %v276 = vld [vmem:[%s3 + $0x190] sm:$0xff]
      %v277 = vld [vmem:[%s3 + $0x198] sm:$0xff]
      %v278 = vld [vmem:[%s3 + $0x1a0] sm:$0xff]
      %v279 = vld [vmem:[%s3 + $0x1a8] sm:$0xff]
      %v280 = vld [vmem:[%s3 + $0x1b0] sm:$0xff]
      %v281 = vld [vmem:[%s3 + $0x1b8] sm:$0xff]
      %v282 = vld [vmem:[%s3 + $0x1c0] sm:$0xff]
      %v283 = vld [vmem:[%s3 + $0x1c8] sm:$0xff]
      %v284 = vld [vmem:[%s3 + $0x1d0] sm:$0xff]
      %v285 = vld [vmem:[%s3 + $0x1d8] sm:$0xff]
      %v286 = vld [vmem:[%s3 + $0x1e0] sm:$0xff]
      %v287 = vld [vmem:[%s3 + $0x1e8] sm:$0xff]
      %v288 = vld [vmem:[%s3 + $0x1f0] sm:$0xff]
      %v289 = vld [vmem:[%s3 + $0x1f8] sm:$0xff]
      %v290 = vld [vmem:[%s4] sm:$0xff]
      %v291 = vld [vmem:[%s4 + $0x8] sm:$0xff]
      %v292 = vld [vmem:[%s4 + $0x10] sm:$0xff]
      %v293 = vld [vmem:[%s4 + $0x18] sm:$0xff]
      %vm294 = vcmask 1040384
      %vm295 = vsmask.f32 256
      %vm296 = vmand %vm294, %vm295
      %vm297 = vcmask 1044484
      %vm298 = vsmask.f32 4352
      %vm299 = vmand %vm297, %vm298
      %vm300 = vmor %vm299, %vm296
      %v301 = vld [vmem:[#allocation2] sm:$0x11]
      %v302 = vsel %vm300, 0, %v301
      %303 = vst [vmem:[#allocation2] sm:$0x11] %v302
      %vm304 = vsmask.f32 7938
      %vm305 = vmand %vm294, %vm304
      %vm306 = vsmask.f32 7954
      %vm307 = vmand %vm297, %vm306
      %vm308 = vmor %vm307, %vm305
      %v309 = vld [vmem:[#allocation2 + $0x8] sm:$0x11]
      %v310 = vsel %vm308, 0, %v309
      %311 = vst [vmem:[#allocation2 + $0x8] sm:$0x11] %v310
      %v312 = vld [vmem:[#allocation3] sm:$0x11]
      %v313 = vsel %vm300, 0, %v312
      %314 = vst [vmem:[#allocation3] sm:$0x11] %v313
      %v315 = vld [vmem:[#allocation3 + $0x8] sm:$0x11]
      %v316 = vsel %vm300, 0, %v315
      %317 = vst [vmem:[#allocation3 + $0x8] sm:$0x11] %v316
      %v318 = vld [vmem:[#allocation3 + $0x10] sm:$0x11]
      %v319 = vsel %vm308, 0, %v318
      %320 = vst [vmem:[#allocation3 + $0x10] sm:$0x11] %v319
      %v321 = vld [vmem:[#allocation3 + $0x18] sm:$0x11]
      %v322 = vsel %vm308, 0, %v321
      %323 = vst [vmem:[#allocation3 + $0x18] sm:$0x11] %v322
      %v324 = vld [vmem:[%s219] sm:$0xff]
      %v326 = vshrl.u32 %v324, 16
      %v328 = vrot.slane %v326, 7
      %v329 = vshll.u32 %v324, 16
      %v331 = vor.u32 %v328, %v329
      %v332 = vrot.slane %v328, 4
      %vm335 = vcmask 1043456
      %vm336 = vmand %vm335, %vm304
      %vm337 = vcmask 1047556
      %vm338 = vmand %vm337, %vm306
      %vm339 = vmor %vm338, %vm336
      %v340 = vld [vmem:[#allocation2] sm:$0xff]
      %v341 = vsel %vm339, %v331, %v340
      %342 = vst [vmem:[#allocation2] sm:$0xff] %v341
      %v343 = vld [vmem:[#allocation2 + $0x8] sm:$0x11]
      %v344 = vsel %vm300, %v332, %v343
      %345 = vst [vmem:[#allocation2 + $0x8] sm:$0x11] %v344
      %v346 = vld [vmem:[#allocation2] sm:$0xff]
      %v347 = vld [vmem:[%s1] sm:$0xff]
      %v348 = vld [vmem:[%s1 + $0x8] sm:$0xff]
      %v349 = vld [vmem:[%s1 + $0x10] sm:$0xff]
      %v350 = vld [vmem:[%s1 + $0x18] sm:$0xff]
      %v351 = vld [vmem:[%s1 + $0x20] sm:$0xff]
      %v352 = vld [vmem:[%s1 + $0x28] sm:$0xff]
      %v353 = vld [vmem:[%s1 + $0x30] sm:$0xff]
      %v354 = vld [vmem:[%s1 + $0x38] sm:$0xff]
      %v355 = vld [vmem:[%s1 + $0x40] sm:$0xff]
      %v356 = vld [vmem:[%s1 + $0x48] sm:$0xff]
      %v357 = vld [vmem:[%s1 + $0x50] sm:$0xff]
      %v358 = vld [vmem:[%s1 + $0x58] sm:$0xff]
      %v359 = vld [vmem:[%s1 + $0x60] sm:$0xff]
      %v360 = vld [vmem:[%s1 + $0x68] sm:$0xff]
      %v361 = vld [vmem:[%s1 + $0x70] sm:$0xff]
      %v362 = vld [vmem:[%s1 + $0x78] sm:$0xff]
      %v363 = vld [vmem:[%s1 + $0x80] sm:$0xff]
      %v364 = vld [vmem:[%s1 + $0x88] sm:$0xff]
      %v365 = vld [vmem:[%s1 + $0x90] sm:$0xff]
      %v366 = vld [vmem:[%s1 + $0x98] sm:$0xff]
      %v367 = vld [vmem:[%s1 + $0xa0] sm:$0xff]
      %v368 = vld [vmem:[%s1 + $0xa8] sm:$0xff]
      %v369 = vld [vmem:[%s1 + $0xb0] sm:$0xff]
      %v370 = vld [vmem:[%s1 + $0xb8] sm:$0xff]
      %v371 = vld [vmem:[%s1 + $0xc0] sm:$0xff]
      %v372 = vld [vmem:[%s1 + $0xc8] sm:$0xff]
      %v373 = vld [vmem:[%s1 + $0xd0] sm:$0xff]
      %v374 = vld [vmem:[%s1 + $0xd8] sm:$0xff]
      %v375 = vld [vmem:[%s1 + $0xe0] sm:$0xff]
      %v376 = vld [vmem:[%s1 + $0xe8] sm:$0xff]
      %v377 = vld [vmem:[%s1 + $0xf0] sm:$0xff]
      %v378 = vld [vmem:[%s1 + $0xf8] sm:$0xff]
      %v379 = vld [vmem:[%s1 + $0x100] sm:$0xff]
      %v380 = vld [vmem:[%s1 + $0x108] sm:$0xff]
      %v381 = vld [vmem:[%s1 + $0x110] sm:$0xff]
      %v382 = vld [vmem:[%s1 + $0x118] sm:$0xff]
      %v383 = vld [vmem:[%s1 + $0x120] sm:$0xff]
      %v384 = vld [vmem:[%s1 + $0x128] sm:$0xff]
      %v385 = vld [vmem:[%s1 + $0x130] sm:$0xff]
      %v386 = vld [vmem:[%s1 + $0x138] sm:$0xff]
      %v387 = vld [vmem:[%s1 + $0x140] sm:$0xff]
      %v388 = vld [vmem:[%s1 + $0x148] sm:$0xff]
      %v389 = vld [vmem:[%s1 + $0x150] sm:$0xff]
      %v390 = vld [vmem:[%s1 + $0x158] sm:$0xff]
      %v391 = vld [vmem:[%s1 + $0x160] sm:$0xff]
      %v392 = vld [vmem:[%s1 + $0x168] sm:$0xff]
      %v393 = vld [vmem:[%s1 + $0x170] sm:$0xff]
      %v394 = vld [vmem:[%s1 + $0x178] sm:$0xff]
      %v395 = vld [vmem:[%s1 + $0x180] sm:$0xff]
      %v396 = vld [vmem:[%s1 + $0x188] sm:$0xff]
      %v397 = vld [vmem:[%s1 + $0x190] sm:$0xff]
      %v398 = vld [vmem:[%s1 + $0x198] sm:$0xff]
      %v399 = vld [vmem:[%s1 + $0x1a0] sm:$0xff]
      %v400 = vld [vmem:[%s1 + $0x1a8] sm:$0xff]
      %v401 = vld [vmem:[%s1 + $0x1b0] sm:$0xff]
      %v402 = vld [vmem:[%s1 + $0x1b8] sm:$0xff]
      %v403 = vld [vmem:[%s1 + $0x1c0] sm:$0xff]
      %v404 = vld [vmem:[%s1 + $0x1c8] sm:$0xff]
      %v405 = vld [vmem:[%s1 + $0x1d0] sm:$0xff]
      %v406 = vld [vmem:[%s1 + $0x1d8] sm:$0xff]
      %v407 = vld [vmem:[%s1 + $0x1e0] sm:$0xff]
      %v408 = vld [vmem:[%s1 + $0x1e8] sm:$0xff]
      %v409 = vld [vmem:[%s1 + $0x1f0] sm:$0xff]
      %v410 = vld [vmem:[%s1 + $0x1f8] sm:$0xff]
      %v411 = vld [vmem:[#allocation2 + $0x8] sm:$0x11]
      %s412 = scalar_lea.vmem %s1, 512
      %v413 = vld [vmem:[%s412] sm:$0xff]
      %v414 = vld [vmem:[%s412 + $0x8] sm:$0xff]
      %v415 = vld [vmem:[%s412 + $0x10] sm:$0xff]
      %v416 = vld [vmem:[%s412 + $0x18] sm:$0xff]
      %v417 = vld [vmem:[%s412 + $0x20] sm:$0xff]
      %v418 = vld [vmem:[%s412 + $0x28] sm:$0xff]
      %v419 = vld [vmem:[%s412 + $0x30] sm:$0xff]
      %v420 = vld [vmem:[%s412 + $0x38] sm:$0xff]
      %v421 = vld [vmem:[%s412 + $0x40] sm:$0xff]
      %v422 = vld [vmem:[%s412 + $0x48] sm:$0xff]
      %v423 = vld [vmem:[%s412 + $0x50] sm:$0xff]
      %v424 = vld [vmem:[%s412 + $0x58] sm:$0xff]
      %v425 = vld [vmem:[%s412 + $0x60] sm:$0xff]
      %v426 = vld [vmem:[%s412 + $0x68] sm:$0xff]
      %v427 = vld [vmem:[%s412 + $0x70] sm:$0xff]
      %v428 = vld [vmem:[%s412 + $0x78] sm:$0xff]
      %v429 = vld [vmem:[%s412 + $0x80] sm:$0xff]
      %v430 = vld [vmem:[%s412 + $0x88] sm:$0xff]
      %v431 = vld [vmem:[%s412 + $0x90] sm:$0xff]
      %v432 = vld [vmem:[%s412 + $0x98] sm:$0xff]
      %v433 = vld [vmem:[%s412 + $0xa0] sm:$0xff]
      %v434 = vld [vmem:[%s412 + $0xa8] sm:$0xff]
      %v435 = vld [vmem:[%s412 + $0xb0] sm:$0xff]
      %v436 = vld [vmem:[%s412 + $0xb8] sm:$0xff]
      %v437 = vld [vmem:[%s412 + $0xc0] sm:$0xff]
      %v438 = vld [vmem:[%s412 + $0xc8] sm:$0xff]
      %v439 = vld [vmem:[%s412 + $0xd0] sm:$0xff]
      %v440 = vld [vmem:[%s412 + $0xd8] sm:$0xff]
      %v441 = vld [vmem:[%s412 + $0xe0] sm:$0xff]
      %v442 = vld [vmem:[%s412 + $0xe8] sm:$0xff]
      %v443 = vld [vmem:[%s412 + $0xf0] sm:$0xff]
      %v444 = vld [vmem:[%s412 + $0xf8] sm:$0xff]
      %v445 = vld [vmem:[%s412 + $0x100] sm:$0xff]
      %v446 = vld [vmem:[%s412 + $0x108] sm:$0xff]
      %v447 = vld [vmem:[%s412 + $0x110] sm:$0xff]
      %v448 = vld [vmem:[%s412 + $0x118] sm:$0xff]
      %v449 = vld [vmem:[%s412 + $0x120] sm:$0xff]
      %v450 = vld [vmem:[%s412 + $0x128] sm:$0xff]
      %v451 = vld [vmem:[%s412 + $0x130] sm:$0xff]
      %v452 = vld [vmem:[%s412 + $0x138] sm:$0xff]
      %v453 = vld [vmem:[%s412 + $0x140] sm:$0xff]
      %v454 = vld [vmem:[%s412 + $0x148] sm:$0xff]
      %v455 = vld [vmem:[%s412 + $0x150] sm:$0xff]
      %v456 = vld [vmem:[%s412 + $0x158] sm:$0xff]
      %v457 = vld [vmem:[%s412 + $0x160] sm:$0xff]
      %v458 = vld [vmem:[%s412 + $0x168] sm:$0xff]
      %v459 = vld [vmem:[%s412 + $0x170] sm:$0xff]
      %v460 = vld [vmem:[%s412 + $0x178] sm:$0xff]
      %v461 = vld [vmem:[%s412 + $0x180] sm:$0xff]
      %v462 = vld [vmem:[%s412 + $0x188] sm:$0xff]
      %v463 = vld [vmem:[%s412 + $0x190] sm:$0xff]
      %v464 = vld [vmem:[%s412 + $0x198] sm:$0xff]
      %v465 = vld [vmem:[%s412 + $0x1a0] sm:$0xff]
      %v466 = vld [vmem:[%s412 + $0x1a8] sm:$0xff]
      %v467 = vld [vmem:[%s412 + $0x1b0] sm:$0xff]
      %v468 = vld [vmem:[%s412 + $0x1b8] sm:$0xff]
      %v469 = vld [vmem:[%s412 + $0x1c0] sm:$0xff]
      %v470 = vld [vmem:[%s412 + $0x1c8] sm:$0xff]
      %v471 = vld [vmem:[%s412 + $0x1d0] sm:$0xff]
      %v472 = vld [vmem:[%s412 + $0x1d8] sm:$0xff]
      %v473 = vld [vmem:[%s412 + $0x1e0] sm:$0xff]
      %v474 = vld [vmem:[%s412 + $0x1e8] sm:$0xff]
      %v475 = vld [vmem:[%s412 + $0x1f0] sm:$0xff]
      %v476 = vld [vmem:[%s412 + $0x1f8] sm:$0xff]
      %v479 = vunpack.c.l.b16 %v346
      %v480 = vunpack.c.h.b16 %v346
      %v481 = vunpack.c.l.b16 %v411
      %v482 = vunpack.c.h.b16 %v411
      %v483 = vpack.c.b16 %v481, %v479
      %v484 = vpack.c.b16 %v482, %v480
      %v486 = vshrl.u32 %v483, 16
      %v488 = vshll.u32 %v483, 16
      %v490 = vrot.slane %v488, 1
      %v491 = vor.u32 %v486, %v490
      %v493 = vshrl.u32 %v484, 16
      %v495 = vshll.u32 %v484, 16
      %v497 = vrot.slane %v495, 1
      %v498 = vor.u32 %v493, %v497
      %v565 = vunpack.c.l.b16 %v413
      %v566 = vunpack.c.h.b16 %v413
      %v567 = vunpack.c.l.b16 %v414
      %v568 = vunpack.c.h.b16 %v414
      %v569 = vunpack.c.l.b16 %v415
      %v570 = vunpack.c.h.b16 %v415
      %v571 = vunpack.c.l.b16 %v416
      %v572 = vunpack.c.h.b16 %v416
      %v573 = vunpack.c.l.b16 %v417
      %v574 = vunpack.c.h.b16 %v417
      %v575 = vunpack.c.l.b16 %v418
      %v576 = vunpack.c.h.b16 %v418
      %v577 = vunpack.c.l.b16 %v419
      %v578 = vunpack.c.h.b16 %v419
      %v579 = vunpack.c.l.b16 %v420
      %v580 = vunpack.c.h.b16 %v420
      %v581 = vunpack.c.l.b16 %v421
      %v582 = vunpack.c.h.b16 %v421
      %v583 = vunpack.c.l.b16 %v422
      %v584 = vunpack.c.h.b16 %v422
      %v585 = vunpack.c.l.b16 %v423
      %v586 = vunpack.c.h.b16 %v423
      %v587 = vunpack.c.l.b16 %v424
      %v588 = vunpack.c.h.b16 %v424
      %v589 = vunpack.c.l.b16 %v425
      %v590 = vunpack.c.h.b16 %v425
      %v591 = vunpack.c.l.b16 %v426
      %v592 = vunpack.c.h.b16 %v426
      %v593 = vunpack.c.l.b16 %v427
      %v594 = vunpack.c.h.b16 %v427
      %v595 = vunpack.c.l.b16 %v428
      %v596 = vunpack.c.h.b16 %v428
      %v597 = vunpack.c.l.b16 %v429
      %v598 = vunpack.c.h.b16 %v429
      %v599 = vunpack.c.l.b16 %v430
      %v600 = vunpack.c.h.b16 %v430
      %v601 = vunpack.c.l.b16 %v431
      %v602 = vunpack.c.h.b16 %v431
      %v603 = vunpack.c.l.b16 %v432
      %v604 = vunpack.c.h.b16 %v432
      %v605 = vunpack.c.l.b16 %v433
      %v606 = vunpack.c.h.b16 %v433
      %v607 = vunpack.c.l.b16 %v434
      %v608 = vunpack.c.h.b16 %v434
      %v609 = vunpack.c.l.b16 %v435
      %v610 = vunpack.c.h.b16 %v435
      %v611 = vunpack.c.l.b16 %v436
      %v612 = vunpack.c.h.b16 %v436
      %v613 = vunpack.c.l.b16 %v437
      %v614 = vunpack.c.h.b16 %v437
      %v615 = vunpack.c.l.b16 %v438
      %v616 = vunpack.c.h.b16 %v438
      %v617 = vunpack.c.l.b16 %v439
      %v618 = vunpack.c.h.b16 %v439
      %v619 = vunpack.c.l.b16 %v440
      %v620 = vunpack.c.h.b16 %v440
      %v621 = vunpack.c.l.b16 %v441
      %v622 = vunpack.c.h.b16 %v441
      %v623 = vunpack.c.l.b16 %v442
      %v624 = vunpack.c.h.b16 %v442
      %v625 = vunpack.c.l.b16 %v443
      %v626 = vunpack.c.h.b16 %v443
      %v627 = vunpack.c.l.b16 %v444
      %v628 = vunpack.c.h.b16 %v444
      %v629 = vunpack.c.l.b16 %v445
      %v630 = vunpack.c.h.b16 %v445
      %v631 = vunpack.c.l.b16 %v446
      %v632 = vunpack.c.h.b16 %v446
      %v633 = vunpack.c.l.b16 %v447
      %v634 = vunpack.c.h.b16 %v447
      %v635 = vunpack.c.l.b16 %v448
      %v636 = vunpack.c.h.b16 %v448
      %v637 = vunpack.c.l.b16 %v449
      %v638 = vunpack.c.h.b16 %v449
      %v639 = vunpack.c.l.b16 %v450
      %v640 = vunpack.c.h.b16 %v450
      %v641 = vunpack.c.l.b16 %v451
      %v642 = vunpack.c.h.b16 %v451
      %v643 = vunpack.c.l.b16 %v452
      %v644 = vunpack.c.h.b16 %v452
      %v645 = vunpack.c.l.b16 %v453
      %v646 = vunpack.c.h.b16 %v453
      %v647 = vunpack.c.l.b16 %v454
      %v648 = vunpack.c.h.b16 %v454
      %v649 = vunpack.c.l.b16 %v455
      %v650 = vunpack.c.h.b16 %v455
      %v651 = vunpack.c.l.b16 %v456
      %v652 = vunpack.c.h.b16 %v456
      %v653 = vunpack.c.l.b16 %v457
      %v654 = vunpack.c.h.b16 %v457
      %v655 = vunpack.c.l.b16 %v458
      %v656 = vunpack.c.h.b16 %v458
      %v657 = vunpack.c.l.b16 %v459
      %v658 = vunpack.c.h.b16 %v459
      %v659 = vunpack.c.l.b16 %v460
      %v660 = vunpack.c.h.b16 %v460
      %v661 = vunpack.c.l.b16 %v461
      %v662 = vunpack.c.h.b16 %v461
      %v663 = vunpack.c.l.b16 %v462
      %v664 = vunpack.c.h.b16 %v462
      %v665 = vunpack.c.l.b16 %v463
      %v666 = vunpack.c.h.b16 %v463
      %v667 = vunpack.c.l.b16 %v464
      %v668 = vunpack.c.h.b16 %v464
      %v669 = vunpack.c.l.b16 %v465
      %v670 = vunpack.c.h.b16 %v465
      %v671 = vunpack.c.l.b16 %v466
      %v672 = vunpack.c.h.b16 %v466
      %v673 = vunpack.c.l.b16 %v467
      %v674 = vunpack.c.h.b16 %v467
      %v675 = vunpack.c.l.b16 %v468
      %v676 = vunpack.c.h.b16 %v468
      %v677 = vunpack.c.l.b16 %v469
      %v678 = vunpack.c.h.b16 %v469
      %v679 = vunpack.c.l.b16 %v470
      %v680 = vunpack.c.h.b16 %v470
      %v681 = vunpack.c.l.b16 %v471
      %v682 = vunpack.c.h.b16 %v471
      %v683 = vunpack.c.l.b16 %v472
      %v684 = vunpack.c.h.b16 %v472
      %v685 = vunpack.c.l.b16 %v473
      %v686 = vunpack.c.h.b16 %v473
      %v687 = vunpack.c.l.b16 %v474
      %v688 = vunpack.c.h.b16 %v474
      %v689 = vunpack.c.l.b16 %v475
      %v690 = vunpack.c.h.b16 %v475
      %v691 = vunpack.c.l.b16 %v476
      %v692 = vunpack.c.h.b16 %v476
      %v693 = vpack.c.b16 %v569, %v565
      %v694 = vpack.c.b16 %v570, %v566
      %v695 = vpack.c.b16 %v571, %v567
      %v696 = vpack.c.b16 %v572, %v568
      %v697 = vpack.c.b16 %v577, %v573
      %v698 = vpack.c.b16 %v578, %v574
      %v699 = vpack.c.b16 %v579, %v575
      %v700 = vpack.c.b16 %v580, %v576
      %v701 = vpack.c.b16 %v585, %v581
      %v702 = vpack.c.b16 %v586, %v582
      %v703 = vpack.c.b16 %v587, %v583
      %v704 = vpack.c.b16 %v588, %v584
      %v705 = vpack.c.b16 %v593, %v589
      %v706 = vpack.c.b16 %v594, %v590
      %v707 = vpack.c.b16 %v595, %v591
      %v708 = vpack.c.b16 %v596, %v592
      %v709 = vpack.c.b16 %v601, %v597
      %v710 = vpack.c.b16 %v602, %v598
      %v711 = vpack.c.b16 %v603, %v599
      %v712 = vpack.c.b16 %v604, %v600
      %v713 = vpack.c.b16 %v609, %v605
      %v714 = vpack.c.b16 %v610, %v606
      %v715 = vpack.c.b16 %v611, %v607
      %v716 = vpack.c.b16 %v612, %v608
      %v717 = vpack.c.b16 %v617, %v613
      %v718 = vpack.c.b16 %v618, %v614
      %v719 = vpack.c.b16 %v619, %v615
      %v720 = vpack.c.b16 %v620, %v616
      %v721 = vpack.c.b16 %v625, %v621
      %v722 = vpack.c.b16 %v626, %v622
      %v723 = vpack.c.b16 %v627, %v623
      %v724 = vpack.c.b16 %v628, %v624
      %v725 = vpack.c.b16 %v633, %v629
      %v726 = vpack.c.b16 %v634, %v630
      %v727 = vpack.c.b16 %v635, %v631
      %v728 = vpack.c.b16 %v636, %v632
      %v729 = vpack.c.b16 %v641, %v637
      %v730 = vpack.c.b16 %v642, %v638
      %v731 = vpack.c.b16 %v643, %v639
      %v732 = vpack.c.b16 %v644, %v640
      %v733 = vpack.c.b16 %v649, %v645
      %v734 = vpack.c.b16 %v650, %v646
      %v735 = vpack.c.b16 %v651, %v647
      %v736 = vpack.c.b16 %v652, %v648
      %v737 = vpack.c.b16 %v657, %v653
      %v738 = vpack.c.b16 %v658, %v654
      %v739 = vpack.c.b16 %v659, %v655
      %v740 = vpack.c.b16 %v660, %v656
      %v741 = vpack.c.b16 %v665, %v661
      %v742 = vpack.c.b16 %v666, %v662
      %v743 = vpack.c.b16 %v667, %v663
      %v744 = vpack.c.b16 %v668, %v664
      %v745 = vpack.c.b16 %v673, %v669
      %v746 = vpack.c.b16 %v674, %v670
      %v747 = vpack.c.b16 %v675, %v671
      %v748 = vpack.c.b16 %v676, %v672
      %v749 = vpack.c.b16 %v681, %v677
      %v750 = vpack.c.b16 %v682, %v678
      %v751 = vpack.c.b16 %v683, %v679
      %v752 = vpack.c.b16 %v684, %v680
      %v753 = vpack.c.b16 %v689, %v685
      %v754 = vpack.c.b16 %v690, %v686
      %v755 = vpack.c.b16 %v691, %v687
      %v756 = vpack.c.b16 %v692, %v688
      %821 = vmatprep.subr.bf16.mxu0 %v694
      %822 = vmatpush1.bf16.msra.mxu0 %v693
      %823 = vmatprep.subr.bf16.mxu0 %v698
      %824 = vmatpush1.bf16.msra.mxu0 %v697
      %825 = vmatprep.subr.bf16.mxu0 %v702
      %826 = vmatpush1.bf16.msra.mxu0 %v701
      %827 = vmatprep.subr.bf16.mxu0 %v706
      %828 = vmatpush1.bf16.msra.mxu0 %v705
      %829 = vmatprep.subr.bf16.mxu0 %v710
      %830 = vmatpush1.bf16.msra.mxu0 %v709
      %831 = vmatprep.subr.bf16.mxu0 %v714
      %832 = vmatpush1.bf16.msra.mxu0 %v713
      %833 = vmatprep.subr.bf16.mxu0 %v718
      %834 = vmatpush1.bf16.msra.mxu0 %v717
      %835 = vmatprep.subr.bf16.mxu0 %v722
      %836 = vmatpush1.bf16.msra.mxu0 %v721
      %837 = vmatprep.subr.bf16.mxu0 %v726
      %838 = vmatpush1.bf16.msra.mxu0 %v725
      %839 = vmatprep.subr.bf16.mxu0 %v730
      %840 = vmatpush1.bf16.msra.mxu0 %v729
      %841 = vmatprep.subr.bf16.mxu0 %v734
      %842 = vmatpush1.bf16.msra.mxu0 %v733
      %843 = vmatprep.subr.bf16.mxu0 %v738
      %844 = vmatpush1.bf16.msra.mxu0 %v737
      %845 = vmatprep.subr.bf16.mxu0 %v742
      %846 = vmatpush1.bf16.msra.mxu0 %v741
      %847 = vmatprep.subr.bf16.mxu0 %v746
      %848 = vmatpush1.bf16.msra.mxu0 %v745
      %849 = vmatprep.subr.bf16.mxu0 %v750
      %850 = vmatpush1.bf16.msra.mxu0 %v749
      %851 = vmatprep.subr.bf16.mxu0 %v754
      %852 = vmatpush1.bf16.msra.mxu0 %v753
      %853 = vmatprep.mubr.bf16.mxu0 %v498
      %854 = vmatmul.mubr.bf16.gmra.mrb[0].mxu0 %v491
      %v855 = vpop.f32.mrb[0].mxu0
      %v856 = vadd.f32 0.0, %v855
      %v857 = vpop.f32.mrb[0].mxu0
      %v858 = vadd.f32 0.0, %v857
      %v859 = vpop.f32.mrb[0].mxu0
      %v860 = vpop.f32.mrb[0].mxu0
      %861 = vdwg.mxu0
      %862 = vmatprep.subr.bf16.mxu0 %v696
      %863 = vmatpush1.bf16.msra.mxu0 %v695
      %864 = vmatprep.subr.bf16.mxu0 %v700
      %865 = vmatpush1.bf16.msra.mxu0 %v699
      %866 = vmatprep.subr.bf16.mxu0 %v704
      %867 = vmatpush1.bf16.msra.mxu0 %v703
      %868 = vmatprep.subr.bf16.mxu0 %v708
      %869 = vmatpush1.bf16.msra.mxu0 %v707
      %870 = vmatprep.subr.bf16.mxu0 %v712
      %871 = vmatpush1.bf16.msra.mxu0 %v711
      %872 = vmatprep.subr.bf16.mxu0 %v716
      %873 = vmatpush1.bf16.msra.mxu0 %v715
      %874 = vmatprep.subr.bf16.mxu0 %v720
      %875 = vmatpush1.bf16.msra.mxu0 %v719
      %876 = vmatprep.subr.bf16.mxu0 %v724
      %877 = vmatpush1.bf16.msra.mxu0 %v723
      %878 = vmatprep.subr.bf16.mxu0 %v728
      %879 = vmatpush1.bf16.msra.mxu0 %v727
      %880 = vmatprep.subr.bf16.mxu0 %v732
      %881 = vmatpush1.bf16.msra.mxu0 %v731
      %882 = vmatprep.subr.bf16.mxu0 %v736
      %883 = vmatpush1.bf16.msra.mxu0 %v735
      %884 = vmatprep.subr.bf16.mxu0 %v740
      %885 = vmatpush1.bf16.msra.mxu0 %v739
      %886 = vmatprep.subr.bf16.mxu0 %v744
      %887 = vmatpush1.bf16.msra.mxu0 %v743
      %888 = vmatprep.subr.bf16.mxu0 %v748
      %889 = vmatpush1.bf16.msra.mxu0 %v747
      %890 = vmatprep.subr.bf16.mxu0 %v752
      %891 = vmatpush1.bf16.msra.mxu0 %v751
      %892 = vmatprep.subr.bf16.mxu0 %v756
      %893 = vmatpush1.bf16.msra.mxu0 %v755
      %894 = vmatprep.mubr.bf16.mxu0 %v498
      %895 = vmatmul.mubr.bf16.gmra.mrb[0].mxu0 %v491
      %v896 = vpop.f32.mrb[0].mxu0
      %v897 = vadd.f32 0.0, %v896
      %v898 = vpop.f32.mrb[0].mxu0
      %v899 = vadd.f32 0.0, %v898
      %v900 = vpop.f32.mrb[0].mxu0
      %v901 = vpop.f32.mrb[0].mxu0
      %902 = vdwg.mxu0
      %v903 = vpack.c.b16 %v479, %v479
      %v904 = vpack.c.b16 %v480, %v480
      %v971 = vunpack.c.l.b16 %v347
      %v972 = vunpack.c.h.b16 %v347
      %v973 = vunpack.c.l.b16 %v348
      %v974 = vunpack.c.h.b16 %v348
      %v975 = vunpack.c.l.b16 %v349
      %v976 = vunpack.c.h.b16 %v349
      %v977 = vunpack.c.l.b16 %v350
      %v978 = vunpack.c.h.b16 %v350
      %v979 = vunpack.c.l.b16 %v351
      %v980 = vunpack.c.h.b16 %v351
      %v981 = vunpack.c.l.b16 %v352
      %v982 = vunpack.c.h.b16 %v352
      %v983 = vunpack.c.l.b16 %v353
      %v984 = vunpack.c.h.b16 %v353
      %v985 = vunpack.c.l.b16 %v354
      %v986 = vunpack.c.h.b16 %v354
      %v987 = vunpack.c.l.b16 %v355
      %v988 = vunpack.c.h.b16 %v355
      %v989 = vunpack.c.l.b16 %v356
      %v990 = vunpack.c.h.b16 %v356
      %v991 = vunpack.c.l.b16 %v357
      %v992 = vunpack.c.h.b16 %v357
      %v993 = vunpack.c.l.b16 %v358
      %v994 = vunpack.c.h.b16 %v358
      %v995 = vunpack.c.l.b16 %v359
      %v996 = vunpack.c.h.b16 %v359
      %v997 = vunpack.c.l.b16 %v360
      %v998 = vunpack.c.h.b16 %v360
      %v999 = vunpack.c.l.b16 %v361
      %v1000 = vunpack.c.h.b16 %v361
      %v1001 = vunpack.c.l.b16 %v362
      %v1002 = vunpack.c.h.b16 %v362
      %v1003 = vunpack.c.l.b16 %v363
      %v1004 = vunpack.c.h.b16 %v363
      %v1005 = vunpack.c.l.b16 %v364
      %v1006 = vunpack.c.h.b16 %v364
      %v1007 = vunpack.c.l.b16 %v365
      %v1008 = vunpack.c.h.b16 %v365
      %v1009 = vunpack.c.l.b16 %v366
      %v1010 = vunpack.c.h.b16 %v366
      %v1011 = vunpack.c.l.b16 %v367
      %v1012 = vunpack.c.h.b16 %v367
      %v1013 = vunpack.c.l.b16 %v368
      %v1014 = vunpack.c.h.b16 %v368
      %v1015 = vunpack.c.l.b16 %v369
      %v1016 = vunpack.c.h.b16 %v369
      %v1017 = vunpack.c.l.b16 %v370
      %v1018 = vunpack.c.h.b16 %v370
      %v1019 = vunpack.c.l.b16 %v371
      %v1020 = vunpack.c.h.b16 %v371
      %v1021 = vunpack.c.l.b16 %v372
      %v1022 = vunpack.c.h.b16 %v372
      %v1023 = vunpack.c.l.b16 %v373
      %v1024 = vunpack.c.h.b16 %v373
      %v1025 = vunpack.c.l.b16 %v374
      %v1026 = vunpack.c.h.b16 %v374
      %v1027 = vunpack.c.l.b16 %v375
      %v1028 = vunpack.c.h.b16 %v375
      %v1029 = vunpack.c.l.b16 %v376
      %v1030 = vunpack.c.h.b16 %v376
      %v1031 = vunpack.c.l.b16 %v377
      %v1032 = vunpack.c.h.b16 %v377
      %v1033 = vunpack.c.l.b16 %v378
      %v1034 = vunpack.c.h.b16 %v378
      %v1035 = vunpack.c.l.b16 %v379
      %v1036 = vunpack.c.h.b16 %v379
      %v1037 = vunpack.c.l.b16 %v380
      %v1038 = vunpack.c.h.b16 %v380
      %v1039 = vunpack.c.l.b16 %v381
      %v1040 = vunpack.c.h.b16 %v381
      %v1041 = vunpack.c.l.b16 %v382
      %v1042 = vunpack.c.h.b16 %v382
      %v1043 = vunpack.c.l.b16 %v383
      %v1044 = vunpack.c.h.b16 %v383
      %v1045 = vunpack.c.l.b16 %v384
      %v1046 = vunpack.c.h.b16 %v384
      %v1047 = vunpack.c.l.b16 %v385
      %v1048 = vunpack.c.h.b16 %v385
      %v1049 = vunpack.c.l.b16 %v386
      %v1050 = vunpack.c.h.b16 %v386
      %v1051 = vunpack.c.l.b16 %v387
      %v1052 = vunpack.c.h.b16 %v387
      %v1053 = vunpack.c.l.b16 %v388
      %v1054 = vunpack.c.h.b16 %v388
      %v1055 = vunpack.c.l.b16 %v389
      %v1056 = vunpack.c.h.b16 %v389
      %v1057 = vunpack.c.l.b16 %v390
      %v1058 = vunpack.c.h.b16 %v390
      %v1059 = vunpack.c.l.b16 %v391
      %v1060 = vunpack.c.h.b16 %v391
      %v1061 = vunpack.c.l.b16 %v392
      %v1062 = vunpack.c.h.b16 %v392
      %v1063 = vunpack.c.l.b16 %v393
      %v1064 = vunpack.c.h.b16 %v393
      %v1065 = vunpack.c.l.b16 %v394
      %v1066 = vunpack.c.h.b16 %v394
      %v1067 = vunpack.c.l.b16 %v395
      %v1068 = vunpack.c.h.b16 %v395
      %v1069 = vunpack.c.l.b16 %v396
      %v1070 = vunpack.c.h.b16 %v396
      %v1071 = vunpack.c.l.b16 %v397
      %v1072 = vunpack.c.h.b16 %v397
      %v1073 = vunpack.c.l.b16 %v398
      %v1074 = vunpack.c.h.b16 %v398
      %v1075 = vunpack.c.l.b16 %v399
      %v1076 = vunpack.c.h.b16 %v399
      %v1077 = vunpack.c.l.b16 %v400
      %v1078 = vunpack.c.h.b16 %v400
      %v1079 = vunpack.c.l.b16 %v401
      %v1080 = vunpack.c.h.b16 %v401
      %v1081 = vunpack.c.l.b16 %v402
      %v1082 = vunpack.c.h.b16 %v402
      %v1083 = vunpack.c.l.b16 %v403
      %v1084 = vunpack.c.h.b16 %v403
      %v1085 = vunpack.c.l.b16 %v404
      %v1086 = vunpack.c.h.b16 %v404
      %v1087 = vunpack.c.l.b16 %v405
      %v1088 = vunpack.c.h.b16 %v405
      %v1089 = vunpack.c.l.b16 %v406
      %v1090 = vunpack.c.h.b16 %v406
      %v1091 = vunpack.c.l.b16 %v407
      %v1092 = vunpack.c.h.b16 %v407
      %v1093 = vunpack.c.l.b16 %v408
      %v1094 = vunpack.c.h.b16 %v408
      %v1095 = vunpack.c.l.b16 %v409
      %v1096 = vunpack.c.h.b16 %v409
      %v1097 = vunpack.c.l.b16 %v410
      %v1098 = vunpack.c.h.b16 %v410
      %v1099 = vpack.c.b16 %v975, %v971
      %v1100 = vpack.c.b16 %v976, %v972
      %v1101 = vpack.c.b16 %v977, %v973
      %v1102 = vpack.c.b16 %v978, %v974
      %v1103 = vpack.c.b16 %v983, %v979
      %v1104 = vpack.c.b16 %v984, %v980
      %v1105 = vpack.c.b16 %v985, %v981
      %v1106 = vpack.c.b16 %v986, %v982
      %v1107 = vpack.c.b16 %v991, %v987
      %v1108 = vpack.c.b16 %v992, %v988
      %v1109 = vpack.c.b16 %v993, %v989
      %v1110 = vpack.c.b16 %v994, %v990
      %v1111 = vpack.c.b16 %v999, %v995
      %v1112 = vpack.c.b16 %v1000, %v996
      %v1113 = vpack.c.b16 %v1001, %v997
      %v1114 = vpack.c.b16 %v1002, %v998
      %v1115 = vpack.c.b16 %v1007, %v1003
      %v1116 = vpack.c.b16 %v1008, %v1004
      %v1117 = vpack.c.b16 %v1009, %v1005
      %v1118 = vpack.c.b16 %v1010, %v1006
      %v1119 = vpack.c.b16 %v1015, %v1011
      %v1120 = vpack.c.b16 %v1016, %v1012
      %v1121 = vpack.c.b16 %v1017, %v1013
      %v1122 = vpack.c.b16 %v1018, %v1014
      %v1123 = vpack.c.b16 %v1023, %v1019
      %v1124 = vpack.c.b16 %v1024, %v1020
      %v1125 = vpack.c.b16 %v1025, %v1021
      %v1126 = vpack.c.b16 %v1026, %v1022
      %v1127 = vpack.c.b16 %v1031, %v1027
      %v1128 = vpack.c.b16 %v1032, %v1028
      %v1129 = vpack.c.b16 %v1033, %v1029
      %v1130 = vpack.c.b16 %v1034, %v1030
      %v1131 = vpack.c.b16 %v1039, %v1035
      %v1132 = vpack.c.b16 %v1040, %v1036
      %v1133 = vpack.c.b16 %v1041, %v1037
      %v1134 = vpack.c.b16 %v1042, %v1038
      %v1135 = vpack.c.b16 %v1047, %v1043
      %v1136 = vpack.c.b16 %v1048, %v1044
      %v1137 = vpack.c.b16 %v1049, %v1045
      %v1138 = vpack.c.b16 %v1050, %v1046
      %v1139 = vpack.c.b16 %v1055, %v1051
      %v1140 = vpack.c.b16 %v1056, %v1052
      %v1141 = vpack.c.b16 %v1057, %v1053
      %v1142 = vpack.c.b16 %v1058, %v1054
      %v1143 = vpack.c.b16 %v1063, %v1059
      %v1144 = vpack.c.b16 %v1064, %v1060
      %v1145 = vpack.c.b16 %v1065, %v1061
      %v1146 = vpack.c.b16 %v1066, %v1062
      %v1147 = vpack.c.b16 %v1071, %v1067
      %v1148 = vpack.c.b16 %v1072, %v1068
      %v1149 = vpack.c.b16 %v1073, %v1069
      %v1150 = vpack.c.b16 %v1074, %v1070
      %v1151 = vpack.c.b16 %v1079, %v1075
      %v1152 = vpack.c.b16 %v1080, %v1076
      %v1153 = vpack.c.b16 %v1081, %v1077
      %v1154 = vpack.c.b16 %v1082, %v1078
      %v1155 = vpack.c.b16 %v1087, %v1083
      %v1156 = vpack.c.b16 %v1088, %v1084
      %v1157 = vpack.c.b16 %v1089, %v1085
      %v1158 = vpack.c.b16 %v1090, %v1086
      %v1159 = vpack.c.b16 %v1095, %v1091
      %v1160 = vpack.c.b16 %v1096, %v1092
      %v1161 = vpack.c.b16 %v1097, %v1093
      %v1162 = vpack.c.b16 %v1098, %v1094
      %1227 = vmatprep.subr.bf16.mxu0 %v1100
      %1228 = vmatpush1.bf16.msra.mxu0 %v1099
      %1229 = vmatprep.subr.bf16.mxu0 %v1104
      %1230 = vmatpush1.bf16.msra.mxu0 %v1103
      %1231 = vmatprep.subr.bf16.mxu0 %v1108
      %1232 = vmatpush1.bf16.msra.mxu0 %v1107
      %1233 = vmatprep.subr.bf16.mxu0 %v1112
      %1234 = vmatpush1.bf16.msra.mxu0 %v1111
      %1235 = vmatprep.subr.bf16.mxu0 %v1116
      %1236 = vmatpush1.bf16.msra.mxu0 %v1115
      %1237 = vmatprep.subr.bf16.mxu0 %v1120
      %1238 = vmatpush1.bf16.msra.mxu0 %v1119
      %1239 = vmatprep.subr.bf16.mxu0 %v1124
      %1240 = vmatpush1.bf16.msra.mxu0 %v1123
      %1241 = vmatprep.subr.bf16.mxu0 %v1128
      %1242 = vmatpush1.bf16.msra.mxu0 %v1127
      %1243 = vmatprep.subr.bf16.mxu0 %v1132
      %1244 = vmatpush1.bf16.msra.mxu0 %v1131
      %1245 = vmatprep.subr.bf16.mxu0 %v1136
      %1246 = vmatpush1.bf16.msra.mxu0 %v1135
      %1247 = vmatprep.subr.bf16.mxu0 %v1140
      %1248 = vmatpush1.bf16.msra.mxu0 %v1139
      %1249 = vmatprep.subr.bf16.mxu0 %v1144
      %1250 = vmatpush1.bf16.msra.mxu0 %v1143
      %1251 = vmatprep.subr.bf16.mxu0 %v1148
      %1252 = vmatpush1.bf16.msra.mxu0 %v1147
      %1253 = vmatprep.subr.bf16.mxu0 %v1152
      %1254 = vmatpush1.bf16.msra.mxu0 %v1151
      %1255 = vmatprep.subr.bf16.mxu0 %v1156
      %1256 = vmatpush1.bf16.msra.mxu0 %v1155
      %1257 = vmatprep.subr.bf16.mxu0 %v1160
      %1258 = vmatpush1.bf16.msra.mxu0 %v1159
      %1259 = vmatprep.mubr.bf16.mxu0 %v904
      %1260 = vmatmul.mubr.bf16.gmra.mrb[0].mxu0 %v903
      %v1261 = vpop.f32.mrb[0].mxu0
      %v1262 = vadd.f32 %v856, %v1261
      %v1263 = vpop.f32.mrb[0].mxu0
      %v1264 = vadd.f32 %v858, %v1263
      %v1265 = vpop.f32.mrb[0].mxu0
      %v1266 = vpop.f32.mrb[0].mxu0
      %1267 = vdwg.mxu0
      %1268 = vmatprep.subr.bf16.mxu0 %v1102
      %1269 = vmatpush1.bf16.msra.mxu0 %v1101
      %1270 = vmatprep.subr.bf16.mxu0 %v1106
      %1271 = vmatpush1.bf16.msra.mxu0 %v1105
      %1272 = vmatprep.subr.bf16.mxu0 %v1110
      %1273 = vmatpush1.bf16.msra.mxu0 %v1109
      %1274 = vmatprep.subr.bf16.mxu0 %v1114
      %1275 = vmatpush1.bf16.msra.mxu0 %v1113
      %1276 = vmatprep.subr.bf16.mxu0 %v1118
      %1277 = vmatpush1.bf16.msra.mxu0 %v1117
      %1278 = vmatprep.subr.bf16.mxu0 %v1122
      %1279 = vmatpush1.bf16.msra.mxu0 %v1121
      %1280 = vmatprep.subr.bf16.mxu0 %v1126
      %1281 = vmatpush1.bf16.msra.mxu0 %v1125
      %1282 = vmatprep.subr.bf16.mxu0 %v1130
      %1283 = vmatpush1.bf16.msra.mxu0 %v1129
      %1284 = vmatprep.subr.bf16.mxu0 %v1134
      %1285 = vmatpush1.bf16.msra.mxu0 %v1133
      %1286 = vmatprep.subr.bf16.mxu0 %v1138
      %1287 = vmatpush1.bf16.msra.mxu0 %v1137
      %1288 = vmatprep.subr.bf16.mxu0 %v1142
      %1289 = vmatpush1.bf16.msra.mxu0 %v1141
      %1290 = vmatprep.subr.bf16.mxu0 %v1146
      %1291 = vmatpush1.bf16.msra.mxu0 %v1145
      %1292 = vmatprep.subr.bf16.mxu0 %v1150
      %1293 = vmatpush1.bf16.msra.mxu0 %v1149
      %1294 = vmatprep.subr.bf16.mxu0 %v1154
      %1295 = vmatpush1.bf16.msra.mxu0 %v1153
      %1296 = vmatprep.subr.bf16.mxu0 %v1158
      %1297 = vmatpush1.bf16.msra.mxu0 %v1157
      %1298 = vmatprep.subr.bf16.mxu0 %v1162
      %1299 = vmatpush1.bf16.msra.mxu0 %v1161
      %1300 = vmatprep.mubr.bf16.mxu0 %v904
      %1301 = vmatmul.mubr.bf16.gmra.mrb[0].mxu0 %v903
      %v1302 = vpop.f32.mrb[0].mxu0
      %v1303 = vadd.f32 %v897, %v1302
      %v1304 = vpop.f32.mrb[0].mxu0
      %v1305 = vadd.f32 %v899, %v1304
      %v1306 = vpop.f32.mrb[0].mxu0
      %v1307 = vpop.f32.mrb[0].mxu0
      %1308 = vdwg.mxu0
      %v1309 = vld [vmem:[#allocation2] sm:$0xee]
      %s1310 = scalar_lea.vmem %s1, 1024
      %v1311 = vld [vmem:[%s1310] sm:$0xff]
      %v1312 = vld [vmem:[%s1310 + $0x8] sm:$0xff]
      %v1313 = vld [vmem:[%s1310 + $0x10] sm:$0xff]
      %v1314 = vld [vmem:[%s1310 + $0x18] sm:$0xff]
      %v1315 = vld [vmem:[%s1310 + $0x20] sm:$0xff]
      %v1316 = vld [vmem:[%s1310 + $0x28] sm:$0xff]
      %v1317 = vld [vmem:[%s1310 + $0x30] sm:$0xff]
      %v1318 = vld [vmem:[%s1310 + $0x38] sm:$0xff]
      %v1319 = vld [vmem:[%s1310 + $0x40] sm:$0xff]
      %v1320 = vld [vmem:[%s1310 + $0x48] sm:$0xff]
      %v1321 = vld [vmem:[%s1310 + $0x50] sm:$0xff]
      %v1322 = vld [vmem:[%s1310 + $0x58] sm:$0xff]
      %v1323 = vld [vmem:[%s1310 + $0x60] sm:$0xff]
      %v1324 = vld [vmem:[%s1310 + $0x68] sm:$0xff]
      %v1325 = vld [vmem:[%s1310 + $0x70] sm:$0xff]
      %v1326 = vld [vmem:[%s1310 + $0x78] sm:$0xff]
      %v1327 = vld [vmem:[%s1310 + $0x80] sm:$0xff]
      %v1328 = vld [vmem:[%s1310 + $0x88] sm:$0xff]
      %v1329 = vld [vmem:[%s1310 + $0x90] sm:$0xff]
      %v1330 = vld [vmem:[%s1310 + $0x98] sm:$0xff]
      %v1331 = vld [vmem:[%s1310 + $0xa0] sm:$0xff]
      %v1332 = vld [vmem:[%s1310 + $0xa8] sm:$0xff]
      %v1333 = vld [vmem:[%s1310 + $0xb0] sm:$0xff]
      %v1334 = vld [vmem:[%s1310 + $0xb8] sm:$0xff]
      %v1335 = vld [vmem:[%s1310 + $0xc0] sm:$0xff]
      %v1336 = vld [vmem:[%s1310 + $0xc8] sm:$0xff]
      %v1337 = vld [vmem:[%s1310 + $0xd0] sm:$0xff]
      %v1338 = vld [vmem:[%s1310 + $0xd8] sm:$0xff]
      %v1339 = vld [vmem:[%s1310 + $0xe0] sm:$0xff]
      %v1340 = vld [vmem:[%s1310 + $0xe8] sm:$0xff]
      %v1341 = vld [vmem:[%s1310 + $0xf0] sm:$0xff]
      %v1342 = vld [vmem:[%s1310 + $0xf8] sm:$0xff]
      %v1343 = vld [vmem:[%s1310 + $0x100] sm:$0xff]
      %v1344 = vld [vmem:[%s1310 + $0x108] sm:$0xff]
      %v1345 = vld [vmem:[%s1310 + $0x110] sm:$0xff]
      %v1346 = vld [vmem:[%s1310 + $0x118] sm:$0xff]
      %v1347 = vld [vmem:[%s1310 + $0x120] sm:$0xff]
      %v1348 = vld [vmem:[%s1310 + $0x128] sm:$0xff]
      %v1349 = vld [vmem:[%s1310 + $0x130] sm:$0xff]
      %v1350 = vld [vmem:[%s1310 + $0x138] sm:$0xff]
      %v1351 = vld [vmem:[%s1310 + $0x140] sm:$0xff]
      %v1352 = vld [vmem:[%s1310 + $0x148] sm:$0xff]
      %v1353 = vld [vmem:[%s1310 + $0x150] sm:$0xff]
      %v1354 = vld [vmem:[%s1310 + $0x158] sm:$0xff]
      %v1355 = vld [vmem:[%s1310 + $0x160] sm:$0xff]
      %v1356 = vld [vmem:[%s1310 + $0x168] sm:$0xff]
      %v1357 = vld [vmem:[%s1310 + $0x170] sm:$0xff]
      %v1358 = vld [vmem:[%s1310 + $0x178] sm:$0xff]
      %v1359 = vld [vmem:[%s1310 + $0x180] sm:$0xff]
      %v1360 = vld [vmem:[%s1310 + $0x188] sm:$0xff]
      %v1361 = vld [vmem:[%s1310 + $0x190] sm:$0xff]
      %v1362 = vld [vmem:[%s1310 + $0x198] sm:$0xff]
      %v1363 = vld [vmem:[%s1310 + $0x1a0] sm:$0xff]
      %v1364 = vld [vmem:[%s1310 + $0x1a8] sm:$0xff]
      %v1365 = vld [vmem:[%s1310 + $0x1b0] sm:$0xff]
      %v1366 = vld [vmem:[%s1310 + $0x1b8] sm:$0xff]
      %v1367 = vld [vmem:[%s1310 + $0x1c0] sm:$0xff]
      %v1368 = vld [vmem:[%s1310 + $0x1c8] sm:$0xff]
      %v1369 = vld [vmem:[%s1310 + $0x1d0] sm:$0xff]
      %v1370 = vld [vmem:[%s1310 + $0x1d8] sm:$0xff]
      %v1371 = vld [vmem:[%s1310 + $0x1e0] sm:$0xff]
      %v1372 = vld [vmem:[%s1310 + $0x1e8] sm:$0xff]
      %v1373 = vld [vmem:[%s1310 + $0x1f0] sm:$0xff]
      %v1374 = vld [vmem:[%s1310 + $0x1f8] sm:$0xff]
      %v1376 = vunpack.c.l.b16 %v1309
      %v1377 = vunpack.c.h.b16 %v1309
      %v1378 = vpack.c.b16 %v481, %v1376
      %v1379 = vpack.c.b16 %v482, %v1377
      %v1380 = vrot.slane %v1378, 1
      %v1381 = vrot.slane %v1379, 1
      %v1448 = vunpack.c.l.b16 %v1311
      %v1449 = vunpack.c.h.b16 %v1311
      %v1450 = vunpack.c.l.b16 %v1312
      %v1451 = vunpack.c.h.b16 %v1312
      %v1452 = vunpack.c.l.b16 %v1313
      %v1453 = vunpack.c.h.b16 %v1313
      %v1454 = vunpack.c.l.b16 %v1314
      %v1455 = vunpack.c.h.b16 %v1314
      %v1456 = vunpack.c.l.b16 %v1315
      %v1457 = vunpack.c.h.b16 %v1315
      %v1458 = vunpack.c.l.b16 %v1316
      %v1459 = vunpack.c.h.b16 %v1316
      %v1460 = vunpack.c.l.b16 %v1317
      %v1461 = vunpack.c.h.b16 %v1317
      %v1462 = vunpack.c.l.b16 %v1318
      %v1463 = vunpack.c.h.b16 %v1318
      %v1464 = vunpack.c.l.b16 %v1319
      %v1465 = vunpack.c.h.b16 %v1319
      %v1466 = vunpack.c.l.b16 %v1320
      %v1467 = vunpack.c.h.b16 %v1320
      %v1468 = vunpack.c.l.b16 %v1321
      %v1469 = vunpack.c.h.b16 %v1321
      %v1470 = vunpack.c.l.b16 %v1322
      %v1471 = vunpack.c.h.b16 %v1322
      %v1472 = vunpack.c.l.b16 %v1323
      %v1473 = vunpack.c.h.b16 %v1323
      %v1474 = vunpack.c.l.b16 %v1324
      %v1475 = vunpack.c.h.b16 %v1324
      %v1476 = vunpack.c.l.b16 %v1325
      %v1477 = vunpack.c.h.b16 %v1325
      %v1478 = vunpack.c.l.b16 %v1326
      %v1479 = vunpack.c.h.b16 %v1326
      %v1480 = vunpack.c.l.b16 %v1327
      %v1481 = vunpack.c.h.b16 %v1327
      %v1482 = vunpack.c.l.b16 %v1328
      %v1483 = vunpack.c.h.b16 %v1328
      %v1484 = vunpack.c.l.b16 %v1329
      %v1485 = vunpack.c.h.b16 %v1329
      %v1486 = vunpack.c.l.b16 %v1330
      %v1487 = vunpack.c.h.b16 %v1330
      %v1488 = vunpack.c.l.b16 %v1331
      %v1489 = vunpack.c.h.b16 %v1331
      %v1490 = vunpack.c.l.b16 %v1332
      %v1491 = vunpack.c.h.b16 %v1332
      %v1492 = vunpack.c.l.b16 %v1333
      %v1493 = vunpack.c.h.b16 %v1333
      %v1494 = vunpack.c.l.b16 %v1334
      %v1495 = vunpack.c.h.b16 %v1334
      %v1496 = vunpack.c.l.b16 %v1335
      %v1497 = vunpack.c.h.b16 %v1335
      %v1498 = vunpack.c.l.b16 %v1336
      %v1499 = vunpack.c.h.b16 %v1336
      %v1500 = vunpack.c.l.b16 %v1337
      %v1501 = vunpack.c.h.b16 %v1337
      %v1502 = vunpack.c.l.b16 %v1338
      %v1503 = vunpack.c.h.b16 %v1338
      %v1504 = vunpack.c.l.b16 %v1339
      %v1505 = vunpack.c.h.b16 %v1339
      %v1506 = vunpack.c.l.b16 %v1340
      %v1507 = vunpack.c.h.b16 %v1340
      %v1508 = vunpack.c.l.b16 %v1341
      %v1509 = vunpack.c.h.b16 %v1341
      %v1510 = vunpack.c.l.b16 %v1342
      %v1511 = vunpack.c.h.b16 %v1342
      %v1512 = vunpack.c.l.b16 %v1343
      %v1513 = vunpack.c.h.b16 %v1343
      %v1514 = vunpack.c.l.b16 %v1344
      %v1515 = vunpack.c.h.b16 %v1344
      %v1516 = vunpack.c.l.b16 %v1345
      %v1517 = vunpack.c.h.b16 %v1345
      %v1518 = vunpack.c.l.b16 %v1346
      %v1519 = vunpack.c.h.b16 %v1346
      %v1520 = vunpack.c.l.b16 %v1347
      %v1521 = vunpack.c.h.b16 %v1347
      %v1522 = vunpack.c.l.b16 %v1348
      %v1523 = vunpack.c.h.b16 %v1348
      %v1524 = vunpack.c.l.b16 %v1349
      %v1525 = vunpack.c.h.b16 %v1349
      %v1526 = vunpack.c.l.b16 %v1350
      %v1527 = vunpack.c.h.b16 %v1350
      %v1528 = vunpack.c.l.b16 %v1351
      %v1529 = vunpack.c.h.b16 %v1351
      %v1530 = vunpack.c.l.b16 %v1352
      %v1531 = vunpack.c.h.b16 %v1352
      %v1532 = vunpack.c.l.b16 %v1353
      %v1533 = vunpack.c.h.b16 %v1353
      %v1534 = vunpack.c.l.b16 %v1354
      %v1535 = vunpack.c.h.b16 %v1354
      %v1536 = vunpack.c.l.b16 %v1355
      %v1537 = vunpack.c.h.b16 %v1355
      %v1538 = vunpack.c.l.b16 %v1356
      %v1539 = vunpack.c.h.b16 %v1356
      %v1540 = vunpack.c.l.b16 %v1357
      %v1541 = vunpack.c.h.b16 %v1357
      %v1542 = vunpack.c.l.b16 %v1358
      %v1543 = vunpack.c.h.b16 %v1358
      %v1544 = vunpack.c.l.b16 %v1359
      %v1545 = vunpack.c.h.b16 %v1359
      %v1546 = vunpack.c.l.b16 %v1360
      %v1547 = vunpack.c.h.b16 %v1360
      %v1548 = vunpack.c.l.b16 %v1361
      %v1549 = vunpack.c.h.b16 %v1361
      %v1550 = vunpack.c.l.b16 %v1362
      %v1551 = vunpack.c.h.b16 %v1362
      %v1552 = vunpack.c.l.b16 %v1363
      %v1553 = vunpack.c.h.b16 %v1363
      %v1554 = vunpack.c.l.b16 %v1364
      %v1555 = vunpack.c.h.b16 %v1364
      %v1556 = vunpack.c.l.b16 %v1365
      %v1557 = vunpack.c.h.b16 %v1365
      %v1558 = vunpack.c.l.b16 %v1366
      %v1559 = vunpack.c.h.b16 %v1366
      %v1560 = vunpack.c.l.b16 %v1367
      %v1561 = vunpack.c.h.b16 %v1367
      %v1562 = vunpack.c.l.b16 %v1368
      %v1563 = vunpack.c.h.b16 %v1368
      %v1564 = vunpack.c.l.b16 %v1369
      %v1565 = vunpack.c.h.b16 %v1369
      %v1566 = vunpack.c.l.b16 %v1370
      %v1567 = vunpack.c.h.b16 %v1370
      %v1568 = vunpack.c.l.b16 %v1371
      %v1569 = vunpack.c.h.b16 %v1371
      %v1570 = vunpack.c.l.b16 %v1372
      %v1571 = vunpack.c.h.b16 %v1372
      %v1572 = vunpack.c.l.b16 %v1373
      %v1573 = vunpack.c.h.b16 %v1373
      %v1574 = vunpack.c.l.b16 %v1374
      %v1575 = vunpack.c.h.b16 %v1374
      %v1576 = vpack.c.b16 %v1452, %v1448
      %v1577 = vpack.c.b16 %v1453, %v1449
      %v1578 = vpack.c.b16 %v1454, %v1450
      %v1579 = vpack.c.b16 %v1455, %v1451
      %v1580 = vpack.c.b16 %v1460, %v1456
      %v1581 = vpack.c.b16 %v1461, %v1457
      %v1582 = vpack.c.b16 %v1462, %v1458
      %v1583 = vpack.c.b16 %v1463, %v1459
      %v1584 = vpack.c.b16 %v1468, %v1464
      %v1585 = vpack.c.b16 %v1469, %v1465
      %v1586 = vpack.c.b16 %v1470, %v1466
      %v1587 = vpack.c.b16 %v1471, %v1467
      %v1588 = vpack.c.b16 %v1476, %v1472
      %v1589 = vpack.c.b16 %v1477, %v1473
      %v1590 = vpack.c.b16 %v1478, %v1474
      %v1591 = vpack.c.b16 %v1479, %v1475
      %v1592 = vpack.c.b16 %v1484, %v1480
      %v1593 = vpack.c.b16 %v1485, %v1481
      %v1594 = vpack.c.b16 %v1486, %v1482
      %v1595 = vpack.c.b16 %v1487, %v1483
      %v1596 = vpack.c.b16 %v1492, %v1488
      %v1597 = vpack.c.b16 %v1493, %v1489
      %v1598 = vpack.c.b16 %v1494, %v1490
      %v1599 = vpack.c.b16 %v1495, %v1491
      %v1600 = vpack.c.b16 %v1500, %v1496
      %v1601 = vpack.c.b16 %v1501, %v1497
      %v1602 = vpack.c.b16 %v1502, %v1498
      %v1603 = vpack.c.b16 %v1503, %v1499
      %v1604 = vpack.c.b16 %v1508, %v1504
      %v1605 = vpack.c.b16 %v1509, %v1505
      %v1606 = vpack.c.b16 %v1510, %v1506
      %v1607 = vpack.c.b16 %v1511, %v1507
      %v1608 = vpack.c.b16 %v1516, %v1512
      %v1609 = vpack.c.b16 %v1517, %v1513
      %v1610 = vpack.c.b16 %v1518, %v1514
      %v1611 = vpack.c.b16 %v1519, %v1515
      %v1612 = vpack.c.b16 %v1524, %v1520
      %v1613 = vpack.c.b16 %v1525, %v1521
      %v1614 = vpack.c.b16 %v1526, %v1522
      %v1615 = vpack.c.b16 %v1527, %v1523
      %v1616 = vpack.c.b16 %v1532, %v1528
      %v1617 = vpack.c.b16 %v1533, %v1529
      %v1618 = vpack.c.b16 %v1534, %v1530
      %v1619 = vpack.c.b16 %v1535, %v1531
      %v1620 = vpack.c.b16 %v1540, %v1536
      %v1621 = vpack.c.b16 %v1541, %v1537
      %v1622 = vpack.c.b16 %v1542, %v1538
      %v1623 = vpack.c.b16 %v1543, %v1539
      %v1624 = vpack.c.b16 %v1548, %v1544
      %v1625 = vpack.c.b16 %v1549, %v1545
      %v1626 = vpack.c.b16 %v1550, %v1546
      %v1627 = vpack.c.b16 %v1551, %v1547
      %v1628 = vpack.c.b16 %v1556, %v1552
      %v1629 = vpack.c.b16 %v1557, %v1553
      %v1630 = vpack.c.b16 %v1558, %v1554
      %v1631 = vpack.c.b16 %v1559, %v1555
      %v1632 = vpack.c.b16 %v1564, %v1560
      %v1633 = vpack.c.b16 %v1565, %v1561
      %v1634 = vpack.c.b16 %v1566, %v1562
      %v1635 = vpack.c.b16 %v1567, %v1563
      %v1636 = vpack.c.b16 %v1572, %v1568
      %v1637 = vpack.c.b16 %v1573, %v1569
      %v1638 = vpack.c.b16 %v1574, %v1570
      %v1639 = vpack.c.b16 %v1575, %v1571
      %1704 = vmatprep.subr.bf16.mxu0 %v1577
      %1705 = vmatpush1.bf16.msra.mxu0 %v1576
      %1706 = vmatprep.subr.bf16.mxu0 %v1581
      %1707 = vmatpush1.bf16.msra.mxu0 %v1580
      %1708 = vmatprep.subr.bf16.mxu0 %v1585
      %1709 = vmatpush1.bf16.msra.mxu0 %v1584
      %1710 = vmatprep.subr.bf16.mxu0 %v1589
      %1711 = vmatpush1.bf16.msra.mxu0 %v1588
      %1712 = vmatprep.subr.bf16.mxu0 %v1593
      %1713 = vmatpush1.bf16.msra.mxu0 %v1592
      %1714 = vmatprep.subr.bf16.mxu0 %v1597
      %1715 = vmatpush1.bf16.msra.mxu0 %v1596
      %1716 = vmatprep.subr.bf16.mxu0 %v1601
      %1717 = vmatpush1.bf16.msra.mxu0 %v1600
      %1718 = vmatprep.subr.bf16.mxu0 %v1605
      %1719 = vmatpush1.bf16.msra.mxu0 %v1604
      %1720 = vmatprep.subr.bf16.mxu0 %v1609
      %1721 = vmatpush1.bf16.msra.mxu0 %v1608
      %1722 = vmatprep.subr.bf16.mxu0 %v1613
      %1723 = vmatpush1.bf16.msra.mxu0 %v1612
      %1724 = vmatprep.subr.bf16.mxu0 %v1617
      %1725 = vmatpush1.bf16.msra.mxu0 %v1616
      %1726 = vmatprep.subr.bf16.mxu0 %v1621
      %1727 = vmatpush1.bf16.msra.mxu0 %v1620
      %1728 = vmatprep.subr.bf16.mxu0 %v1625
      %1729 = vmatpush1.bf16.msra.mxu0 %v1624
      %1730 = vmatprep.subr.bf16.mxu0 %v1629
      %1731 = vmatpush1.bf16.msra.mxu0 %v1628
      %1732 = vmatprep.subr.bf16.mxu0 %v1633
      %1733 = vmatpush1.bf16.msra.mxu0 %v1632
      %1734 = vmatprep.subr.bf16.mxu0 %v1637
      %1735 = vmatpush1.bf16.msra.mxu0 %v1636
      %1736 = vmatprep.mubr.bf16.mxu0 %v1381
      %1737 = vmatmul.mubr.bf16.gmra.mrb[0].mxu0 %v1380
      %v1738 = vpop.f32.mrb[0].mxu0
      %v1739 = vadd.f32 0.0, %v1738
      %v1740 = vpop.f32.mrb[0].mxu0
      %v1741 = vadd.f32 0.0, %v1740
      %v1742 = vpop.f32.mrb[0].mxu0
      %v1743 = vpop.f32.mrb[0].mxu0
      %1744 = vdwg.mxu0
      %1745 = vmatprep.subr.bf16.mxu0 %v1579
      %1746 = vmatpush1.bf16.msra.mxu0 %v1578
      %1747 = vmatprep.subr.bf16.mxu0 %v1583
      %1748 = vmatpush1.bf16.msra.mxu0 %v1582
      %1749 = vmatprep.subr.bf16.mxu0 %v1587
      %1750 = vmatpush1.bf16.msra.mxu0 %v1586
      %1751 = vmatprep.subr.bf16.mxu0 %v1591
      %1752 = vmatpush1.bf16.msra.mxu0 %v1590
      %1753 = vmatprep.subr.bf16.mxu0 %v1595
      %1754 = vmatpush1.bf16.msra.mxu0 %v1594
      %1755 = vmatprep.subr.bf16.mxu0 %v1599
      %1756 = vmatpush1.bf16.msra.mxu0 %v1598
      %1757 = vmatprep.subr.bf16.mxu0 %v1603
      %1758 = vmatpush1.bf16.msra.mxu0 %v1602
      %1759 = vmatprep.subr.bf16.mxu0 %v1607
      %1760 = vmatpush1.bf16.msra.mxu0 %v1606
      %1761 = vmatprep.subr.bf16.mxu0 %v1611
      %1762 = vmatpush1.bf16.msra.mxu0 %v1610
      %1763 = vmatprep.subr.bf16.mxu0 %v1615
      %1764 = vmatpush1.bf16.msra.mxu0 %v1614
      %1765 = vmatprep.subr.bf16.mxu0 %v1619
      %1766 = vmatpush1.bf16.msra.mxu0 %v1618
      %1767 = vmatprep.subr.bf16.mxu0 %v1623
      %1768 = vmatpush1.bf16.msra.mxu0 %v1622
      %1769 = vmatprep.subr.bf16.mxu0 %v1627
      %1770 = vmatpush1.bf16.msra.mxu0 %v1626
      %1771 = vmatprep.subr.bf16.mxu0 %v1631
      %1772 = vmatpush1.bf16.msra.mxu0 %v1630
      %1773 = vmatprep.subr.bf16.mxu0 %v1635
      %1774 = vmatpush1.bf16.msra.mxu0 %v1634
      %1775 = vmatprep.subr.bf16.mxu0 %v1639
      %1776 = vmatpush1.bf16.msra.mxu0 %v1638
      %1777 = vmatprep.mubr.bf16.mxu0 %v1381
      %1778 = vmatmul.mubr.bf16.gmra.mrb[0].mxu0 %v1380
      %v1779 = vpop.f32.mrb[0].mxu0
      %v1780 = vadd.f32 0.0, %v1779
      %v1781 = vpop.f32.mrb[0].mxu0
      %v1782 = vadd.f32 0.0, %v1781
      %v1783 = vpop.f32.mrb[0].mxu0
      %v1784 = vpop.f32.mrb[0].mxu0
      %1785 = vdwg.mxu0
      %v1786 = vadd.f32 %v1262, %v1739
      %v1787 = vadd.f32 %v1264, %v1741
      %v1788 = vadd.f32 %v1303, %v1780
      %v1789 = vadd.f32 %v1305, %v1782
      %v1790 = vrot.slane %v1786, 4
      %v1791 = vadd.f32 %v1786, %v1790
      %v1792 = vrot.slane %v1791, 2
      %v1793 = vadd.f32 %v1791, %v1792
      %v1794 = vrot.slane %v1793, 1
      %v1795 = vadd.f32 %v1793, %v1794
      %v1796 = vrot.slane %v1787, 4
      %v1797 = vadd.f32 %v1787, %v1796
      %v1798 = vrot.slane %v1797, 2
      %v1799 = vadd.f32 %v1797, %v1798
      %v1800 = vrot.slane %v1799, 1
      %v1801 = vadd.f32 %v1799, %v1800
      %v1802 = vrot.slane %v1788, 4
      %v1803 = vadd.f32 %v1788, %v1802
      %v1804 = vrot.slane %v1803, 2
      %v1805 = vadd.f32 %v1803, %v1804
      %v1806 = vrot.slane %v1805, 1
      %v1807 = vadd.f32 %v1805, %v1806
      %v1808 = vrot.slane %v1789, 4
      %v1809 = vadd.f32 %v1789, %v1808
      %v1810 = vrot.slane %v1809, 2
      %v1811 = vadd.f32 %v1809, %v1810
      %v1812 = vrot.slane %v1811, 1
      %v1813 = vadd.f32 %v1811, %v1812
      %v1814 = vmul.f32 %v1786, %v1786
      %v1815 = vmul.f32 %v1787, %v1787
      %v1816 = vmul.f32 %v1788, %v1788
      %v1817 = vmul.f32 %v1789, %v1789
      %v1818 = vrot.slane %v1814, 4
      %v1819 = vadd.f32 %v1814, %v1818
      %v1820 = vrot.slane %v1819, 2
      %v1821 = vadd.f32 %v1819, %v1820
      %v1822 = vrot.slane %v1821, 1
      %v1823 = vadd.f32 %v1821, %v1822
      %v1824 = vrot.slane %v1815, 4
      %v1825 = vadd.f32 %v1815, %v1824
      %v1826 = vrot.slane %v1825, 2
      %v1827 = vadd.f32 %v1825, %v1826
      %v1828 = vrot.slane %v1827, 1
      %v1829 = vadd.f32 %v1827, %v1828
      %v1830 = vrot.slane %v1816, 4
      %v1831 = vadd.f32 %v1816, %v1830
      %v1832 = vrot.slane %v1831, 2
      %v1833 = vadd.f32 %v1831, %v1832
      %v1834 = vrot.slane %v1833, 1
      %v1835 = vadd.f32 %v1833, %v1834
      %v1836 = vrot.slane %v1817, 4
      %v1837 = vadd.f32 %v1817, %v1836
      %v1838 = vrot.slane %v1837, 2
      %v1839 = vadd.f32 %v1837, %v1838
      %v1840 = vrot.slane %v1839, 1
      %v1841 = vadd.f32 %v1839, %v1840
      %1842 = vmatprep.subr.mxu0 0.0
      %1843 = vmatpush1.msra.mxu0 %v226
      %1844 = vmatprep.subr.mxu0 0.0
      %1845 = vmatpush1.msra.mxu0 %v227
      %1846 = vmatprep.subr.mxu0 0.0
      %1847 = vmatpush1.msra.mxu0 %v228
      %1848 = vmatprep.subr.mxu0 0.0
      %1849 = vmatpush1.msra.mxu0 %v229
      %1850 = vmatprep.subr.mxu0 0.0
      %1851 = vmatpush1.msra.mxu0 %v230
      %1852 = vmatprep.subr.mxu0 0.0
      %1853 = vmatpush1.msra.mxu0 %v231
      %1854 = vmatprep.subr.mxu0 0.0
      %1855 = vmatpush1.msra.mxu0 %v232
      %1856 = vmatprep.subr.mxu0 0.0
      %1857 = vmatpush1.msra.mxu0 %v233
      %1858 = vmatprep.subr.mxu0 0.0
      %1859 = vmatpush1.msra.mxu0 %v234
      %1860 = vmatprep.subr.mxu0 0.0
      %1861 = vmatpush1.msra.mxu0 %v235
      %1862 = vmatprep.subr.mxu0 0.0
      %1863 = vmatpush1.msra.mxu0 %v236
      %1864 = vmatprep.subr.mxu0 0.0
      %1865 = vmatpush1.msra.mxu0 %v237
      %1866 = vmatprep.subr.mxu0 0.0
      %1867 = vmatpush1.msra.mxu0 %v238
      %1868 = vmatprep.subr.mxu0 0.0
      %1869 = vmatpush1.msra.mxu0 %v239
      %1870 = vmatprep.subr.mxu0 0.0
      %1871 = vmatpush1.msra.mxu0 %v240
      %1872 = vmatprep.subr.mxu0 0.0
      %1873 = vmatpush1.msra.mxu0 %v241
      %1874 = vmatprep.subr.mxu0 0.0
      %1875 = vmatpush1.msra.mxu0 %v242
      %1876 = vmatprep.subr.mxu0 0.0
      %1877 = vmatpush1.msra.mxu0 %v243
      %1878 = vmatprep.subr.mxu0 0.0
      %1879 = vmatpush1.msra.mxu0 %v244
      %1880 = vmatprep.subr.mxu0 0.0
      %1881 = vmatpush1.msra.mxu0 %v245
      %1882 = vmatprep.subr.mxu0 0.0
      %1883 = vmatpush1.msra.mxu0 %v246
      %1884 = vmatprep.subr.mxu0 0.0
      %1885 = vmatpush1.msra.mxu0 %v247
      %1886 = vmatprep.subr.mxu0 0.0
      %1887 = vmatpush1.msra.mxu0 %v248
      %1888 = vmatprep.subr.mxu0 0.0
      %1889 = vmatpush1.msra.mxu0 %v249
      %1890 = vmatprep.subr.mxu0 0.0
      %1891 = vmatpush1.msra.mxu0 %v250
      %1892 = vmatprep.subr.mxu0 0.0
      %1893 = vmatpush1.msra.mxu0 %v251
      %1894 = vmatprep.subr.mxu0 0.0
      %1895 = vmatpush1.msra.mxu0 %v252
      %1896 = vmatprep.subr.mxu0 0.0
      %1897 = vmatpush1.msra.mxu0 %v253
      %1898 = vmatprep.subr.mxu0 0.0
      %1899 = vmatpush1.msra.mxu0 %v254
      %1900 = vmatprep.subr.mxu0 0.0
      %1901 = vmatpush1.msra.mxu0 %v255
      %1902 = vmatprep.subr.mxu0 0.0
      %1903 = vmatpush1.msra.mxu0 %v256
      %1904 = vmatprep.subr.mxu0 0.0
      %1905 = vmatpush1.msra.mxu0 %v257
      %1906 = vmatprep.mubr.f32.mxu0 %v1801
      %1907 = vmatmul.mubr.f32.gmra.mrb[0].mxu0 %v1795
      %v1908 = vpop.f32.mrb[0].mxu0
      %v1909 = vadd.f32 0.0, %v1908
      %v1910 = vpop.f32.mrb[0].mxu0
      %1911 = vdwg.mxu0
      %1912 = vmatprep.subr.mxu0 0.0
      %1913 = vmatpush1.msra.mxu0 %v258
      %1914 = vmatprep.subr.mxu0 0.0
      %1915 = vmatpush1.msra.mxu0 %v259
      %1916 = vmatprep.subr.mxu0 0.0
      %1917 = vmatpush1.msra.mxu0 %v260
      %1918 = vmatprep.subr.mxu0 0.0
      %1919 = vmatpush1.msra.mxu0 %v261
      %1920 = vmatprep.subr.mxu0 0.0
      %1921 = vmatpush1.msra.mxu0 %v262
      %1922 = vmatprep.subr.mxu0 0.0
      %1923 = vmatpush1.msra.mxu0 %v263
      %1924 = vmatprep.subr.mxu0 0.0
      %1925 = vmatpush1.msra.mxu0 %v264
      %1926 = vmatprep.subr.mxu0 0.0
      %1927 = vmatpush1.msra.mxu0 %v265
      %1928 = vmatprep.subr.mxu0 0.0
      %1929 = vmatpush1.msra.mxu0 %v266
      %1930 = vmatprep.subr.mxu0 0.0
      %1931 = vmatpush1.msra.mxu0 %v267
      %1932 = vmatprep.subr.mxu0 0.0
      %1933 = vmatpush1.msra.mxu0 %v268
      %1934 = vmatprep.subr.mxu0 0.0
      %1935 = vmatpush1.msra.mxu0 %v269
      %1936 = vmatprep.subr.mxu0 0.0
      %1937 = vmatpush1.msra.mxu0 %v270
      %1938 = vmatprep.subr.mxu0 0.0
      %1939 = vmatpush1.msra.mxu0 %v271
      %1940 = vmatprep.subr.mxu0 0.0
      %1941 = vmatpush1.msra.mxu0 %v272
      %1942 = vmatprep.subr.mxu0 0.0
      %1943 = vmatpush1.msra.mxu0 %v273
      %1944 = vmatprep.subr.mxu0 0.0
      %1945 = vmatpush1.msra.mxu0 %v274
      %1946 = vmatprep.subr.mxu0 0.0
      %1947 = vmatpush1.msra.mxu0 %v275
      %1948 = vmatprep.subr.mxu0 0.0
      %1949 = vmatpush1.msra.mxu0 %v276
      %1950 = vmatprep.subr.mxu0 0.0
      %1951 = vmatpush1.msra.mxu0 %v277
      %1952 = vmatprep.subr.mxu0 0.0
      %1953 = vmatpush1.msra.mxu0 %v278
      %1954 = vmatprep.subr.mxu0 0.0
      %1955 = vmatpush1.msra.mxu0 %v279
      %1956 = vmatprep.subr.mxu0 0.0
      %1957 = vmatpush1.msra.mxu0 %v280
      %1958 = vmatprep.subr.mxu0 0.0
      %1959 = vmatpush1.msra.mxu0 %v281
      %1960 = vmatprep.subr.mxu0 0.0
      %1961 = vmatpush1.msra.mxu0 %v282
      %1962 = vmatprep.subr.mxu0 0.0
      %1963 = vmatpush1.msra.mxu0 %v283
      %1964 = vmatprep.subr.mxu0 0.0
      %1965 = vmatpush1.msra.mxu0 %v284
      %1966 = vmatprep.subr.mxu0 0.0
      %1967 = vmatpush1.msra.mxu0 %v285
      %1968 = vmatprep.subr.mxu0 0.0
      %1969 = vmatpush1.msra.mxu0 %v286
      %1970 = vmatprep.subr.mxu0 0.0
      %1971 = vmatpush1.msra.mxu0 %v287
      %1972 = vmatprep.subr.mxu0 0.0
      %1973 = vmatpush1.msra.mxu0 %v288
      %1974 = vmatprep.subr.mxu0 0.0
      %1975 = vmatpush1.msra.mxu0 %v289
      %1976 = vmatprep.mubr.f32.mxu0 %v1813
      %1977 = vmatmul.mubr.f32.gmra.mrb[0].mxu0 %v1807
      %v1978 = vpop.f32.mrb[0].mxu0
      %v1979 = vadd.f32 %v1909, %v1978
      %v1980 = vpop.f32.mrb[0].mxu0
      %1981 = vdwg.mxu0
      %v1982 = vmul.f32 %v1979, 0.001953125
      %1983 = vmatprep.subr.mxu0 0.0
      %1984 = vmatpush1.msra.mxu0 %v226
      %1985 = vmatprep.subr.mxu0 0.0
      %1986 = vmatpush1.msra.mxu0 %v227
      %1987 = vmatprep.subr.mxu0 0.0
      %1988 = vmatpush1.msra.mxu0 %v228
      %1989 = vmatprep.subr.mxu0 0.0
      %1990 = vmatpush1.msra.mxu0 %v229
      %1991 = vmatprep.subr.mxu0 0.0
      %1992 = vmatpush1.msra.mxu0 %v230
      %1993 = vmatprep.subr.mxu0 0.0
      %1994 = vmatpush1.msra.mxu0 %v231
      %1995 = vmatprep.subr.mxu0 0.0
      %1996 = vmatpush1.msra.mxu0 %v232
      %1997 = vmatprep.subr.mxu0 0.0
      %1998 = vmatpush1.msra.mxu0 %v233
      %1999 = vmatprep.subr.mxu0 0.0
      %2000 = vmatpush1.msra.mxu0 %v234
      %2001 = vmatprep.subr.mxu0 0.0
      %2002 = vmatpush1.msra.mxu0 %v235
      %2003 = vmatprep.subr.mxu0 0.0
      %2004 = vmatpush1.msra.mxu0 %v236
      %2005 = vmatprep.subr.mxu0 0.0
      %2006 = vmatpush1.msra.mxu0 %v237
      %2007 = vmatprep.subr.mxu0 0.0
      %2008 = vmatpush1.msra.mxu0 %v238
      %2009 = vmatprep.subr.mxu0 0.0
      %2010 = vmatpush1.msra.mxu0 %v239
      %2011 = vmatprep.subr.mxu0 0.0
      %2012 = vmatpush1.msra.mxu0 %v240
      %2013 = vmatprep.subr.mxu0 0.0
      %2014 = vmatpush1.msra.mxu0 %v241
      %2015 = vmatprep.subr.mxu0 0.0
      %2016 = vmatpush1.msra.mxu0 %v242
      %2017 = vmatprep.subr.mxu0 0.0
      %2018 = vmatpush1.msra.mxu0 %v243
      %2019 = vmatprep.subr.mxu0 0.0
      %2020 = vmatpush1.msra.mxu0 %v244
      %2021 = vmatprep.subr.mxu0 0.0
      %2022 = vmatpush1.msra.mxu0 %v245
      %2023 = vmatprep.subr.mxu0 0.0
      %2024 = vmatpush1.msra.mxu0 %v246
      %2025 = vmatprep.subr.mxu0 0.0
      %2026 = vmatpush1.msra.mxu0 %v247
      %2027 = vmatprep.subr.mxu0 0.0
      %2028 = vmatpush1.msra.mxu0 %v248
      %2029 = vmatprep.subr.mxu0 0.0
      %2030 = vmatpush1.msra.mxu0 %v249
      %2031 = vmatprep.subr.mxu0 0.0
      %2032 = vmatpush1.msra.mxu0 %v250
      %2033 = vmatprep.subr.mxu0 0.0
      %2034 = vmatpush1.msra.mxu0 %v251
      %2035 = vmatprep.subr.mxu0 0.0
      %2036 = vmatpush1.msra.mxu0 %v252
      %2037 = vmatprep.subr.mxu0 0.0
      %2038 = vmatpush1.msra.mxu0 %v253
      %2039 = vmatprep.subr.mxu0 0.0
      %2040 = vmatpush1.msra.mxu0 %v254
      %2041 = vmatprep.subr.mxu0 0.0
      %2042 = vmatpush1.msra.mxu0 %v255
      %2043 = vmatprep.subr.mxu0 0.0
      %2044 = vmatpush1.msra.mxu0 %v256
      %2045 = vmatprep.subr.mxu0 0.0
      %2046 = vmatpush1.msra.mxu0 %v257
      %2047 = vmatprep.mubr.f32.mxu0 %v1829
      %2048 = vmatmul.mubr.f32.gmra.mrb[0].mxu0 %v1823
      %v2049 = vpop.f32.mrb[0].mxu0
      %v2050 = vadd.f32 0.0, %v2049
      %v2051 = vpop.f32.mrb[0].mxu0
      %2052 = vdwg.mxu0
      %2053 = vmatprep.subr.mxu0 0.0
      %2054 = vmatpush1.msra.mxu0 %v258
      %2055 = vmatprep.subr.mxu0 0.0
      %2056 = vmatpush1.msra.mxu0 %v259
      %2057 = vmatprep.subr.mxu0 0.0
      %2058 = vmatpush1.msra.mxu0 %v260
      %2059 = vmatprep.subr.mxu0 0.0
      %2060 = vmatpush1.msra.mxu0 %v261
      %2061 = vmatprep.subr.mxu0 0.0
      %2062 = vmatpush1.msra.mxu0 %v262
      %2063 = vmatprep.subr.mxu0 0.0
      %2064 = vmatpush1.msra.mxu0 %v263
      %2065 = vmatprep.subr.mxu0 0.0
      %2066 = vmatpush1.msra.mxu0 %v264
      %2067 = vmatprep.subr.mxu0 0.0
      %2068 = vmatpush1.msra.mxu0 %v265
      %2069 = vmatprep.subr.mxu0 0.0
      %2070 = vmatpush1.msra.mxu0 %v266
      %2071 = vmatprep.subr.mxu0 0.0
      %2072 = vmatpush1.msra.mxu0 %v267
      %2073 = vmatprep.subr.mxu0 0.0
      %2074 = vmatpush1.msra.mxu0 %v268
      %2075 = vmatprep.subr.mxu0 0.0
      %2076 = vmatpush1.msra.mxu0 %v269
      %2077 = vmatprep.subr.mxu0 0.0
      %2078 = vmatpush1.msra.mxu0 %v270
      %2079 = vmatprep.subr.mxu0 0.0
      %2080 = vmatpush1.msra.mxu0 %v271
      %2081 = vmatprep.subr.mxu0 0.0
      %2082 = vmatpush1.msra.mxu0 %v272
      %2083 = vmatprep.subr.mxu0 0.0
      %2084 = vmatpush1.msra.mxu0 %v273
      %2085 = vmatprep.subr.mxu0 0.0
      %2086 = vmatpush1.msra.mxu0 %v274
      %2087 = vmatprep.subr.mxu0 0.0
      %2088 = vmatpush1.msra.mxu0 %v275
      %2089 = vmatprep.subr.mxu0 0.0
      %2090 = vmatpush1.msra.mxu0 %v276
      %2091 = vmatprep.subr.mxu0 0.0
      %2092 = vmatpush1.msra.mxu0 %v277
      %2093 = vmatprep.subr.mxu0 0.0
      %2094 = vmatpush1.msra.mxu0 %v278
      %2095 = vmatprep.subr.mxu0 0.0
      %2096 = vmatpush1.msra.mxu0 %v279
      %2097 = vmatprep.subr.mxu0 0.0
      %2098 = vmatpush1.msra.mxu0 %v280
      %2099 = vmatprep.subr.mxu0 0.0
      %2100 = vmatpush1.msra.mxu0 %v281
      %2101 = vmatprep.subr.mxu0 0.0
      %2102 = vmatpush1.msra.mxu0 %v282
      %2103 = vmatprep.subr.mxu0 0.0
      %2104 = vmatpush1.msra.mxu0 %v283
      %2105 = vmatprep.subr.mxu0 0.0
      %2106 = vmatpush1.msra.mxu0 %v284
      %2107 = vmatprep.subr.mxu0 0.0
      %2108 = vmatpush1.msra.mxu0 %v285
      %2109 = vmatprep.subr.mxu0 0.0
      %2110 = vmatpush1.msra.mxu0 %v286
      %2111 = vmatprep.subr.mxu0 0.0
      %2112 = vmatpush1.msra.mxu0 %v287
      %2113 = vmatprep.subr.mxu0 0.0
      %2114 = vmatpush1.msra.mxu0 %v288
      %2115 = vmatprep.subr.mxu0 0.0
      %2116 = vmatpush1.msra.mxu0 %v289
      %2117 = vmatprep.mubr.f32.mxu0 %v1841
      %2118 = vmatmul.mubr.f32.gmra.mrb[0].mxu0 %v1835
      %v2119 = vpop.f32.mrb[0].mxu0
      %v2120 = vadd.f32 %v2050, %v2119
      %v2121 = vpop.f32.mrb[0].mxu0
      %2122 = vdwg.mxu0
      %v2123 = vmul.f32 %v2120, 0.001953125
      %v2124 = vmul.f32 %v1982, %v1982
      %v2125 = vsub.f32 %v2123, %v2124
      %v2126 = vadd.f32 %v2125, 1e-05
      %v2127 = vrsqrt.pop %v2126
      %v2128 = vmul.f32 %v1982, %v2127
      %vm2129 = vcmask 64512
      %v2131 = vsel %vm2129, %v2127, 0
      %2133 = vmatprep.subr.mxu0 %v291
      %2134 = vmatpush1.msra.mxu0 %v290
      %2135 = vmatprep.subr.mxu0 0.0
      %2136 = vmatpush1.msra.mxu0 0.0
      %2137 = vmatprep.subr.mxu0 0.0
      %2138 = vmatpush1.msra.mxu0 0.0
      %2139 = vmatprep.subr.mxu0 0.0
      %2140 = vmatpush1.msra.mxu0 0.0
      %2141 = vmatprep.subr.mxu0 0.0
      %2142 = vmatpush1.msra.mxu0 0.0
      %2143 = vmatprep.subr.mxu0 0.0
      %2144 = vmatpush1.msra.mxu0 0.0
      %2145 = vmatprep.subr.mxu0 0.0
      %2146 = vmatpush1.msra.mxu0 0.0
      %2147 = vmatprep.subr.mxu0 0.0
      %2148 = vmatpush1.msra.mxu0 0.0
      %2149 = vmatprep.subr.mxu0 0.0
      %2150 = vmatpush1.msra.mxu0 0.0
      %2151 = vmatprep.subr.mxu0 0.0
      %2152 = vmatpush1.msra.mxu0 0.0
      %2153 = vmatprep.subr.mxu0 0.0
      %2154 = vmatpush1.msra.mxu0 0.0
      %2155 = vmatprep.subr.mxu0 0.0
      %2156 = vmatpush1.msra.mxu0 0.0
      %2157 = vmatprep.subr.mxu0 0.0
      %2158 = vmatpush1.msra.mxu0 0.0
      %2159 = vmatprep.subr.mxu0 0.0
      %2160 = vmatpush1.msra.mxu0 0.0
      %2161 = vmatprep.subr.mxu0 0.0
      %2162 = vmatpush1.msra.mxu0 0.0
      %2163 = vmatprep.subr.mxu0 0.0
      %2164 = vmatpush1.msra.mxu0 0.0
      %2165 = vmatprep.subr.mxu0 0.0
      %2166 = vmatpush1.msra.mxu0 0.0
      %2167 = vmatprep.subr.mxu0 0.0
      %2168 = vmatpush1.msra.mxu0 0.0
      %2169 = vmatprep.subr.mxu0 0.0
      %2170 = vmatpush1.msra.mxu0 0.0
      %2171 = vmatprep.subr.mxu0 0.0
      %2172 = vmatpush1.msra.mxu0 0.0
      %2173 = vmatprep.subr.mxu0 0.0
      %2174 = vmatpush1.msra.mxu0 0.0
      %2175 = vmatprep.subr.mxu0 0.0
      %2176 = vmatpush1.msra.mxu0 0.0
      %2177 = vmatprep.subr.mxu0 0.0
      %2178 = vmatpush1.msra.mxu0 0.0
      %2179 = vmatprep.subr.mxu0 0.0
      %2180 = vmatpush1.msra.mxu0 0.0
      %2181 = vmatprep.subr.mxu0 0.0
      %2182 = vmatpush1.msra.mxu0 0.0
      %2183 = vmatprep.subr.mxu0 0.0
      %2184 = vmatpush1.msra.mxu0 0.0
      %2185 = vmatprep.subr.mxu0 0.0
      %2186 = vmatpush1.msra.mxu0 0.0
      %2187 = vmatprep.subr.mxu0 0.0
      %2188 = vmatpush1.msra.mxu0 0.0
      %2189 = vmatprep.subr.mxu0 0.0
      %2190 = vmatpush1.msra.mxu0 0.0
      %2191 = vmatprep.subr.mxu0 0.0
      %2192 = vmatpush1.msra.mxu0 0.0
      %2193 = vmatprep.subr.mxu0 0.0
      %2194 = vmatpush1.msra.mxu0 0.0
      %2195 = vmatprep.subr.mxu0 0.0
      %2196 = vmatpush1.msra.mxu0 0.0
      %2197 = vmatprep.mubr.f32.mxu0 0.0
      %2198 = vmatmul.mubr.f32.gmra.mrb[0].mxu0 %v2131
      %v2199 = vpop.f32.mrb[0].mxu0
      %v2200 = vadd.f32 0.0, %v2199
      %v2201 = vpop.f32.mrb[0].mxu0
      %v2202 = vadd.f32 0.0, %v2201
      %2203 = vdwg.mxu0
      %2204 = vmatprep.subr.mxu0 %v293
      %2205 = vmatpush1.msra.mxu0 %v292
      %2206 = vmatprep.subr.mxu0 0.0
      %2207 = vmatpush1.msra.mxu0 0.0
      %2208 = vmatprep.subr.mxu0 0.0
      %2209 = vmatpush1.msra.mxu0 0.0
      %2210 = vmatprep.subr.mxu0 0.0
      %2211 = vmatpush1.msra.mxu0 0.0
      %2212 = vmatprep.subr.mxu0 0.0
      %2213 = vmatpush1.msra.mxu0 0.0
      %2214 = vmatprep.subr.mxu0 0.0
      %2215 = vmatpush1.msra.mxu0 0.0
      %2216 = vmatprep.subr.mxu0 0.0
      %2217 = vmatpush1.msra.mxu0 0.0
      %2218 = vmatprep.subr.mxu0 0.0
      %2219 = vmatpush1.msra.mxu0 0.0
      %2220 = vmatprep.subr.mxu0 0.0
      %2221 = vmatpush1.msra.mxu0 0.0
      %2222 = vmatprep.subr.mxu0 0.0
      %2223 = vmatpush1.msra.mxu0 0.0
      %2224 = vmatprep.subr.mxu0 0.0
      %2225 = vmatpush1.msra.mxu0 0.0
      %2226 = vmatprep.subr.mxu0 0.0
      %2227 = vmatpush1.msra.mxu0 0.0
      %2228 = vmatprep.subr.mxu0 0.0
      %2229 = vmatpush1.msra.mxu0 0.0
      %2230 = vmatprep.subr.mxu0 0.0
      %2231 = vmatpush1.msra.mxu0 0.0
      %2232 = vmatprep.subr.mxu0 0.0
      %2233 = vmatpush1.msra.mxu0 0.0
      %2234 = vmatprep.subr.mxu0 0.0
      %2235 = vmatpush1.msra.mxu0 0.0
      %2236 = vmatprep.subr.mxu0 0.0
      %2237 = vmatpush1.msra.mxu0 0.0
      %2238 = vmatprep.subr.mxu0 0.0
      %2239 = vmatpush1.msra.mxu0 0.0
      %2240 = vmatprep.subr.mxu0 0.0
      %2241 = vmatpush1.msra.mxu0 0.0
      %2242 = vmatprep.subr.mxu0 0.0
      %2243 = vmatpush1.msra.mxu0 0.0
      %2244 = vmatprep.subr.mxu0 0.0
      %2245 = vmatpush1.msra.mxu0 0.0
      %2246 = vmatprep.subr.mxu0 0.0
      %2247 = vmatpush1.msra.mxu0 0.0
      %2248 = vmatprep.subr.mxu0 0.0
      %2249 = vmatpush1.msra.mxu0 0.0
      %2250 = vmatprep.subr.mxu0 0.0
      %2251 = vmatpush1.msra.mxu0 0.0
      %2252 = vmatprep.subr.mxu0 0.0
      %2253 = vmatpush1.msra.mxu0 0.0
      %2254 = vmatprep.subr.mxu0 0.0
      %2255 = vmatpush1.msra.mxu0 0.0
      %2256 = vmatprep.subr.mxu0 0.0
      %2257 = vmatpush1.msra.mxu0 0.0
      %2258 = vmatprep.subr.mxu0 0.0
      %2259 = vmatpush1.msra.mxu0 0.0
      %2260 = vmatprep.subr.mxu0 0.0
      %2261 = vmatpush1.msra.mxu0 0.0
      %2262 = vmatprep.subr.mxu0 0.0
      %2263 = vmatpush1.msra.mxu0 0.0
      %2264 = vmatprep.subr.mxu0 0.0
      %2265 = vmatpush1.msra.mxu0 0.0
      %2266 = vmatprep.subr.mxu0 0.0
      %2267 = vmatpush1.msra.mxu0 0.0
      %2268 = vmatprep.mubr.f32.mxu0 0.0
      %2269 = vmatmul.mubr.f32.gmra.mrb[0].mxu0 %v2131
      %v2270 = vpop.f32.mrb[0].mxu0
      %v2271 = vadd.f32 0.0, %v2270
      %v2272 = vpop.f32.mrb[0].mxu0
      %v2273 = vadd.f32 0.0, %v2272
      %2274 = vdwg.mxu0
      %v2276 = vsel %vm2129, %v2128, 0
      %2278 = vmatprep.subr.mxu0 %v291
      %2279 = vmatpush1.msra.mxu0 %v290
      %2280 = vmatprep.subr.mxu0 0.0
      %2281 = vmatpush1.msra.mxu0 0.0
      %2282 = vmatprep.subr.mxu0 0.0
      %2283 = vmatpush1.msra.mxu0 0.0
      %2284 = vmatprep.subr.mxu0 0.0
      %2285 = vmatpush1.msra.mxu0 0.0
      %2286 = vmatprep.subr.mxu0 0.0
      %2287 = vmatpush1.msra.mxu0 0.0
      %2288 = vmatprep.subr.mxu0 0.0
      %2289 = vmatpush1.msra.mxu0 0.0
      %2290 = vmatprep.subr.mxu0 0.0
      %2291 = vmatpush1.msra.mxu0 0.0
      %2292 = vmatprep.subr.mxu0 0.0
      %2293 = vmatpush1.msra.mxu0 0.0
      %2294 = vmatprep.subr.mxu0 0.0
      %2295 = vmatpush1.msra.mxu0 0.0
      %2296 = vmatprep.subr.mxu0 0.0
      %2297 = vmatpush1.msra.mxu0 0.0
      %2298 = vmatprep.subr.mxu0 0.0
      %2299 = vmatpush1.msra.mxu0 0.0
      %2300 = vmatprep.subr.mxu0 0.0
      %2301 = vmatpush1.msra.mxu0 0.0
      %2302 = vmatprep.subr.mxu0 0.0
      %2303 = vmatpush1.msra.mxu0 0.0
      %2304 = vmatprep.subr.mxu0 0.0
      %2305 = vmatpush1.msra.mxu0 0.0
      %2306 = vmatprep.subr.mxu0 0.0
      %2307 = vmatpush1.msra.mxu0 0.0
      %2308 = vmatprep.subr.mxu0 0.0
      %2309 = vmatpush1.msra.mxu0 0.0
      %2310 = vmatprep.subr.mxu0 0.0
      %2311 = vmatpush1.msra.mxu0 0.0
      %2312 = vmatprep.subr.mxu0 0.0
      %2313 = vmatpush1.msra.mxu0 0.0
      %2314 = vmatprep.subr.mxu0 0.0
      %2315 = vmatpush1.msra.mxu0 0.0
      %2316 = vmatprep.subr.mxu0 0.0
      %2317 = vmatpush1.msra.mxu0 0.0
      %2318 = vmatprep.subr.mxu0 0.0
      %2319 = vmatpush1.msra.mxu0 0.0
      %2320 = vmatprep.subr.mxu0 0.0
      %2321 = vmatpush1.msra.mxu0 0.0
      %2322 = vmatprep.subr.mxu0 0.0
      %2323 = vmatpush1.msra.mxu0 0.0
      %2324 = vmatprep.subr.mxu0 0.0
      %2325 = vmatpush1.msra.mxu0 0.0
      %2326 = vmatprep.subr.mxu0 0.0
      %2327 = vmatpush1.msra.mxu0 0.0
      %2328 = vmatprep.subr.mxu0 0.0
      %2329 = vmatpush1.msra.mxu0 0.0
      %2330 = vmatprep.subr.mxu0 0.0
      %2331 = vmatpush1.msra.mxu0 0.0
      %2332 = vmatprep.subr.mxu0 0.0
      %2333 = vmatpush1.msra.mxu0 0.0
      %2334 = vmatprep.subr.mxu0 0.0
      %2335 = vmatpush1.msra.mxu0 0.0
      %2336 = vmatprep.subr.mxu0 0.0
      %2337 = vmatpush1.msra.mxu0 0.0
      %2338 = vmatprep.subr.mxu0 0.0
      %2339 = vmatpush1.msra.mxu0 0.0
      %2340 = vmatprep.subr.mxu0 0.0
      %2341 = vmatpush1.msra.mxu0 0.0
      %2342 = vmatprep.mubr.f32.mxu0 0.0
      %2343 = vmatmul.mubr.f32.gmra.mrb[0].mxu0 %v2276
      %v2344 = vpop.f32.mrb[0].mxu0
      %v2345 = vadd.f32 0.0, %v2344
      %v2346 = vpop.f32.mrb[0].mxu0
      %v2347 = vadd.f32 0.0, %v2346
      %2348 = vdwg.mxu0
      %2349 = vmatprep.subr.mxu0 %v293
      %2350 = vmatpush1.msra.mxu0 %v292
      %2351 = vmatprep.subr.mxu0 0.0
      %2352 = vmatpush1.msra.mxu0 0.0
      %2353 = vmatprep.subr.mxu0 0.0
      %2354 = vmatpush1.msra.mxu0 0.0
      %2355 = vmatprep.subr.mxu0 0.0
      %2356 = vmatpush1.msra.mxu0 0.0
      %2357 = vmatprep.subr.mxu0 0.0
      %2358 = vmatpush1.msra.mxu0 0.0
      %2359 = vmatprep.subr.mxu0 0.0
      %2360 = vmatpush1.msra.mxu0 0.0
      %2361 = vmatprep.subr.mxu0 0.0
      %2362 = vmatpush1.msra.mxu0 0.0
      %2363 = vmatprep.subr.mxu0 0.0
      %2364 = vmatpush1.msra.mxu0 0.0
      %2365 = vmatprep.subr.mxu0 0.0
      %2366 = vmatpush1.msra.mxu0 0.0
      %2367 = vmatprep.subr.mxu0 0.0
      %2368 = vmatpush1.msra.mxu0 0.0
      %2369 = vmatprep.subr.mxu0 0.0
      %2370 = vmatpush1.msra.mxu0 0.0
      %2371 = vmatprep.subr.mxu0 0.0
      %2372 = vmatpush1.msra.mxu0 0.0
      %2373 = vmatprep.subr.mxu0 0.0
      %2374 = vmatpush1.msra.mxu0 0.0
      %2375 = vmatprep.subr.mxu0 0.0
      %2376 = vmatpush1.msra.mxu0 0.0
      %2377 = vmatprep.subr.mxu0 0.0
      %2378 = vmatpush1.msra.mxu0 0.0
      %2379 = vmatprep.subr.mxu0 0.0
      %2380 = vmatpush1.msra.mxu0 0.0
      %2381 = vmatprep.subr.mxu0 0.0
      %2382 = vmatpush1.msra.mxu0 0.0
      %2383 = vmatprep.subr.mxu0 0.0
      %2384 = vmatpush1.msra.mxu0 0.0
      %2385 = vmatprep.subr.mxu0 0.0
      %2386 = vmatpush1.msra.mxu0 0.0
      %2387 = vmatprep.subr.mxu0 0.0
      %2388 = vmatpush1.msra.mxu0 0.0
      %2389 = vmatprep.subr.mxu0 0.0
      %2390 = vmatpush1.msra.mxu0 0.0
      %2391 = vmatprep.subr.mxu0 0.0
      %2392 = vmatpush1.msra.mxu0 0.0
      %2393 = vmatprep.subr.mxu0 0.0
      %2394 = vmatpush1.msra.mxu0 0.0
      %2395 = vmatprep.subr.mxu0 0.0
      %2396 = vmatpush1.msra.mxu0 0.0
      %2397 = vmatprep.subr.mxu0 0.0
      %2398 = vmatpush1.msra.mxu0 0.0
      %2399 = vmatprep.subr.mxu0 0.0
      %2400 = vmatpush1.msra.mxu0 0.0
      %2401 = vmatprep.subr.mxu0 0.0
      %2402 = vmatpush1.msra.mxu0 0.0
      %2403 = vmatprep.subr.mxu0 0.0
      %2404 = vmatpush1.msra.mxu0 0.0
      %2405 = vmatprep.subr.mxu0 0.0
      %2406 = vmatpush1.msra.mxu0 0.0
      %2407 = vmatprep.subr.mxu0 0.0
      %2408 = vmatpush1.msra.mxu0 0.0
      %2409 = vmatprep.subr.mxu0 0.0
      %2410 = vmatpush1.msra.mxu0 0.0
      %2411 = vmatprep.subr.mxu0 0.0
      %2412 = vmatpush1.msra.mxu0 0.0
      %2413 = vmatprep.mubr.f32.mxu0 0.0
      %2414 = vmatmul.mubr.f32.gmra.mrb[0].mxu0 %v2276
      %v2415 = vpop.f32.mrb[0].mxu0
      %v2416 = vadd.f32 0.0, %v2415
      %v2417 = vpop.f32.mrb[0].mxu0
      %v2418 = vadd.f32 0.0, %v2417
      %2419 = vdwg.mxu0
      %v2420 = vlaneseq
      %v2421 = vshrl.u32 %v2420, 7
      %v2422 = vsub.s32 0, %v2421
      %v2423 = vrot.slane %v2200, %v2422
      %v2424 = vlaneseq
      %v2425 = vshrl.u32 %v2424, 7
      %v2426 = vsub.s32 0, %v2425
      %v2427 = vrot.slane %v2202, %v2426
      %v2428 = vlaneseq
      %v2429 = vshrl.u32 %v2428, 7
      %v2430 = vsub.s32 0, %v2429
      %v2431 = vrot.slane %v2271, %v2430
      %v2432 = vlaneseq
      %v2433 = vshrl.u32 %v2432, 7
      %v2434 = vsub.s32 0, %v2433
      %v2435 = vrot.slane %v2273, %v2434
      %v2436 = vmul.f32 %v1786, %v2423
      %v2437 = vmul.f32 %v1787, %v2427
      %v2438 = vmul.f32 %v1788, %v2431
      %v2439 = vmul.f32 %v1789, %v2435
      %v2440 = vlaneseq
      %v2441 = vshrl.u32 %v2440, 7
      %v2442 = vsub.s32 0, %v2441
      %v2443 = vrot.slane %v2345, %v2442
      %v2444 = vlaneseq
      %v2445 = vshrl.u32 %v2444, 7
      %v2446 = vsub.s32 0, %v2445
      %v2447 = vrot.slane %v2347, %v2446
      %v2448 = vlaneseq
      %v2449 = vshrl.u32 %v2448, 7
      %v2450 = vsub.s32 0, %v2449
      %v2451 = vrot.slane %v2416, %v2450
      %v2452 = vlaneseq
      %v2453 = vshrl.u32 %v2452, 7
      %v2454 = vsub.s32 0, %v2453
      %v2455 = vrot.slane %v2418, %v2454
      %v2456 = vsub.f32 %v2436, %v2443
      %v2457 = vsub.f32 %v2437, %v2447
      %v2458 = vsub.f32 %v2438, %v2451
      %v2459 = vsub.f32 %v2439, %v2455
      %v2460 = vmax.f32 %v2456, 0.0
      %v2461 = vmax.f32 %v2457, 0.0
      %v2462 = vmax.f32 %v2458, 0.0
      %v2463 = vmax.f32 %v2459, 0.0
      %v2464 = vpack.c.bf16 %v2460, %v2460
      %v2465 = vpack.c.bf16 %v2461, %v2461
      %v2466 = vpack.c.bf16 %v2462, %v2462
      %v2467 = vpack.c.bf16 %v2463, %v2463
      %v2472 = vunpack.c.l.b16 %v2464
      %v2473 = vunpack.c.l.b16 %v2465
      %v2474 = vunpack.c.l.b16 %v2466
      %v2475 = vunpack.c.l.b16 %v2467
      %v2476 = vpack.c.b16 %v2473, %v2472
      %v2477 = vpack.c.b16 %v2475, %v2474
      %v2479 = vshrl.u32 %v2476, 16
      %v2481 = vrot.slane %v2479, 7
      %v2482 = vshll.u32 %v2476, 16
      %v2484 = vor.u32 %v2481, %v2482
      %v2486 = vshrl.u32 %v2477, 16
      %v2488 = vrot.slane %v2486, 7
      %v2489 = vshll.u32 %v2477, 16
      %v2491 = vor.u32 %v2488, %v2489
      %v2492 = vrot.slane %v2481, 4
      %v2493 = vrot.slane %v2488, 4
      %v2498 = vld [vmem:[#allocation3] sm:$0xff]
      %v2499 = vsel %vm339, %v2484, %v2498
      %2500 = vst [vmem:[#allocation3] sm:$0xff] %v2499
      %v2501 = vld [vmem:[#allocation3 + $0x8] sm:$0xff]
      %v2502 = vsel %vm339, %v2491, %v2501
      %2503 = vst [vmem:[#allocation3 + $0x8] sm:$0xff] %v2502
      %v2504 = vld [vmem:[#allocation3 + $0x10] sm:$0x11]
      %v2505 = vsel %vm300, %v2492, %v2504
      %2506 = vst [vmem:[#allocation3 + $0x10] sm:$0x11] %v2505
      %v2507 = vld [vmem:[#allocation3 + $0x18] sm:$0x11]
      %v2508 = vsel %vm300, %v2493, %v2507
      %2509 = vst [vmem:[#allocation3 + $0x18] sm:$0x11] %v2508
      %v2510 = vld [vmem:[#allocation3] sm:$0xff]
      %v2511 = vld [vmem:[#allocation3 + $0x8] sm:$0xff]
      %v2512 = vld [vmem:[%s2] sm:$0xff]
      %v2513 = vld [vmem:[%s2 + $0x8] sm:$0xff]
      %v2514 = vld [vmem:[%s2 + $0x10] sm:$0xff]
      %v2515 = vld [vmem:[%s2 + $0x18] sm:$0xff]
      %v2516 = vld [vmem:[%s2 + $0x20] sm:$0xff]
      %v2517 = vld [vmem:[%s2 + $0x28] sm:$0xff]
      %v2518 = vld [vmem:[%s2 + $0x30] sm:$0xff]
      %v2519 = vld [vmem:[%s2 + $0x38] sm:$0xff]
      %v2520 = vld [vmem:[%s2 + $0x40] sm:$0xff]
      %v2521 = vld [vmem:[%s2 + $0x48] sm:$0xff]
      %v2522 = vld [vmem:[%s2 + $0x50] sm:$0xff]
      %v2523 = vld [vmem:[%s2 + $0x58] sm:$0xff]
      %v2524 = vld [vmem:[%s2 + $0x60] sm:$0xff]
      %v2525 = vld [vmem:[%s2 + $0x68] sm:$0xff]
      %v2526 = vld [vmem:[%s2 + $0x70] sm:$0xff]
      %v2527 = vld [vmem:[%s2 + $0x78] sm:$0xff]
      %v2528 = vld [vmem:[%s2 + $0x80] sm:$0xff]
      %v2529 = vld [vmem:[%s2 + $0x88] sm:$0xff]
      %v2530 = vld [vmem:[%s2 + $0x90] sm:$0xff]
      %v2531 = vld [vmem:[%s2 + $0x98] sm:$0xff]
      %v2532 = vld [vmem:[%s2 + $0xa0] sm:$0xff]
      %v2533 = vld [vmem:[%s2 + $0xa8] sm:$0xff]
      %v2534 = vld [vmem:[%s2 + $0xb0] sm:$0xff]
      %v2535 = vld [vmem:[%s2 + $0xb8] sm:$0xff]
      %v2536 = vld [vmem:[%s2 + $0xc0] sm:$0xff]
      %v2537 = vld [vmem:[%s2 + $0xc8] sm:$0xff]
      %v2538 = vld [vmem:[%s2 + $0xd0] sm:$0xff]
      %v2539 = vld [vmem:[%s2 + $0xd8] sm:$0xff]
      %v2540 = vld [vmem:[%s2 + $0xe0] sm:$0xff]
      %v2541 = vld [vmem:[%s2 + $0xe8] sm:$0xff]
      %v2542 = vld [vmem:[%s2 + $0xf0] sm:$0xff]
      %v2543 = vld [vmem:[%s2 + $0xf8] sm:$0xff]
      %v2544 = vld [vmem:[%s2 + $0x100] sm:$0xff]
      %v2545 = vld [vmem:[%s2 + $0x108] sm:$0xff]
      %v2546 = vld [vmem:[%s2 + $0x110] sm:$0xff]
      %v2547 = vld [vmem:[%s2 + $0x118] sm:$0xff]
      %v2548 = vld [vmem:[%s2 + $0x120] sm:$0xff]
      %v2549 = vld [vmem:[%s2 + $0x128] sm:$0xff]
      %v2550 = vld [vmem:[%s2 + $0x130] sm:$0xff]
      %v2551 = vld [vmem:[%s2 + $0x138] sm:$0xff]
      %v2552 = vld [vmem:[%s2 + $0x140] sm:$0xff]
      %v2553 = vld [vmem:[%s2 + $0x148] sm:$0xff]
      %v2554 = vld [vmem:[%s2 + $0x150] sm:$0xff]
      %v2555 = vld [vmem:[%s2 + $0x158] sm:$0xff]
      %v2556 = vld [vmem:[%s2 + $0x160] sm:$0xff]
      %v2557 = vld [vmem:[%s2 + $0x168] sm:$0xff]
      %v2558 = vld [vmem:[%s2 + $0x170] sm:$0xff]
      %v2559 = vld [vmem:[%s2 + $0x178] sm:$0xff]
      %v2560 = vld [vmem:[%s2 + $0x180] sm:$0xff]
      %v2561 = vld [vmem:[%s2 + $0x188] sm:$0xff]
      %v2562 = vld [vmem:[%s2 + $0x190] sm:$0xff]
      %v2563 = vld [vmem:[%s2 + $0x198] sm:$0xff]
      %v2564 = vld [vmem:[%s2 + $0x1a0] sm:$0xff]
      %v2565 = vld [vmem:[%s2 + $0x1a8] sm:$0xff]
      %v2566 = vld [vmem:[%s2 + $0x1b0] sm:$0xff]
      %v2567 = vld [vmem:[%s2 + $0x1b8] sm:$0xff]
      %v2568 = vld [vmem:[%s2 + $0x1c0] sm:$0xff]
      %v2569 = vld [vmem:[%s2 + $0x1c8] sm:$0xff]
      %v2570 = vld [vmem:[%s2 + $0x1d0] sm:$0xff]
      %v2571 = vld [vmem:[%s2 + $0x1d8] sm:$0xff]
      %v2572 = vld [vmem:[%s2 + $0x1e0] sm:$0xff]
      %v2573 = vld [vmem:[%s2 + $0x1e8] sm:$0xff]
      %v2574 = vld [vmem:[%s2 + $0x1f0] sm:$0xff]
      %v2575 = vld [vmem:[%s2 + $0x1f8] sm:$0xff]
      %v2576 = vld [vmem:[%s2 + $0x200] sm:$0xff]
      %v2577 = vld [vmem:[%s2 + $0x208] sm:$0xff]
      %v2578 = vld [vmem:[%s2 + $0x210] sm:$0xff]
      %v2579 = vld [vmem:[%s2 + $0x218] sm:$0xff]
      %v2580 = vld [vmem:[%s2 + $0x220] sm:$0xff]
      %v2581 = vld [vmem:[%s2 + $0x228] sm:$0xff]
      %v2582 = vld [vmem:[%s2 + $0x230] sm:$0xff]
      %v2583 = vld [vmem:[%s2 + $0x238] sm:$0xff]
      %v2584 = vld [vmem:[%s2 + $0x240] sm:$0xff]
      %v2585 = vld [vmem:[%s2 + $0x248] sm:$0xff]
      %v2586 = vld [vmem:[%s2 + $0x250] sm:$0xff]
      %v2587 = vld [vmem:[%s2 + $0x258] sm:$0xff]
      %v2588 = vld [vmem:[%s2 + $0x260] sm:$0xff]
      %v2589 = vld [vmem:[%s2 + $0x268] sm:$0xff]
      %v2590 = vld [vmem:[%s2 + $0x270] sm:$0xff]
      %v2591 = vld [vmem:[%s2 + $0x278] sm:$0xff]
      %v2592 = vld [vmem:[%s2 + $0x280] sm:$0xff]
      %v2593 = vld [vmem:[%s2 + $0x288] sm:$0xff]
      %v2594 = vld [vmem:[%s2 + $0x290] sm:$0xff]
      %v2595 = vld [vmem:[%s2 + $0x298] sm:$0xff]
      %v2596 = vld [vmem:[%s2 + $0x2a0] sm:$0xff]
      %v2597 = vld [vmem:[%s2 + $0x2a8] sm:$0xff]
      %v2598 = vld [vmem:[%s2 + $0x2b0] sm:$0xff]
      %v2599 = vld [vmem:[%s2 + $0x2b8] sm:$0xff]
      %v2600 = vld [vmem:[%s2 + $0x2c0] sm:$0xff]
      %v2601 = vld [vmem:[%s2 + $0x2c8] sm:$0xff]
      %v2602 = vld [vmem:[%s2 + $0x2d0] sm:$0xff]
      %v2603 = vld [vmem:[%s2 + $0x2d8] sm:$0xff]
      %v2604 = vld [vmem:[%s2 + $0x2e0] sm:$0xff]
      %v2605 = vld [vmem:[%s2 + $0x2e8] sm:$0xff]
      %v2606 = vld [vmem:[%s2 + $0x2f0] sm:$0xff]
      %v2607 = vld [vmem:[%s2 + $0x2f8] sm:$0xff]
      %v2608 = vld [vmem:[%s2 + $0x300] sm:$0xff]
      %v2609 = vld [vmem:[%s2 + $0x308] sm:$0xff]
      %v2610 = vld [vmem:[%s2 + $0x310] sm:$0xff]
      %v2611 = vld [vmem:[%s2 + $0x318] sm:$0xff]
      %v2612 = vld [vmem:[%s2 + $0x320] sm:$0xff]
      %v2613 = vld [vmem:[%s2 + $0x328] sm:$0xff]
      %v2614 = vld [vmem:[%s2 + $0x330] sm:$0xff]
      %v2615 = vld [vmem:[%s2 + $0x338] sm:$0xff]
      %v2616 = vld [vmem:[%s2 + $0x340] sm:$0xff]
      %v2617 = vld [vmem:[%s2 + $0x348] sm:$0xff]
      %v2618 = vld [vmem:[%s2 + $0x350] sm:$0xff]
      %v2619 = vld [vmem:[%s2 + $0x358] sm:$0xff]
      %v2620 = vld [vmem:[%s2 + $0x360] sm:$0xff]
      %v2621 = vld [vmem:[%s2 + $0x368] sm:$0xff]
      %v2622 = vld [vmem:[%s2 + $0x370] sm:$0xff]
      %v2623 = vld [vmem:[%s2 + $0x378] sm:$0xff]
      %v2624 = vld [vmem:[%s2 + $0x380] sm:$0xff]
      %v2625 = vld [vmem:[%s2 + $0x388] sm:$0xff]
      %v2626 = vld [vmem:[%s2 + $0x390] sm:$0xff]
      %v2627 = vld [vmem:[%s2 + $0x398] sm:$0xff]
      %v2628 = vld [vmem:[%s2 + $0x3a0] sm:$0xff]
      %v2629 = vld [vmem:[%s2 + $0x3a8] sm:$0xff]
      %v2630 = vld [vmem:[%s2 + $0x3b0] sm:$0xff]
      %v2631 = vld [vmem:[%s2 + $0x3b8] sm:$0xff]
      %v2632 = vld [vmem:[%s2 + $0x3c0] sm:$0xff]
      %v2633 = vld [vmem:[%s2 + $0x3c8] sm:$0xff]
      %v2634 = vld [vmem:[%s2 + $0x3d0] sm:$0xff]
      %v2635 = vld [vmem:[%s2 + $0x3d8] sm:$0xff]
      %v2636 = vld [vmem:[%s2 + $0x3e0] sm:$0xff]
      %v2637 = vld [vmem:[%s2 + $0x3e8] sm:$0xff]
      %v2638 = vld [vmem:[%s2 + $0x3f0] sm:$0xff]
      %v2639 = vld [vmem:[%s2 + $0x3f8] sm:$0xff]
      %v2640 = vld [vmem:[#allocation3 + $0x10] sm:$0x11]
      %v2641 = vld [vmem:[#allocation3 + $0x18] sm:$0x11]
      %s2642 = scalar_lea.vmem %s2, 1024
      %v2643 = vld [vmem:[%s2642] sm:$0xff]
      %v2644 = vld [vmem:[%s2642 + $0x8] sm:$0xff]
      %v2645 = vld [vmem:[%s2642 + $0x10] sm:$0xff]
      %v2646 = vld [vmem:[%s2642 + $0x18] sm:$0xff]
      %v2647 = vld [vmem:[%s2642 + $0x20] sm:$0xff]
      %v2648 = vld [vmem:[%s2642 + $0x28] sm:$0xff]
      %v2649 = vld [vmem:[%s2642 + $0x30] sm:$0xff]
      %v2650 = vld [vmem:[%s2642 + $0x38] sm:$0xff]
      %v2651 = vld [vmem:[%s2642 + $0x40] sm:$0xff]
      %v2652 = vld [vmem:[%s2642 + $0x48] sm:$0xff]
      %v2653 = vld [vmem:[%s2642 + $0x50] sm:$0xff]
      %v2654 = vld [vmem:[%s2642 + $0x58] sm:$0xff]
      %v2655 = vld [vmem:[%s2642 + $0x60] sm:$0xff]
      %v2656 = vld [vmem:[%s2642 + $0x68] sm:$0xff]
      %v2657 = vld [vmem:[%s2642 + $0x70] sm:$0xff]
      %v2658 = vld [vmem:[%s2642 + $0x78] sm:$0xff]
      %v2659 = vld [vmem:[%s2642 + $0x80] sm:$0xff]
      %v2660 = vld [vmem:[%s2642 + $0x88] sm:$0xff]
      %v2661 = vld [vmem:[%s2642 + $0x90] sm:$0xff]
      %v2662 = vld [vmem:[%s2642 + $0x98] sm:$0xff]
      %v2663 = vld [vmem:[%s2642 + $0xa0] sm:$0xff]
      %v2664 = vld [vmem:[%s2642 + $0xa8] sm:$0xff]
      %v2665 = vld [vmem:[%s2642 + $0xb0] sm:$0xff]
      %v2666 = vld [vmem:[%s2642 + $0xb8] sm:$0xff]
      %v2667 = vld [vmem:[%s2642 + $0xc0] sm:$0xff]
      %v2668 = vld [vmem:[%s2642 + $0xc8] sm:$0xff]
      %v2669 = vld [vmem:[%s2642 + $0xd0] sm:$0xff]
      %v2670 = vld [vmem:[%s2642 + $0xd8] sm:$0xff]
      %v2671 = vld [vmem:[%s2642 + $0xe0] sm:$0xff]
      %v2672 = vld [vmem:[%s2642 + $0xe8] sm:$0xff]
      %v2673 = vld [vmem:[%s2642 + $0xf0] sm:$0xff]
      %v2674 = vld [vmem:[%s2642 + $0xf8] sm:$0xff]
      %v2675 = vld [vmem:[%s2642 + $0x100] sm:$0xff]
      %v2676 = vld [vmem:[%s2642 + $0x108] sm:$0xff]
      %v2677 = vld [vmem:[%s2642 + $0x110] sm:$0xff]
      %v2678 = vld [vmem:[%s2642 + $0x118] sm:$0xff]
      %v2679 = vld [vmem:[%s2642 + $0x120] sm:$0xff]
      %v2680 = vld [vmem:[%s2642 + $0x128] sm:$0xff]
      %v2681 = vld [vmem:[%s2642 + $0x130] sm:$0xff]
      %v2682 = vld [vmem:[%s2642 + $0x138] sm:$0xff]
      %v2683 = vld [vmem:[%s2642 + $0x140] sm:$0xff]
      %v2684 = vld [vmem:[%s2642 + $0x148] sm:$0xff]
      %v2685 = vld [vmem:[%s2642 + $0x150] sm:$0xff]
      %v2686 = vld [vmem:[%s2642 + $0x158] sm:$0xff]
      %v2687 = vld [vmem:[%s2642 + $0x160] sm:$0xff]
      %v2688 = vld [vmem:[%s2642 + $0x168] sm:$0xff]
      %v2689 = vld [vmem:[%s2642 + $0x170] sm:$0xff]
      %v2690 = vld [vmem:[%s2642 + $0x178] sm:$0xff]
      %v2691 = vld [vmem:[%s2642 + $0x180] sm:$0xff]
      %v2692 = vld [vmem:[%s2642 + $0x188] sm:$0xff]
      %v2693 = vld [vmem:[%s2642 + $0x190] sm:$0xff]
      %v2694 = vld [vmem:[%s2642 + $0x198] sm:$0xff]
      %v2695 = vld [vmem:[%s2642 + $0x1a0] sm:$0xff]
      %v2696 = vld [vmem:[%s2642 + $0x1a8] sm:$0xff]
      %v2697 = vld [vmem:[%s2642 + $0x1b0] sm:$0xff]
      %v2698 = vld [vmem:[%s2642 + $0x1b8] sm:$0xff]
      %v2699 = vld [vmem:[%s2642 + $0x1c0] sm:$0xff]
      %v2700 = vld [vmem:[%s2642 + $0x1c8] sm:$0xff]
      %v2701 = vld [vmem:[%s2642 + $0x1d0] sm:$0xff]
      %v2702 = vld [vmem:[%s2642 + $0x1d8] sm:$0xff]
      %v2703 = vld [vmem:[%s2642 + $0x1e0] sm:$0xff]
      %v2704 = vld [vmem:[%s2642 + $0x1e8] sm:$0xff]
      %v2705 = vld [vmem:[%s2642 + $0x1f0] sm:$0xff]
      %v2706 = vld [vmem:[%s2642 + $0x1f8] sm:$0xff]
      %v2707 = vld [vmem:[%s2642 + $0x200] sm:$0xff]
      %v2708 = vld [vmem:[%s2642 + $0x208] sm:$0xff]
      %v2709 = vld [vmem:[%s2642 + $0x210] sm:$0xff]
      %v2710 = vld [vmem:[%s2642 + $0x218] sm:$0xff]
      %v2711 = vld [vmem:[%s2642 + $0x220] sm:$0xff]
      %v2712 = vld [vmem:[%s2642 + $0x228] sm:$0xff]
      %v2713 = vld [vmem:[%s2642 + $0x230] sm:$0xff]
      %v2714 = vld [vmem:[%s2642 + $0x238] sm:$0xff]
      %v2715 = vld [vmem:[%s2642 + $0x240] sm:$0xff]
      %v2716 = vld [vmem:[%s2642 + $0x248] sm:$0xff]
      %v2717 = vld [vmem:[%s2642 + $0x250] sm:$0xff]
      %v2718 = vld [vmem:[%s2642 + $0x258] sm:$0xff]
      %v2719 = vld [vmem:[%s2642 + $0x260] sm:$0xff]
      %v2720 = vld [vmem:[%s2642 + $0x268] sm:$0xff]
      %v2721 = vld [vmem:[%s2642 + $0x270] sm:$0xff]
      %v2722 = vld [vmem:[%s2642 + $0x278] sm:$0xff]
      %v2723 = vld [vmem:[%s2642 + $0x280] sm:$0xff]
      %v2724 = vld [vmem:[%s2642 + $0x288] sm:$0xff]
      %v2725 = vld [vmem:[%s2642 + $0x290] sm:$0xff]
      %v2726 = vld [vmem:[%s2642 + $0x298] sm:$0xff]
      %v2727 = vld [vmem:[%s2642 + $0x2a0] sm:$0xff]
      %v2728 = vld [vmem:[%s2642 + $0x2a8] sm:$0xff]
      %v2729 = vld [vmem:[%s2642 + $0x2b0] sm:$0xff]
      %v2730 = vld [vmem:[%s2642 + $0x2b8] sm:$0xff]
      %v2731 = vld [vmem:[%s2642 + $0x2c0] sm:$0xff]
      %v2732 = vld [vmem:[%s2642 + $0x2c8] sm:$0xff]
      %v2733 = vld [vmem:[%s2642 + $0x2d0] sm:$0xff]
      %v2734 = vld [vmem:[%s2642 + $0x2d8] sm:$0xff]
      %v2735 = vld [vmem:[%s2642 + $0x2e0] sm:$0xff]
      %v2736 = vld [vmem:[%s2642 + $0x2e8] sm:$0xff]
      %v2737 = vld [vmem:[%s2642 + $0x2f0] sm:$0xff]
      %v2738 = vld [vmem:[%s2642 + $0x2f8] sm:$0xff]
      %v2739 = vld [vmem:[%s2642 + $0x300] sm:$0xff]
      %v2740 = vld [vmem:[%s2642 + $0x308] sm:$0xff]
      %v2741 = vld [vmem:[%s2642 + $0x310] sm:$0xff]
      %v2742 = vld [vmem:[%s2642 + $0x318] sm:$0xff]
      %v2743 = vld [vmem:[%s2642 + $0x320] sm:$0xff]
      %v2744 = vld [vmem:[%s2642 + $0x328] sm:$0xff]
      %v2745 = vld [vmem:[%s2642 + $0x330] sm:$0xff]
      %v2746 = vld [vmem:[%s2642 + $0x338] sm:$0xff]
      %v2747 = vld [vmem:[%s2642 + $0x340] sm:$0xff]
      %v2748 = vld [vmem:[%s2642 + $0x348] sm:$0xff]
      %v2749 = vld [vmem:[%s2642 + $0x350] sm:$0xff]
      %v2750 = vld [vmem:[%s2642 + $0x358] sm:$0xff]
      %v2751 = vld [vmem:[%s2642 + $0x360] sm:$0xff]
      %v2752 = vld [vmem:[%s2642 + $0x368] sm:$0xff]
      %v2753 = vld [vmem:[%s2642 + $0x370] sm:$0xff]
      %v2754 = vld [vmem:[%s2642 + $0x378] sm:$0xff]
      %v2755 = vld [vmem:[%s2642 + $0x380] sm:$0xff]
      %v2756 = vld [vmem:[%s2642 + $0x388] sm:$0xff]
      %v2757 = vld [vmem:[%s2642 + $0x390] sm:$0xff]
      %v2758 = vld [vmem:[%s2642 + $0x398] sm:$0xff]
      %v2759 = vld [vmem:[%s2642 + $0x3a0] sm:$0xff]
      %v2760 = vld [vmem:[%s2642 + $0x3a8] sm:$0xff]
      %v2761 = vld [vmem:[%s2642 + $0x3b0] sm:$0xff]
      %v2762 = vld [vmem:[%s2642 + $0x3b8] sm:$0xff]
      %v2763 = vld [vmem:[%s2642 + $0x3c0] sm:$0xff]
      %v2764 = vld [vmem:[%s2642 + $0x3c8] sm:$0xff]
      %v2765 = vld [vmem:[%s2642 + $0x3d0] sm:$0xff]
      %v2766 = vld [vmem:[%s2642 + $0x3d8] sm:$0xff]
      %v2767 = vld [vmem:[%s2642 + $0x3e0] sm:$0xff]
      %v2768 = vld [vmem:[%s2642 + $0x3e8] sm:$0xff]
      %v2769 = vld [vmem:[%s2642 + $0x3f0] sm:$0xff]
      %v2770 = vld [vmem:[%s2642 + $0x3f8] sm:$0xff]
      %v2775 = vunpack.c.l.b16 %v2510
      %v2776 = vunpack.c.h.b16 %v2510
      %v2777 = vunpack.c.l.b16 %v2511
      %v2778 = vunpack.c.h.b16 %v2511
      %v2779 = vunpack.c.l.b16 %v2640
      %v2780 = vunpack.c.h.b16 %v2640
      %v2781 = vunpack.c.l.b16 %v2641
      %v2782 = vunpack.c.h.b16 %v2641
      %v2783 = vpack.c.b16 %v2779, %v2775
      %v2784 = vpack.c.b16 %v2780, %v2776
      %v2785 = vpack.c.b16 %v2781, %v2777
      %v2786 = vpack.c.b16 %v2782, %v2778
      %v2788 = vshrl.u32 %v2783, 16
      %v2790 = vshll.u32 %v2783, 16
      %v2792 = vrot.slane %v2790, 1
      %v2793 = vor.u32 %v2788, %v2792
      %v2795 = vshrl.u32 %v2784, 16
      %v2797 = vshll.u32 %v2784, 16
      %v2799 = vrot.slane %v2797, 1
      %v2800 = vor.u32 %v2795, %v2799
      %v2802 = vshrl.u32 %v2785, 16
      %v2804 = vshll.u32 %v2785, 16
      %v2806 = vrot.slane %v2804, 1
      %v2807 = vor.u32 %v2802, %v2806
      %v2809 = vshrl.u32 %v2786, 16
      %v2811 = vshll.u32 %v2786, 16
      %v2813 = vrot.slane %v2811, 1
      %v2814 = vor.u32 %v2809, %v2813
      %v2947 = vunpack.c.l.b16 %v2643
      %v2948 = vunpack.c.h.b16 %v2643
      %v2949 = vunpack.c.l.b16 %v2644
      %v2950 = vunpack.c.h.b16 %v2644
      %v2951 = vunpack.c.l.b16 %v2645
      %v2952 = vunpack.c.h.b16 %v2645
      %v2953 = vunpack.c.l.b16 %v2646
      %v2954 = vunpack.c.h.b16 %v2646
      %v2955 = vunpack.c.l.b16 %v2647
      %v2956 = vunpack.c.h.b16 %v2647
      %v2957 = vunpack.c.l.b16 %v2648
      %v2958 = vunpack.c.h.b16 %v2648
      %v2959 = vunpack.c.l.b16 %v2649
      %v2960 = vunpack.c.h.b16 %v2649
      %v2961 = vunpack.c.l.b16 %v2650
      %v2962 = vunpack.c.h.b16 %v2650
      %v2963 = vunpack.c.l.b16 %v2651
      %v2964 = vunpack.c.h.b16 %v2651
      %v2965 = vunpack.c.l.b16 %v2652
      %v2966 = vunpack.c.h.b16 %v2652
      %v2967 = vunpack.c.l.b16 %v2653
      %v2968 = vunpack.c.h.b16 %v2653
      %v2969 = vunpack.c.l.b16 %v2654
      %v2970 = vunpack.c.h.b16 %v2654
      %v2971 = vunpack.c.l.b16 %v2655
      %v2972 = vunpack.c.h.b16 %v2655
      %v2973 = vunpack.c.l.b16 %v2656
      %v2974 = vunpack.c.h.b16 %v2656
      %v2975 = vunpack.c.l.b16 %v2657
      %v2976 = vunpack.c.h.b16 %v2657
      %v2977 = vunpack.c.l.b16 %v2658
      %v2978 = vunpack.c.h.b16 %v2658
      %v2979 = vunpack.c.l.b16 %v2659
      %v2980 = vunpack.c.h.b16 %v2659
      %v2981 = vunpack.c.l.b16 %v2660
      %v2982 = vunpack.c.h.b16 %v2660
      %v2983 = vunpack.c.l.b16 %v2661
      %v2984 = vunpack.c.h.b16 %v2661
      %v2985 = vunpack.c.l.b16 %v2662
      %v2986 = vunpack.c.h.b16 %v2662
      %v2987 = vunpack.c.l.b16 %v2663
      %v2988 = vunpack.c.h.b16 %v2663
      %v2989 = vunpack.c.l.b16 %v2664
      %v2990 = vunpack.c.h.b16 %v2664
      %v2991 = vunpack.c.l.b16 %v2665
      %v2992 = vunpack.c.h.b16 %v2665
      %v2993 = vunpack.c.l.b16 %v2666
      %v2994 = vunpack.c.h.b16 %v2666
      %v2995 = vunpack.c.l.b16 %v2667
      %v2996 = vunpack.c.h.b16 %v2667
      %v2997 = vunpack.c.l.b16 %v2668
      %v2998 = vunpack.c.h.b16 %v2668
      %v2999 = vunpack.c.l.b16 %v2669
      %v3000 = vunpack.c.h.b16 %v2669
      %v3001 = vunpack.c.l.b16 %v2670
      %v3002 = vunpack.c.h.b16 %v2670
      %v3003 = vunpack.c.l.b16 %v2671
      %v3004 = vunpack.c.h.b16 %v2671
      %v3005 = vunpack.c.l.b16 %v2672
      %v3006 = vunpack.c.h.b16 %v2672
      %v3007 = vunpack.c.l.b16 %v2673
      %v3008 = vunpack.c.h.b16 %v2673
      %v3009 = vunpack.c.l.b16 %v2674
      %v3010 = vunpack.c.h.b16 %v2674
      %v3011 = vunpack.c.l.b16 %v2675
      %v3012 = vunpack.c.h.b16 %v2675
      %v3013 = vunpack.c.l.b16 %v2676
      %v3014 = vunpack.c.h.b16 %v2676
      %v3015 = vunpack.c.l.b16 %v2677
      %v3016 = vunpack.c.h.b16 %v2677
      %v3017 = vunpack.c.l.b16 %v2678
      %v3018 = vunpack.c.h.b16 %v2678
      %v3019 = vunpack.c.l.b16 %v2679
      %v3020 = vunpack.c.h.b16 %v2679
      %v3021 = vunpack.c.l.b16 %v2680
      %v3022 = vunpack.c.h.b16 %v2680
      %v3023 = vunpack.c.l.b16 %v2681
      %v3024 = vunpack.c.h.b16 %v2681
      %v3025 = vunpack.c.l.b16 %v2682
      %v3026 = vunpack.c.h.b16 %v2682
      %v3027 = vunpack.c.l.b16 %v2683
      %v3028 = vunpack.c.h.b16 %v2683
      %v3029 = vunpack.c.l.b16 %v2684
      %v3030 = vunpack.c.h.b16 %v2684
      %v3031 = vunpack.c.l.b16 %v2685
      %v3032 = vunpack.c.h.b16 %v2685
      %v3033 = vunpack.c.l.b16 %v2686
      %v3034 = vunpack.c.h.b16 %v2686
      %v3035 = vunpack.c.l.b16 %v2687
      %v3036 = vunpack.c.h.b16 %v2687
      %v3037 = vunpack.c.l.b16 %v2688
      %v3038 = vunpack.c.h.b16 %v2688
      %v3039 = vunpack.c.l.b16 %v2689
      %v3040 = vunpack.c.h.b16 %v2689
      %v3041 = vunpack.c.l.b16 %v2690
      %v3042 = vunpack.c.h.b16 %v2690
      %v3043 = vunpack.c.l.b16 %v2691
      %v3044 = vunpack.c.h.b16 %v2691
      %v3045 = vunpack.c.l.b16 %v2692
      %v3046 = vunpack.c.h.b16 %v2692
      %v3047 = vunpack.c.l.b16 %v2693
      %v3048 = vunpack.c.h.b16 %v2693
      %v3049 = vunpack.c.l.b16 %v2694
      %v3050 = vunpack.c.h.b16 %v2694
      %v3051 = vunpack.c.l.b16 %v2695
      %v3052 = vunpack.c.h.b16 %v2695
      %v3053 = vunpack.c.l.b16 %v2696
      %v3054 = vunpack.c.h.b16 %v2696
      %v3055 = vunpack.c.l.b16 %v2697
      %v3056 = vunpack.c.h.b16 %v2697
      %v3057 = vunpack.c.l.b16 %v2698
      %v3058 = vunpack.c.h.b16 %v2698
      %v3059 = vunpack.c.l.b16 %v2699
      %v3060 = vunpack.c.h.b16 %v2699
      %v3061 = vunpack.c.l.b16 %v2700
      %v3062 = vunpack.c.h.b16 %v2700
      %v3063 = vunpack.c.l.b16 %v2701
      %v3064 = vunpack.c.h.b16 %v2701
      %v3065 = vunpack.c.l.b16 %v2702
      %v3066 = vunpack.c.h.b16 %v2702
      %v3067 = vunpack.c.l.b16 %v2703
      %v3068 = vunpack.c.h.b16 %v2703
      %v3069 = vunpack.c.l.b16 %v2704
      %v3070 = vunpack.c.h.b16 %v2704
      %v3071 = vunpack.c.l.b16 %v2705
      %v3072 = vunpack.c.h.b16 %v2705
      %v3073 = vunpack.c.l.b16 %v2706
      %v3074 = vunpack.c.h.b16 %v2706
      %v3075 = vunpack.c.l.b16 %v2707
      %v3076 = vunpack.c.h.b16 %v2707
      %v3077 = vunpack.c.l.b16 %v2708
      %v3078 = vunpack.c.h.b16 %v2708
      %v3079 = vunpack.c.l.b16 %v2709
      %v3080 = vunpack.c.h.b16 %v2709
      %v3081 = vunpack.c.l.b16 %v2710
      %v3082 = vunpack.c.h.b16 %v2710
      %v3083 = vunpack.c.l.b16 %v2711
      %v3084 = vunpack.c.h.b16 %v2711
      %v3085 = vunpack.c.l.b16 %v2712
      %v3086 = vunpack.c.h.b16 %v2712
      %v3087 = vunpack.c.l.b16 %v2713
      %v3088 = vunpack.c.h.b16 %v2713
      %v3089 = vunpack.c.l.b16 %v2714
      %v3090 = vunpack.c.h.b16 %v2714
      %v3091 = vunpack.c.l.b16 %v2715
      %v3092 = vunpack.c.h.b16 %v2715
      %v3093 = vunpack.c.l.b16 %v2716
      %v3094 = vunpack.c.h.b16 %v2716
      %v3095 = vunpack.c.l.b16 %v2717
      %v3096 = vunpack.c.h.b16 %v2717
      %v3097 = vunpack.c.l.b16 %v2718
      %v3098 = vunpack.c.h.b16 %v2718
      %v3099 = vunpack.c.l.b16 %v2719
      %v3100 = vunpack.c.h.b16 %v2719
      %v3101 = vunpack.c.l.b16 %v2720
      %v3102 = vunpack.c.h.b16 %v2720
      %v3103 = vunpack.c.l.b16 %v2721
      %v3104 = vunpack.c.h.b16 %v2721
      %v3105 = vunpack.c.l.b16 %v2722
      %v3106 = vunpack.c.h.b16 %v2722
      %v3107 = vunpack.c.l.b16 %v2723
      %v3108 = vunpack.c.h.b16 %v2723
      %v3109 = vunpack.c.l.b16 %v2724
      %v3110 = vunpack.c.h.b16 %v2724
      %v3111 = vunpack.c.l.b16 %v2725
      %v3112 = vunpack.c.h.b16 %v2725
      %v3113 = vunpack.c.l.b16 %v2726
      %v3114 = vunpack.c.h.b16 %v2726
      %v3115 = vunpack.c.l.b16 %v2727
      %v3116 = vunpack.c.h.b16 %v2727
      %v3117 = vunpack.c.l.b16 %v2728
      %v3118 = vunpack.c.h.b16 %v2728
      %v3119 = vunpack.c.l.b16 %v2729
      %v3120 = vunpack.c.h.b16 %v2729
      %v3121 = vunpack.c.l.b16 %v2730
      %v3122 = vunpack.c.h.b16 %v2730
      %v3123 = vunpack.c.l.b16 %v2731
      %v3124 = vunpack.c.h.b16 %v2731
      %v3125 = vunpack.c.l.b16 %v2732
      %v3126 = vunpack.c.h.b16 %v2732
      %v3127 = vunpack.c.l.b16 %v2733
      %v3128 = vunpack.c.h.b16 %v2733
      %v3129 = vunpack.c.l.b16 %v2734
      %v3130 = vunpack.c.h.b16 %v2734
      %v3131 = vunpack.c.l.b16 %v2735
      %v3132 = vunpack.c.h.b16 %v2735
      %v3133 = vunpack.c.l.b16 %v2736
      %v3134 = vunpack.c.h.b16 %v2736
      %v3135 = vunpack.c.l.b16 %v2737
      %v3136 = vunpack.c.h.b16 %v2737
      %v3137 = vunpack.c.l.b16 %v2738
      %v3138 = vunpack.c.h.b16 %v2738
      %v3139 = vunpack.c.l.b16 %v2739
      %v3140 = vunpack.c.h.b16 %v2739
      %v3141 = vunpack.c.l.b16 %v2740
      %v3142 = vunpack.c.h.b16 %v2740
      %v3143 = vunpack.c.l.b16 %v2741
      %v3144 = vunpack.c.h.b16 %v2741
      %v3145 = vunpack.c.l.b16 %v2742
      %v3146 = vunpack.c.h.b16 %v2742
      %v3147 = vunpack.c.l.b16 %v2743
      %v3148 = vunpack.c.h.b16 %v2743
      %v3149 = vunpack.c.l.b16 %v2744
      %v3150 = vunpack.c.h.b16 %v2744
      %v3151 = vunpack.c.l.b16 %v2745
      %v3152 = vunpack.c.h.b16 %v2745
      %v3153 = vunpack.c.l.b16 %v2746
      %v3154 = vunpack.c.h.b16 %v2746
      %v3155 = vunpack.c.l.b16 %v2747
      %v3156 = vunpack.c.h.b16 %v2747
      %v3157 = vunpack.c.l.b16 %v2748
      %v3158 = vunpack.c.h.b16 %v2748
      %v3159 = vunpack.c.l.b16 %v2749
      %v3160 = vunpack.c.h.b16 %v2749
      %v3161 = vunpack.c.l.b16 %v2750
      %v3162 = vunpack.c.h.b16 %v2750
      %v3163 = vunpack.c.l.b16 %v2751
      %v3164 = vunpack.c.h.b16 %v2751
      %v3165 = vunpack.c.l.b16 %v2752
      %v3166 = vunpack.c.h.b16 %v2752
      %v3167 = vunpack.c.l.b16 %v2753
      %v3168 = vunpack.c.h.b16 %v2753
      %v3169 = vunpack.c.l.b16 %v2754
      %v3170 = vunpack.c.h.b16 %v2754
      %v3171 = vunpack.c.l.b16 %v2755
      %v3172 = vunpack.c.h.b16 %v2755
      %v3173 = vunpack.c.l.b16 %v2756
      %v3174 = vunpack.c.h.b16 %v2756
      %v3175 = vunpack.c.l.b16 %v2757
      %v3176 = vunpack.c.h.b16 %v2757
      %v3177 = vunpack.c.l.b16 %v2758
      %v3178 = vunpack.c.h.b16 %v2758
      %v3179 = vunpack.c.l.b16 %v2759
      %v3180 = vunpack.c.h.b16 %v2759
      %v3181 = vunpack.c.l.b16 %v2760
      %v3182 = vunpack.c.h.b16 %v2760
      %v3183 = vunpack.c.l.b16 %v2761
      %v3184 = vunpack.c.h.b16 %v2761
      %v3185 = vunpack.c.l.b16 %v2762
      %v3186 = vunpack.c.h.b16 %v2762
      %v3187 = vunpack.c.l.b16 %v2763
      %v3188 = vunpack.c.h.b16 %v2763
      %v3189 = vunpack.c.l.b16 %v2764
      %v3190 = vunpack.c.h.b16 %v2764
      %v3191 = vunpack.c.l.b16 %v2765
      %v3192 = vunpack.c.h.b16 %v2765
      %v3193 = vunpack.c.l.b16 %v2766
      %v3194 = vunpack.c.h.b16 %v2766
      %v3195 = vunpack.c.l.b16 %v2767
      %v3196 = vunpack.c.h.b16 %v2767
      %v3197 = vunpack.c.l.b16 %v2768
      %v3198 = vunpack.c.h.b16 %v2768
      %v3199 = vunpack.c.l.b16 %v2769
      %v3200 = vunpack.c.h.b16 %v2769
      %v3201 = vunpack.c.l.b16 %v2770
      %v3202 = vunpack.c.h.b16 %v2770
      %v3203 = vpack.c.b16 %v2951, %v2947
      %v3204 = vpack.c.b16 %v2952, %v2948
      %v3205 = vpack.c.b16 %v2953, %v2949
      %v3206 = vpack.c.b16 %v2954, %v2950
      %v3207 = vpack.c.b16 %v2959, %v2955
      %v3208 = vpack.c.b16 %v2960, %v2956
      %v3209 = vpack.c.b16 %v2961, %v2957
      %v3210 = vpack.c.b16 %v2962, %v2958
      %v3211 = vpack.c.b16 %v2967, %v2963
      %v3212 = vpack.c.b16 %v2968, %v2964
      %v3213 = vpack.c.b16 %v2969, %v2965
      %v3214 = vpack.c.b16 %v2970, %v2966
      %v3215 = vpack.c.b16 %v2975, %v2971
      %v3216 = vpack.c.b16 %v2976, %v2972
      %v3217 = vpack.c.b16 %v2977, %v2973
      %v3218 = vpack.c.b16 %v2978, %v2974
      %v3219 = vpack.c.b16 %v2983, %v2979
      %v3220 = vpack.c.b16 %v2984, %v2980
      %v3221 = vpack.c.b16 %v2985, %v2981
      %v3222 = vpack.c.b16 %v2986, %v2982
      %v3223 = vpack.c.b16 %v2991, %v2987
      %v3224 = vpack.c.b16 %v2992, %v2988
      %v3225 = vpack.c.b16 %v2993, %v2989
      %v3226 = vpack.c.b16 %v2994, %v2990
      %v3227 = vpack.c.b16 %v2999, %v2995
      %v3228 = vpack.c.b16 %v3000, %v2996
      %v3229 = vpack.c.b16 %v3001, %v2997
      %v3230 = vpack.c.b16 %v3002, %v2998
      %v3231 = vpack.c.b16 %v3007, %v3003
      %v3232 = vpack.c.b16 %v3008, %v3004
      %v3233 = vpack.c.b16 %v3009, %v3005
      %v3234 = vpack.c.b16 %v3010, %v3006
      %v3235 = vpack.c.b16 %v3015, %v3011
      %v3236 = vpack.c.b16 %v3016, %v3012
      %v3237 = vpack.c.b16 %v3017, %v3013
      %v3238 = vpack.c.b16 %v3018, %v3014
      %v3239 = vpack.c.b16 %v3023, %v3019
      %v3240 = vpack.c.b16 %v3024, %v3020
      %v3241 = vpack.c.b16 %v3025, %v3021
      %v3242 = vpack.c.b16 %v3026, %v3022
      %v3243 = vpack.c.b16 %v3031, %v3027
      %v3244 = vpack.c.b16 %v3032, %v3028
      %v3245 = vpack.c.b16 %v3033, %v3029
      %v3246 = vpack.c.b16 %v3034, %v3030
      %v3247 = vpack.c.b16 %v3039, %v3035
      %v3248 = vpack.c.b16 %v3040, %v3036
      %v3249 = vpack.c.b16 %v3041, %v3037
      %v3250 = vpack.c.b16 %v3042, %v3038
      %v3251 = vpack.c.b16 %v3047, %v3043
      %v3252 = vpack.c.b16 %v3048, %v3044
      %v3253 = vpack.c.b16 %v3049, %v3045
      %v3254 = vpack.c.b16 %v3050, %v3046
      %v3255 = vpack.c.b16 %v3055, %v3051
      %v3256 = vpack.c.b16 %v3056, %v3052
      %v3257 = vpack.c.b16 %v3057, %v3053
      %v3258 = vpack.c.b16 %v3058, %v3054
      %v3259 = vpack.c.b16 %v3063, %v3059
      %v3260 = vpack.c.b16 %v3064, %v3060
      %v3261 = vpack.c.b16 %v3065, %v3061
      %v3262 = vpack.c.b16 %v3066, %v3062
      %v3263 = vpack.c.b16 %v3071, %v3067
      %v3264 = vpack.c.b16 %v3072, %v3068
      %v3265 = vpack.c.b16 %v3073, %v3069
      %v3266 = vpack.c.b16 %v3074, %v3070
      %v3267 = vpack.c.b16 %v3079, %v3075
      %v3268 = vpack.c.b16 %v3080, %v3076
      %v3269 = vpack.c.b16 %v3081, %v3077
      %v3270 = vpack.c.b16 %v3082, %v3078
      %v3271 = vpack.c.b16 %v3087, %v3083
      %v3272 = vpack.c.b16 %v3088, %v3084
      %v3273 = vpack.c.b16 %v3089, %v3085
      %v3274 = vpack.c.b16 %v3090, %v3086
      %v3275 = vpack.c.b16 %v3095, %v3091
      %v3276 = vpack.c.b16 %v3096, %v3092
      %v3277 = vpack.c.b16 %v3097, %v3093
      %v3278 = vpack.c.b16 %v3098, %v3094
      %v3279 = vpack.c.b16 %v3103, %v3099
      %v3280 = vpack.c.b16 %v3104, %v3100
      %v3281 = vpack.c.b16 %v3105, %v3101
      %v3282 = vpack.c.b16 %v3106, %v3102
      %v3283 = vpack.c.b16 %v3111, %v3107
      %v3284 = vpack.c.b16 %v3112, %v3108
      %v3285 = vpack.c.b16 %v3113, %v3109
      %v3286 = vpack.c.b16 %v3114, %v3110
      %v3287 = vpack.c.b16 %v3119, %v3115
      %v3288 = vpack.c.b16 %v3120, %v3116
      %v3289 = vpack.c.b16 %v3121, %v3117
      %v3290 = vpack.c.b16 %v3122, %v3118
      %v3291 = vpack.c.b16 %v3127, %v3123
      %v3292 = vpack.c.b16 %v3128, %v3124
      %v3293 = vpack.c.b16 %v3129, %v3125
      %v3294 = vpack.c.b16 %v3130, %v3126
      %v3295 = vpack.c.b16 %v3135, %v3131
      %v3296 = vpack.c.b16 %v3136, %v3132
      %v3297 = vpack.c.b16 %v3137, %v3133
      %v3298 = vpack.c.b16 %v3138, %v3134
      %v3299 = vpack.c.b16 %v3143, %v3139
      %v3300 = vpack.c.b16 %v3144, %v3140
      %v3301 = vpack.c.b16 %v3145, %v3141
      %v3302 = vpack.c.b16 %v3146, %v3142
      %v3303 = vpack.c.b16 %v3151, %v3147
      %v3304 = vpack.c.b16 %v3152, %v3148
      %v3305 = vpack.c.b16 %v3153, %v3149
      %v3306 = vpack.c.b16 %v3154, %v3150
      %v3307 = vpack.c.b16 %v3159, %v3155
      %v3308 = vpack.c.b16 %v3160, %v3156
      %v3309 = vpack.c.b16 %v3161, %v3157
      %v3310 = vpack.c.b16 %v3162, %v3158
      %v3311 = vpack.c.b16 %v3167, %v3163
      %v3312 = vpack.c.b16 %v3168, %v3164
      %v3313 = vpack.c.b16 %v3169, %v3165
      %v3314 = vpack.c.b16 %v3170, %v3166
      %v3315 = vpack.c.b16 %v3175, %v3171
      %v3316 = vpack.c.b16 %v3176, %v3172
      %v3317 = vpack.c.b16 %v3177, %v3173
      %v3318 = vpack.c.b16 %v3178, %v3174
      %v3319 = vpack.c.b16 %v3183, %v3179
      %v3320 = vpack.c.b16 %v3184, %v3180
      %v3321 = vpack.c.b16 %v3185, %v3181
      %v3322 = vpack.c.b16 %v3186, %v3182
      %v3323 = vpack.c.b16 %v3191, %v3187
      %v3324 = vpack.c.b16 %v3192, %v3188
      %v3325 = vpack.c.b16 %v3193, %v3189
      %v3326 = vpack.c.b16 %v3194, %v3190
      %v3327 = vpack.c.b16 %v3199, %v3195
      %v3328 = vpack.c.b16 %v3200, %v3196
      %v3329 = vpack.c.b16 %v3201, %v3197
      %v3330 = vpack.c.b16 %v3202, %v3198
      %3459 = vmatprep.subr.bf16.mxu0 %v3204
      %3460 = vmatpush1.bf16.msra.mxu0 %v3203
      %3461 = vmatprep.subr.bf16.mxu0 %v3208
      %3462 = vmatpush1.bf16.msra.mxu0 %v3207
      %3463 = vmatprep.subr.bf16.mxu0 %v3212
      %3464 = vmatpush1.bf16.msra.mxu0 %v3211
      %3465 = vmatprep.subr.bf16.mxu0 %v3216
      %3466 = vmatpush1.bf16.msra.mxu0 %v3215
      %3467 = vmatprep.subr.bf16.mxu0 %v3220
      %3468 = vmatpush1.bf16.msra.mxu0 %v3219
      %3469 = vmatprep.subr.bf16.mxu0 %v3224
      %3470 = vmatpush1.bf16.msra.mxu0 %v3223
      %3471 = vmatprep.subr.bf16.mxu0 %v3228
      %3472 = vmatpush1.bf16.msra.mxu0 %v3227
      %3473 = vmatprep.subr.bf16.mxu0 %v3232
      %3474 = vmatpush1.bf16.msra.mxu0 %v3231
      %3475 = vmatprep.subr.bf16.mxu0 %v3236
      %3476 = vmatpush1.bf16.msra.mxu0 %v3235
      %3477 = vmatprep.subr.bf16.mxu0 %v3240
      %3478 = vmatpush1.bf16.msra.mxu0 %v3239
      %3479 = vmatprep.subr.bf16.mxu0 %v3244
      %3480 = vmatpush1.bf16.msra.mxu0 %v3243
      %3481 = vmatprep.subr.bf16.mxu0 %v3248
      %3482 = vmatpush1.bf16.msra.mxu0 %v3247
      %3483 = vmatprep.subr.bf16.mxu0 %v3252
      %3484 = vmatpush1.bf16.msra.mxu0 %v3251
      %3485 = vmatprep.subr.bf16.mxu0 %v3256
      %3486 = vmatpush1.bf16.msra.mxu0 %v3255
      %3487 = vmatprep.subr.bf16.mxu0 %v3260
      %3488 = vmatpush1.bf16.msra.mxu0 %v3259
      %3489 = vmatprep.subr.bf16.mxu0 %v3264
      %3490 = vmatpush1.bf16.msra.mxu0 %v3263
      %3491 = vmatprep.mubr.bf16.mxu0 %v2800
      %3492 = vmatmul.mubr.bf16.gmra.mrb[0].mxu0 %v2793
      %v3493 = vpop.f32.mrb[0].mxu0
      %v3494 = vadd.f32 0.0, %v3493
      %v3495 = vpop.f32.mrb[0].mxu0
      %v3496 = vadd.f32 0.0, %v3495
      %v3497 = vpop.f32.mrb[0].mxu0
      %v3498 = vpop.f32.mrb[0].mxu0
      %3499 = vdwg.mxu0
      %3500 = vmatprep.subr.bf16.mxu0 %v3268
      %3501 = vmatpush1.bf16.msra.mxu0 %v3267
      %3502 = vmatprep.subr.bf16.mxu0 %v3272
      %3503 = vmatpush1.bf16.msra.mxu0 %v3271
      %3504 = vmatprep.subr.bf16.mxu0 %v3276
      %3505 = vmatpush1.bf16.msra.mxu0 %v3275
      %3506 = vmatprep.subr.bf16.mxu0 %v3280
      %3507 = vmatpush1.bf16.msra.mxu0 %v3279
      %3508 = vmatprep.subr.bf16.mxu0 %v3284
      %3509 = vmatpush1.bf16.msra.mxu0 %v3283
      %3510 = vmatprep.subr.bf16.mxu0 %v3288
      %3511 = vmatpush1.bf16.msra.mxu0 %v3287
      %3512 = vmatprep.subr.bf16.mxu0 %v3292
      %3513 = vmatpush1.bf16.msra.mxu0 %v3291
      %3514 = vmatprep.subr.bf16.mxu0 %v3296
      %3515 = vmatpush1.bf16.msra.mxu0 %v3295
      %3516 = vmatprep.subr.bf16.mxu0 %v3300
      %3517 = vmatpush1.bf16.msra.mxu0 %v3299
      %3518 = vmatprep.subr.bf16.mxu0 %v3304
      %3519 = vmatpush1.bf16.msra.mxu0 %v3303
      %3520 = vmatprep.subr.bf16.mxu0 %v3308
      %3521 = vmatpush1.bf16.msra.mxu0 %v3307
      %3522 = vmatprep.subr.bf16.mxu0 %v3312
      %3523 = vmatpush1.bf16.msra.mxu0 %v3311
      %3524 = vmatprep.subr.bf16.mxu0 %v3316
      %3525 = vmatpush1.bf16.msra.mxu0 %v3315
      %3526 = vmatprep.subr.bf16.mxu0 %v3320
      %3527 = vmatpush1.bf16.msra.mxu0 %v3319
      %3528 = vmatprep.subr.bf16.mxu0 %v3324
      %3529 = vmatpush1.bf16.msra.mxu0 %v3323
      %3530 = vmatprep.subr.bf16.mxu0 %v3328
      %3531 = vmatpush1.bf16.msra.mxu0 %v3327
      %3532 = vmatprep.mubr.bf16.mxu0 %v2814
      %3533 = vmatmul.mubr.bf16.gmra.mrb[0].mxu0 %v2807
      %v3534 = vpop.f32.mrb[0].mxu0
      %v3535 = vadd.f32 %v3494, %v3534
      %v3536 = vpop.f32.mrb[0].mxu0
      %v3537 = vadd.f32 %v3496, %v3536
      %v3538 = vpop.f32.mrb[0].mxu0
      %v3539 = vpop.f32.mrb[0].mxu0
      %3540 = vdwg.mxu0
      %3541 = vmatprep.subr.bf16.mxu0 %v3206
      %3542 = vmatpush1.bf16.msra.mxu0 %v3205
      %3543 = vmatprep.subr.bf16.mxu0 %v3210
      %3544 = vmatpush1.bf16.msra.mxu0 %v3209
      %3545 = vmatprep.subr.bf16.mxu0 %v3214
      %3546 = vmatpush1.bf16.msra.mxu0 %v3213
      %3547 = vmatprep.subr.bf16.mxu0 %v3218
      %3548 = vmatpush1.bf16.msra.mxu0 %v3217
      %3549 = vmatprep.subr.bf16.mxu0 %v3222
      %3550 = vmatpush1.bf16.msra.mxu0 %v3221
      %3551 = vmatprep.subr.bf16.mxu0 %v3226
      %3552 = vmatpush1.bf16.msra.mxu0 %v3225
      %3553 = vmatprep.subr.bf16.mxu0 %v3230
      %3554 = vmatpush1.bf16.msra.mxu0 %v3229
      %3555 = vmatprep.subr.bf16.mxu0 %v3234
      %3556 = vmatpush1.bf16.msra.mxu0 %v3233
      %3557 = vmatprep.subr.bf16.mxu0 %v3238
      %3558 = vmatpush1.bf16.msra.mxu0 %v3237
      %3559 = vmatprep.subr.bf16.mxu0 %v3242
      %3560 = vmatpush1.bf16.msra.mxu0 %v3241
      %3561 = vmatprep.subr.bf16.mxu0 %v3246
      %3562 = vmatpush1.bf16.msra.mxu0 %v3245
      %3563 = vmatprep.subr.bf16.mxu0 %v3250
      %3564 = vmatpush1.bf16.msra.mxu0 %v3249
      %3565 = vmatprep.subr.bf16.mxu0 %v3254
      %3566 = vmatpush1.bf16.msra.mxu0 %v3253
      %3567 = vmatprep.subr.bf16.mxu0 %v3258
      %3568 = vmatpush1.bf16.msra.mxu0 %v3257
      %3569 = vmatprep.subr.bf16.mxu0 %v3262
      %3570 = vmatpush1.bf16.msra.mxu0 %v3261
      %3571 = vmatprep.subr.bf16.mxu0 %v3266
      %3572 = vmatpush1.bf16.msra.mxu0 %v3265
      %3573 = vmatprep.mubr.bf16.mxu0 %v2800
      %3574 = vmatmul.mubr.bf16.gmra.mrb[0].mxu0 %v2793
      %v3575 = vpop.f32.mrb[0].mxu0
      %v3576 = vadd.f32 0.0, %v3575
      %v3577 = vpop.f32.mrb[0].mxu0
      %v3578 = vadd.f32 0.0, %v3577
      %v3579 = vpop.f32.mrb[0].mxu0
      %v3580 = vpop.f32.mrb[0].mxu0
      %3581 = vdwg.mxu0
      %3582 = vmatprep.subr.bf16.mxu0 %v3270
      %3583 = vmatpush1.bf16.msra.mxu0 %v3269
      %3584 = vmatprep.subr.bf16.mxu0 %v3274
      %3585 = vmatpush1.bf16.msra.mxu0 %v3273
      %3586 = vmatprep.subr.bf16.mxu0 %v3278
      %3587 = vmatpush1.bf16.msra.mxu0 %v3277
      %3588 = vmatprep.subr.bf16.mxu0 %v3282
      %3589 = vmatpush1.bf16.msra.mxu0 %v3281
      %3590 = vmatprep.subr.bf16.mxu0 %v3286
      %3591 = vmatpush1.bf16.msra.mxu0 %v3285
      %3592 = vmatprep.subr.bf16.mxu0 %v3290
      %3593 = vmatpush1.bf16.msra.mxu0 %v3289
      %3594 = vmatprep.subr.bf16.mxu0 %v3294
      %3595 = vmatpush1.bf16.msra.mxu0 %v3293
      %3596 = vmatprep.subr.bf16.mxu0 %v3298
      %3597 = vmatpush1.bf16.msra.mxu0 %v3297
      %3598 = vmatprep.subr.bf16.mxu0 %v3302
      %3599 = vmatpush1.bf16.msra.mxu0 %v3301
      %3600 = vmatprep.subr.bf16.mxu0 %v3306
      %3601 = vmatpush1.bf16.msra.mxu0 %v3305
      %3602 = vmatprep.subr.bf16.mxu0 %v3310
      %3603 = vmatpush1.bf16.msra.mxu0 %v3309
      %3604 = vmatprep.subr.bf16.mxu0 %v3314
      %3605 = vmatpush1.bf16.msra.mxu0 %v3313
      %3606 = vmatprep.subr.bf16.mxu0 %v3318
      %3607 = vmatpush1.bf16.msra.mxu0 %v3317
      %3608 = vmatprep.subr.bf16.mxu0 %v3322
      %3609 = vmatpush1.bf16.msra.mxu0 %v3321
      %3610 = vmatprep.subr.bf16.mxu0 %v3326
      %3611 = vmatpush1.bf16.msra.mxu0 %v3325
      %3612 = vmatprep.subr.bf16.mxu0 %v3330
      %3613 = vmatpush1.bf16.msra.mxu0 %v3329
      %3614 = vmatprep.mubr.bf16.mxu0 %v2814
      %3615 = vmatmul.mubr.bf16.gmra.mrb[0].mxu0 %v2807
      %v3616 = vpop.f32.mrb[0].mxu0
      %v3617 = vadd.f32 %v3576, %v3616
      %v3618 = vpop.f32.mrb[0].mxu0
      %v3619 = vadd.f32 %v3578, %v3618
      %v3620 = vpop.f32.mrb[0].mxu0
      %v3621 = vpop.f32.mrb[0].mxu0
      %3622 = vdwg.mxu0
      %v3623 = vpack.c.b16 %v2775, %v2775
      %v3624 = vpack.c.b16 %v2776, %v2776
      %v3625 = vpack.c.b16 %v2777, %v2777
      %v3626 = vpack.c.b16 %v2778, %v2778
      %v3759 = vunpack.c.l.b16 %v2512
      %v3760 = vunpack.c.h.b16 %v2512
      %v3761 = vunpack.c.l.b16 %v2513
      %v3762 = vunpack.c.h.b16 %v2513
      %v3763 = vunpack.c.l.b16 %v2514
      %v3764 = vunpack.c.h.b16 %v2514
      %v3765 = vunpack.c.l.b16 %v2515
      %v3766 = vunpack.c.h.b16 %v2515
      %v3767 = vunpack.c.l.b16 %v2516
      %v3768 = vunpack.c.h.b16 %v2516
      %v3769 = vunpack.c.l.b16 %v2517
      %v3770 = vunpack.c.h.b16 %v2517
      %v3771 = vunpack.c.l.b16 %v2518
      %v3772 = vunpack.c.h.b16 %v2518
      %v3773 = vunpack.c.l.b16 %v2519
      %v3774 = vunpack.c.h.b16 %v2519
      %v3775 = vunpack.c.l.b16 %v2520
      %v3776 = vunpack.c.h.b16 %v2520
      %v3777 = vunpack.c.l.b16 %v2521
      %v3778 = vunpack.c.h.b16 %v2521
      %v3779 = vunpack.c.l.b16 %v2522
      %v3780 = vunpack.c.h.b16 %v2522
      %v3781 = vunpack.c.l.b16 %v2523
      %v3782 = vunpack.c.h.b16 %v2523
      %v3783 = vunpack.c.l.b16 %v2524
      %v3784 = vunpack.c.h.b16 %v2524
      %v3785 = vunpack.c.l.b16 %v2525
      %v3786 = vunpack.c.h.b16 %v2525
      %v3787 = vunpack.c.l.b16 %v2526
      %v3788 = vunpack.c.h.b16 %v2526
      %v3789 = vunpack.c.l.b16 %v2527
      %v3790 = vunpack.c.h.b16 %v2527
      %v3791 = vunpack.c.l.b16 %v2528
      %v3792 = vunpack.c.h.b16 %v2528
      %v3793 = vunpack.c.l.b16 %v2529
      %v3794 = vunpack.c.h.b16 %v2529
      %v3795 = vunpack.c.l.b16 %v2530
      %v3796 = vunpack.c.h.b16 %v2530
      %v3797 = vunpack.c.l.b16 %v2531
      %v3798 = vunpack.c.h.b16 %v2531
      %v3799 = vunpack.c.l.b16 %v2532
      %v3800 = vunpack.c.h.b16 %v2532
      %v3801 = vunpack.c.l.b16 %v2533
      %v3802 = vunpack.c.h.b16 %v2533
      %v3803 = vunpack.c.l.b16 %v2534
      %v3804 = vunpack.c.h.b16 %v2534
      %v3805 = vunpack.c.l.b16 %v2535
      %v3806 = vunpack.c.h.b16 %v2535
      %v3807 = vunpack.c.l.b16 %v2536
      %v3808 = vunpack.c.h.b16 %v2536
      %v3809 = vunpack.c.l.b16 %v2537
      %v3810 = vunpack.c.h.b16 %v2537
      %v3811 = vunpack.c.l.b16 %v2538
      %v3812 = vunpack.c.h.b16 %v2538
      %v3813 = vunpack.c.l.b16 %v2539
      %v3814 = vunpack.c.h.b16 %v2539
      %v3815 = vunpack.c.l.b16 %v2540
      %v3816 = vunpack.c.h.b16 %v2540
      %v3817 = vunpack.c.l.b16 %v2541
      %v3818 = vunpack.c.h.b16 %v2541
      %v3819 = vunpack.c.l.b16 %v2542
      %v3820 = vunpack.c.h.b16 %v2542
      %v3821 = vunpack.c.l.b16 %v2543
      %v3822 = vunpack.c.h.b16 %v2543
      %v3823 = vunpack.c.l.b16 %v2544
      %v3824 = vunpack.c.h.b16 %v2544
      %v3825 = vunpack.c.l.b16 %v2545
      %v3826 = vunpack.c.h.b16 %v2545
      %v3827 = vunpack.c.l.b16 %v2546
      %v3828 = vunpack.c.h.b16 %v2546
      %v3829 = vunpack.c.l.b16 %v2547
      %v3830 = vunpack.c.h.b16 %v2547
      %v3831 = vunpack.c.l.b16 %v2548
      %v3832 = vunpack.c.h.b16 %v2548
      %v3833 = vunpack.c.l.b16 %v2549
      %v3834 = vunpack.c.h.b16 %v2549
      %v3835 = vunpack.c.l.b16 %v2550
      %v3836 = vunpack.c.h.b16 %v2550
      %v3837 = vunpack.c.l.b16 %v2551
      %v3838 = vunpack.c.h.b16 %v2551
      %v3839 = vunpack.c.l.b16 %v2552
      %v3840 = vunpack.c.h.b16 %v2552
      %v3841 = vunpack.c.l.b16 %v2553
      %v3842 = vunpack.c.h.b16 %v2553
      %v3843 = vunpack.c.l.b16 %v2554
      %v3844 = vunpack.c.h.b16 %v2554
      %v3845 = vunpack.c.l.b16 %v2555
      %v3846 = vunpack.c.h.b16 %v2555
      %v3847 = vunpack.c.l.b16 %v2556
      %v3848 = vunpack.c.h.b16 %v2556
      %v3849 = vunpack.c.l.b16 %v2557
      %v3850 = vunpack.c.h.b16 %v2557
      %v3851 = vunpack.c.l.b16 %v2558
      %v3852 = vunpack.c.h.b16 %v2558
      %v3853 = vunpack.c.l.b16 %v2559
      %v3854 = vunpack.c.h.b16 %v2559
      %v3855 = vunpack.c.l.b16 %v2560
      %v3856 = vunpack.c.h.b16 %v2560
      %v3857 = vunpack.c.l.b16 %v2561
      %v3858 = vunpack.c.h.b16 %v2561
      %v3859 = vunpack.c.l.b16 %v2562
      %v3860 = vunpack.c.h.b16 %v2562
      %v3861 = vunpack.c.l.b16 %v2563
      %v3862 = vunpack.c.h.b16 %v2563
      %v3863 = vunpack.c.l.b16 %v2564
      %v3864 = vunpack.c.h.b16 %v2564
      %v3865 = vunpack.c.l.b16 %v2565
      %v3866 = vunpack.c.h.b16 %v2565
      %v3867 = vunpack.c.l.b16 %v2566
      %v3868 = vunpack.c.h.b16 %v2566
      %v3869 = vunpack.c.l.b16 %v2567
      %v3870 = vunpack.c.h.b16 %v2567
      %v3871 = vunpack.c.l.b16 %v2568
      %v3872 = vunpack.c.h.b16 %v2568
      %v3873 = vunpack.c.l.b16 %v2569
      %v3874 = vunpack.c.h.b16 %v2569
      %v3875 = vunpack.c.l.b16 %v2570
      %v3876 = vunpack.c.h.b16 %v2570
      %v3877 = vunpack.c.l.b16 %v2571
      %v3878 = vunpack.c.h.b16 %v2571
      %v3879 = vunpack.c.l.b16 %v2572
      %v3880 = vunpack.c.h.b16 %v2572
      %v3881 = vunpack.c.l.b16 %v2573
      %v3882 = vunpack.c.h.b16 %v2573
      %v3883 = vunpack.c.l.b16 %v2574
      %v3884 = vunpack.c.h.b16 %v2574
      %v3885 = vunpack.c.l.b16 %v2575
      %v3886 = vunpack.c.h.b16 %v2575
      %v3887 = vunpack.c.l.b16 %v2576
      %v3888 = vunpack.c.h.b16 %v2576
      %v3889 = vunpack.c.l.b16 %v2577
      %v3890 = vunpack.c.h.b16 %v2577
      %v3891 = vunpack.c.l.b16 %v2578
      %v3892 = vunpack.c.h.b16 %v2578
      %v3893 = vunpack.c.l.b16 %v2579
      %v3894 = vunpack.c.h.b16 %v2579
      %v3895 = vunpack.c.l.b16 %v2580
      %v3896 = vunpack.c.h.b16 %v2580
      %v3897 = vunpack.c.l.b16 %v2581
      %v3898 = vunpack.c.h.b16 %v2581
      %v3899 = vunpack.c.l.b16 %v2582
      %v3900 = vunpack.c.h.b16 %v2582
      %v3901 = vunpack.c.l.b16 %v2583
      %v3902 = vunpack.c.h.b16 %v2583
      %v3903 = vunpack.c.l.b16 %v2584
      %v3904 = vunpack.c.h.b16 %v2584
      %v3905 = vunpack.c.l.b16 %v2585
      %v3906 = vunpack.c.h.b16 %v2585
      %v3907 = vunpack.c.l.b16 %v2586
      %v3908 = vunpack.c.h.b16 %v2586
      %v3909 = vunpack.c.l.b16 %v2587
      %v3910 = vunpack.c.h.b16 %v2587
      %v3911 = vunpack.c.l.b16 %v2588
      %v3912 = vunpack.c.h.b16 %v2588
      %v3913 = vunpack.c.l.b16 %v2589
      %v3914 = vunpack.c.h.b16 %v2589
      %v3915 = vunpack.c.l.b16 %v2590
      %v3916 = vunpack.c.h.b16 %v2590
      %v3917 = vunpack.c.l.b16 %v2591
      %v3918 = vunpack.c.h.b16 %v2591
      %v3919 = vunpack.c.l.b16 %v2592
      %v3920 = vunpack.c.h.b16 %v2592
      %v3921 = vunpack.c.l.b16 %v2593
      %v3922 = vunpack.c.h.b16 %v2593
      %v3923 = vunpack.c.l.b16 %v2594
      %v3924 = vunpack.c.h.b16 %v2594
      %v3925 = vunpack.c.l.b16 %v2595
      %v3926 = vunpack.c.h.b16 %v2595
      %v3927 = vunpack.c.l.b16 %v2596
      %v3928 = vunpack.c.h.b16 %v2596
      %v3929 = vunpack.c.l.b16 %v2597
      %v3930 = vunpack.c.h.b16 %v2597
      %v3931 = vunpack.c.l.b16 %v2598
      %v3932 = vunpack.c.h.b16 %v2598
      %v3933 = vunpack.c.l.b16 %v2599
      %v3934 = vunpack.c.h.b16 %v2599
      %v3935 = vunpack.c.l.b16 %v2600
      %v3936 = vunpack.c.h.b16 %v2600
      %v3937 = vunpack.c.l.b16 %v2601
      %v3938 = vunpack.c.h.b16 %v2601
      %v3939 = vunpack.c.l.b16 %v2602
      %v3940 = vunpack.c.h.b16 %v2602
      %v3941 = vunpack.c.l.b16 %v2603
      %v3942 = vunpack.c.h.b16 %v2603
      %v3943 = vunpack.c.l.b16 %v2604
      %v3944 = vunpack.c.h.b16 %v2604
      %v3945 = vunpack.c.l.b16 %v2605
      %v3946 = vunpack.c.h.b16 %v2605
      %v3947 = vunpack.c.l.b16 %v2606
      %v3948 = vunpack.c.h.b16 %v2606
      %v3949 = vunpack.c.l.b16 %v2607
      %v3950 = vunpack.c.h.b16 %v2607
      %v3951 = vunpack.c.l.b16 %v2608
      %v3952 = vunpack.c.h.b16 %v2608
      %v3953 = vunpack.c.l.b16 %v2609
      %v3954 = vunpack.c.h.b16 %v2609
      %v3955 = vunpack.c.l.b16 %v2610
      %v3956 = vunpack.c.h.b16 %v2610
      %v3957 = vunpack.c.l.b16 %v2611
      %v3958 = vunpack.c.h.b16 %v2611
      %v3959 = vunpack.c.l.b16 %v2612
      %v3960 = vunpack.c.h.b16 %v2612
      %v3961 = vunpack.c.l.b16 %v2613
      %v3962 = vunpack.c.h.b16 %v2613
      %v3963 = vunpack.c.l.b16 %v2614
      %v3964 = vunpack.c.h.b16 %v2614
      %v3965 = vunpack.c.l.b16 %v2615
      %v3966 = vunpack.c.h.b16 %v2615
      %v3967 = vunpack.c.l.b16 %v2616
      %v3968 = vunpack.c.h.b16 %v2616
      %v3969 = vunpack.c.l.b16 %v2617
      %v3970 = vunpack.c.h.b16 %v2617
      %v3971 = vunpack.c.l.b16 %v2618
      %v3972 = vunpack.c.h.b16 %v2618
      %v3973 = vunpack.c.l.b16 %v2619
      %v3974 = vunpack.c.h.b16 %v2619
      %v3975 = vunpack.c.l.b16 %v2620
      %v3976 = vunpack.c.h.b16 %v2620
      %v3977 = vunpack.c.l.b16 %v2621
      %v3978 = vunpack.c.h.b16 %v2621
      %v3979 = vunpack.c.l.b16 %v2622
      %v3980 = vunpack.c.h.b16 %v2622
      %v3981 = vunpack.c.l.b16 %v2623
      %v3982 = vunpack.c.h.b16 %v2623
      %v3983 = vunpack.c.l.b16 %v2624
      %v3984 = vunpack.c.h.b16 %v2624
      %v3985 = vunpack.c.l.b16 %v2625
      %v3986 = vunpack.c.h.b16 %v2625
      %v3987 = vunpack.c.l.b16 %v2626
      %v3988 = vunpack.c.h.b16 %v2626
      %v3989 = vunpack.c.l.b16 %v2627
      %v3990 = vunpack.c.h.b16 %v2627
      %v3991 = vunpack.c.l.b16 %v2628
      %v3992 = vunpack.c.h.b16 %v2628
      %v3993 = vunpack.c.l.b16 %v2629
      %v3994 = vunpack.c.h.b16 %v2629
      %v3995 = vunpack.c.l.b16 %v2630
      %v3996 = vunpack.c.h.b16 %v2630
      %v3997 = vunpack.c.l.b16 %v2631
      %v3998 = vunpack.c.h.b16 %v2631
      %v3999 = vunpack.c.l.b16 %v2632
      %v4000 = vunpack.c.h.b16 %v2632
      %v4001 = vunpack.c.l.b16 %v2633
      %v4002 = vunpack.c.h.b16 %v2633
      %v4003 = vunpack.c.l.b16 %v2634
      %v4004 = vunpack.c.h.b16 %v2634
      %v4005 = vunpack.c.l.b16 %v2635
      %v4006 = vunpack.c.h.b16 %v2635
      %v4007 = vunpack.c.l.b16 %v2636
      %v4008 = vunpack.c.h.b16 %v2636
      %v4009 = vunpack.c.l.b16 %v2637
      %v4010 = vunpack.c.h.b16 %v2637
      %v4011 = vunpack.c.l.b16 %v2638
      %v4012 = vunpack.c.h.b16 %v2638
      %v4013 = vunpack.c.l.b16 %v2639
      %v4014 = vunpack.c.h.b16 %v2639
      %v4015 = vpack.c.b16 %v3763, %v3759
      %v4016 = vpack.c.b16 %v3764, %v3760
      %v4017 = vpack.c.b16 %v3765, %v3761
      %v4018 = vpack.c.b16 %v3766, %v3762
      %v4019 = vpack.c.b16 %v3771, %v3767
      %v4020 = vpack.c.b16 %v3772, %v3768
      %v4021 = vpack.c.b16 %v3773, %v3769
      %v4022 = vpack.c.b16 %v3774, %v3770
      %v4023 = vpack.c.b16 %v3779, %v3775
      %v4024 = vpack.c.b16 %v3780, %v3776
      %v4025 = vpack.c.b16 %v3781, %v3777
      %v4026 = vpack.c.b16 %v3782, %v3778
      %v4027 = vpack.c.b16 %v3787, %v3783
      %v4028 = vpack.c.b16 %v3788, %v3784
      %v4029 = vpack.c.b16 %v3789, %v3785
      %v4030 = vpack.c.b16 %v3790, %v3786
      %v4031 = vpack.c.b16 %v3795, %v3791
      %v4032 = vpack.c.b16 %v3796, %v3792
      %v4033 = vpack.c.b16 %v3797, %v3793
      %v4034 = vpack.c.b16 %v3798, %v3794
      %v4035 = vpack.c.b16 %v3803, %v3799
      %v4036 = vpack.c.b16 %v3804, %v3800
      %v4037 = vpack.c.b16 %v3805, %v3801
      %v4038 = vpack.c.b16 %v3806, %v3802
      %v4039 = vpack.c.b16 %v3811, %v3807
      %v4040 = vpack.c.b16 %v3812, %v3808
      %v4041 = vpack.c.b16 %v3813, %v3809
      %v4042 = vpack.c.b16 %v3814, %v3810
      %v4043 = vpack.c.b16 %v3819, %v3815
      %v4044 = vpack.c.b16 %v3820, %v3816
      %v4045 = vpack.c.b16 %v3821, %v3817
      %v4046 = vpack.c.b16 %v3822, %v3818
      %v4047 = vpack.c.b16 %v3827, %v3823
      %v4048 = vpack.c.b16 %v3828, %v3824
      %v4049 = vpack.c.b16 %v3829, %v3825
      %v4050 = vpack.c.b16 %v3830, %v3826
      %v4051 = vpack.c.b16 %v3835, %v3831
      %v4052 = vpack.c.b16 %v3836, %v3832
      %v4053 = vpack.c.b16 %v3837, %v3833
      %v4054 = vpack.c.b16 %v3838, %v3834
      %v4055 = vpack.c.b16 %v3843, %v3839
      %v4056 = vpack.c.b16 %v3844, %v3840
      %v4057 = vpack.c.b16 %v3845, %v3841
      %v4058 = vpack.c.b16 %v3846, %v3842
      %v4059 = vpack.c.b16 %v3851, %v3847
      %v4060 = vpack.c.b16 %v3852, %v3848
      %v4061 = vpack.c.b16 %v3853, %v3849
      %v4062 = vpack.c.b16 %v3854, %v3850
      %v4063 = vpack.c.b16 %v3859, %v3855
      %v4064 = vpack.c.b16 %v3860, %v3856
      %v4065 = vpack.c.b16 %v3861, %v3857
      %v4066 = vpack.c.b16 %v3862, %v3858
      %v4067 = vpack.c.b16 %v3867, %v3863
      %v4068 = vpack.c.b16 %v3868, %v3864
      %v4069 = vpack.c.b16 %v3869, %v3865
      %v4070 = vpack.c.b16 %v3870, %v3866
      %v4071 = vpack.c.b16 %v3875, %v3871
      %v4072 = vpack.c.b16 %v3876, %v3872
      %v4073 = vpack.c.b16 %v3877, %v3873
      %v4074 = vpack.c.b16 %v3878, %v3874
      %v4075 = vpack.c.b16 %v3883, %v3879
      %v4076 = vpack.c.b16 %v3884, %v3880
      %v4077 = vpack.c.b16 %v3885, %v3881
      %v4078 = vpack.c.b16 %v3886, %v3882
      %v4079 = vpack.c.b16 %v3891, %v3887
      %v4080 = vpack.c.b16 %v3892, %v3888
      %v4081 = vpack.c.b16 %v3893, %v3889
      %v4082 = vpack.c.b16 %v3894, %v3890
      %v4083 = vpack.c.b16 %v3899, %v3895
      %v4084 = vpack.c.b16 %v3900, %v3896
      %v4085 = vpack.c.b16 %v3901, %v3897
      %v4086 = vpack.c.b16 %v3902, %v3898
      %v4087 = vpack.c.b16 %v3907, %v3903
      %v4088 = vpack.c.b16 %v3908, %v3904
      %v4089 = vpack.c.b16 %v3909, %v3905
      %v4090 = vpack.c.b16 %v3910, %v3906
      %v4091 = vpack.c.b16 %v3915, %v3911
      %v4092 = vpack.c.b16 %v3916, %v3912
      %v4093 = vpack.c.b16 %v3917, %v3913
      %v4094 = vpack.c.b16 %v3918, %v3914
      %v4095 = vpack.c.b16 %v3923, %v3919
      %v4096 = vpack.c.b16 %v3924, %v3920
      %v4097 = vpack.c.b16 %v3925, %v3921
      %v4098 = vpack.c.b16 %v3926, %v3922
      %v4099 = vpack.c.b16 %v3931, %v3927
      %v4100 = vpack.c.b16 %v3932, %v3928
      %v4101 = vpack.c.b16 %v3933, %v3929
      %v4102 = vpack.c.b16 %v3934, %v3930
      %v4103 = vpack.c.b16 %v3939, %v3935
      %v4104 = vpack.c.b16 %v3940, %v3936
      %v4105 = vpack.c.b16 %v3941, %v3937
      %v4106 = vpack.c.b16 %v3942, %v3938
      %v4107 = vpack.c.b16 %v3947, %v3943
      %v4108 = vpack.c.b16 %v3948, %v3944
      %v4109 = vpack.c.b16 %v3949, %v3945
      %v4110 = vpack.c.b16 %v3950, %v3946
      %v4111 = vpack.c.b16 %v3955, %v3951
      %v4112 = vpack.c.b16 %v3956, %v3952
      %v4113 = vpack.c.b16 %v3957, %v3953
      %v4114 = vpack.c.b16 %v3958, %v3954
      %v4115 = vpack.c.b16 %v3963, %v3959
      %v4116 = vpack.c.b16 %v3964, %v3960
      %v4117 = vpack.c.b16 %v3965, %v3961
      %v4118 = vpack.c.b16 %v3966, %v3962
      %v4119 = vpack.c.b16 %v3971, %v3967
      %v4120 = vpack.c.b16 %v3972, %v3968
      %v4121 = vpack.c.b16 %v3973, %v3969
      %v4122 = vpack.c.b16 %v3974, %v3970
      %v4123 = vpack.c.b16 %v3979, %v3975
      %v4124 = vpack.c.b16 %v3980, %v3976
      %v4125 = vpack.c.b16 %v3981, %v3977
      %v4126 = vpack.c.b16 %v3982, %v3978
      %v4127 = vpack.c.b16 %v3987, %v3983
      %v4128 = vpack.c.b16 %v3988, %v3984
      %v4129 = vpack.c.b16 %v3989, %v3985
      %v4130 = vpack.c.b16 %v3990, %v3986
      %v4131 = vpack.c.b16 %v3995, %v3991
      %v4132 = vpack.c.b16 %v3996, %v3992
      %v4133 = vpack.c.b16 %v3997, %v3993
      %v4134 = vpack.c.b16 %v3998, %v3994
      %v4135 = vpack.c.b16 %v4003, %v3999
      %v4136 = vpack.c.b16 %v4004, %v4000
      %v4137 = vpack.c.b16 %v4005, %v4001
      %v4138 = vpack.c.b16 %v4006, %v4002
      %v4139 = vpack.c.b16 %v4011, %v4007
      %v4140 = vpack.c.b16 %v4012, %v4008
      %v4141 = vpack.c.b16 %v4013, %v4009
      %v4142 = vpack.c.b16 %v4014, %v4010
      %4271 = vmatprep.subr.bf16.mxu0 %v4016
      %4272 = vmatpush1.bf16.msra.mxu0 %v4015
      %4273 = vmatprep.subr.bf16.mxu0 %v4020
      %4274 = vmatpush1.bf16.msra.mxu0 %v4019
      %4275 = vmatprep.subr.bf16.mxu0 %v4024
      %4276 = vmatpush1.bf16.msra.mxu0 %v4023
      %4277 = vmatprep.subr.bf16.mxu0 %v4028
      %4278 = vmatpush1.bf16.msra.mxu0 %v4027
      %4279 = vmatprep.subr.bf16.mxu0 %v4032
      %4280 = vmatpush1.bf16.msra.mxu0 %v4031
      %4281 = vmatprep.subr.bf16.mxu0 %v4036
      %4282 = vmatpush1.bf16.msra.mxu0 %v4035
      %4283 = vmatprep.subr.bf16.mxu0 %v4040
      %4284 = vmatpush1.bf16.msra.mxu0 %v4039
      %4285 = vmatprep.subr.bf16.mxu0 %v4044
      %4286 = vmatpush1.bf16.msra.mxu0 %v4043
      %4287 = vmatprep.subr.bf16.mxu0 %v4048
      %4288 = vmatpush1.bf16.msra.mxu0 %v4047
      %4289 = vmatprep.subr.bf16.mxu0 %v4052
      %4290 = vmatpush1.bf16.msra.mxu0 %v4051
      %4291 = vmatprep.subr.bf16.mxu0 %v4056
      %4292 = vmatpush1.bf16.msra.mxu0 %v4055
      %4293 = vmatprep.subr.bf16.mxu0 %v4060
      %4294 = vmatpush1.bf16.msra.mxu0 %v4059
      %4295 = vmatprep.subr.bf16.mxu0 %v4064
      %4296 = vmatpush1.bf16.msra.mxu0 %v4063
      %4297 = vmatprep.subr.bf16.mxu0 %v4068
      %4298 = vmatpush1.bf16.msra.mxu0 %v4067
      %4299 = vmatprep.subr.bf16.mxu0 %v4072
      %4300 = vmatpush1.bf16.msra.mxu0 %v4071
      %4301 = vmatprep.subr.bf16.mxu0 %v4076
      %4302 = vmatpush1.bf16.msra.mxu0 %v4075
      %4303 = vmatprep.mubr.bf16.mxu0 %v3624
      %4304 = vmatmul.mubr.bf16.gmra.mrb[0].mxu0 %v3623
      %v4305 = vpop.f32.mrb[0].mxu0
      %v4306 = vadd.f32 %v3535, %v4305
      %v4307 = vpop.f32.mrb[0].mxu0
      %v4308 = vadd.f32 %v3537, %v4307
      %v4309 = vpop.f32.mrb[0].mxu0
      %v4310 = vpop.f32.mrb[0].mxu0
      %4311 = vdwg.mxu0
      %4312 = vmatprep.subr.bf16.mxu0 %v4080
      %4313 = vmatpush1.bf16.msra.mxu0 %v4079
      %4314 = vmatprep.subr.bf16.mxu0 %v4084
      %4315 = vmatpush1.bf16.msra.mxu0 %v4083
      %4316 = vmatprep.subr.bf16.mxu0 %v4088
      %4317 = vmatpush1.bf16.msra.mxu0 %v4087
      %4318 = vmatprep.subr.bf16.mxu0 %v4092
      %4319 = vmatpush1.bf16.msra.mxu0 %v4091
      %4320 = vmatprep.subr.bf16.mxu0 %v4096
      %4321 = vmatpush1.bf16.msra.mxu0 %v4095
      %4322 = vmatprep.subr.bf16.mxu0 %v4100
      %4323 = vmatpush1.bf16.msra.mxu0 %v4099
      %4324 = vmatprep.subr.bf16.mxu0 %v4104
      %4325 = vmatpush1.bf16.msra.mxu0 %v4103
      %4326 = vmatprep.subr.bf16.mxu0 %v4108
      %4327 = vmatpush1.bf16.msra.mxu0 %v4107
      %4328 = vmatprep.subr.bf16.mxu0 %v4112
      %4329 = vmatpush1.bf16.msra.mxu0 %v4111
      %4330 = vmatprep.subr.bf16.mxu0 %v4116
      %4331 = vmatpush1.bf16.msra.mxu0 %v4115
      %4332 = vmatprep.subr.bf16.mxu0 %v4120
      %4333 = vmatpush1.bf16.msra.mxu0 %v4119
      %4334 = vmatprep.subr.bf16.mxu0 %v4124
      %4335 = vmatpush1.bf16.msra.mxu0 %v4123
      %4336 = vmatprep.subr.bf16.mxu0 %v4128
      %4337 = vmatpush1.bf16.msra.mxu0 %v4127
      %4338 = vmatprep.subr.bf16.mxu0 %v4132
      %4339 = vmatpush1.bf16.msra.mxu0 %v4131
      %4340 = vmatprep.subr.bf16.mxu0 %v4136
      %4341 = vmatpush1.bf16.msra.mxu0 %v4135
      %4342 = vmatprep.subr.bf16.mxu0 %v4140
      %4343 = vmatpush1.bf16.msra.mxu0 %v4139
      %4344 = vmatprep.mubr.bf16.mxu0 %v3626
      %4345 = vmatmul.mubr.bf16.gmra.mrb[0].mxu0 %v3625
      %v4346 = vpop.f32.mrb[0].mxu0
      %v4347 = vadd.f32 %v4306, %v4346
      %v4348 = vpop.f32.mrb[0].mxu0
      %v4349 = vadd.f32 %v4308, %v4348
      %v4350 = vpop.f32.mrb[0].mxu0
      %v4351 = vpop.f32.mrb[0].mxu0
      %4352 = vdwg.mxu0
      %4353 = vmatprep.subr.bf16.mxu0 %v4018
      %4354 = vmatpush1.bf16.msra.mxu0 %v4017
      %4355 = vmatprep.subr.bf16.mxu0 %v4022
      %4356 = vmatpush1.bf16.msra.mxu0 %v4021
      %4357 = vmatprep.subr.bf16.mxu0 %v4026
      %4358 = vmatpush1.bf16.msra.mxu0 %v4025
      %4359 = vmatprep.subr.bf16.mxu0 %v4030
      %4360 = vmatpush1.bf16.msra.mxu0 %v4029
      %4361 = vmatprep.subr.bf16.mxu0 %v4034
      %4362 = vmatpush1.bf16.msra.mxu0 %v4033
      %4363 = vmatprep.subr.bf16.mxu0 %v4038
      %4364 = vmatpush1.bf16.msra.mxu0 %v4037
      %4365 = vmatprep.subr.bf16.mxu0 %v4042
      %4366 = vmatpush1.bf16.msra.mxu0 %v4041
      %4367 = vmatprep.subr.bf16.mxu0 %v4046
      %4368 = vmatpush1.bf16.msra.mxu0 %v4045
      %4369 = vmatprep.subr.bf16.mxu0 %v4050
      %4370 = vmatpush1.bf16.msra.mxu0 %v4049
      %4371 = vmatprep.subr.bf16.mxu0 %v4054
      %4372 = vmatpush1.bf16.msra.mxu0 %v4053
      %4373 = vmatprep.subr.bf16.mxu0 %v4058
      %4374 = vmatpush1.bf16.msra.mxu0 %v4057
      %4375 = vmatprep.subr.bf16.mxu0 %v4062
      %4376 = vmatpush1.bf16.msra.mxu0 %v4061
      %4377 = vmatprep.subr.bf16.mxu0 %v4066
      %4378 = vmatpush1.bf16.msra.mxu0 %v4065
      %4379 = vmatprep.subr.bf16.mxu0 %v4070
      %4380 = vmatpush1.bf16.msra.mxu0 %v4069
      %4381 = vmatprep.subr.bf16.mxu0 %v4074
      %4382 = vmatpush1.bf16.msra.mxu0 %v4073
      %4383 = vmatprep.subr.bf16.mxu0 %v4078
      %4384 = vmatpush1.bf16.msra.mxu0 %v4077
      %4385 = vmatprep.mubr.bf16.mxu0 %v3624
      %4386 = vmatmul.mubr.bf16.gmra.mrb[0].mxu0 %v3623
      %v4387 = vpop.f32.mrb[0].mxu0
      %v4388 = vadd.f32 %v3617, %v4387
      %v4389 = vpop.f32.mrb[0].mxu0
      %v4390 = vadd.f32 %v3619, %v4389
      %v4391 = vpop.f32.mrb[0].mxu0
      %v4392 = vpop.f32.mrb[0].mxu0
      %4393 = vdwg.mxu0
      %4394 = vmatprep.subr.bf16.mxu0 %v4082
      %4395 = vmatpush1.bf16.msra.mxu0 %v4081
      %4396 = vmatprep.subr.bf16.mxu0 %v4086
      %4397 = vmatpush1.bf16.msra.mxu0 %v4085
      %4398 = vmatprep.subr.bf16.mxu0 %v4090
      %4399 = vmatpush1.bf16.msra.mxu0 %v4089
      %4400 = vmatprep.subr.bf16.mxu0 %v4094
      %4401 = vmatpush1.bf16.msra.mxu0 %v4093
      %4402 = vmatprep.subr.bf16.mxu0 %v4098
      %4403 = vmatpush1.bf16.msra.mxu0 %v4097
      %4404 = vmatprep.subr.bf16.mxu0 %v4102
      %4405 = vmatpush1.bf16.msra.mxu0 %v4101
      %4406 = vmatprep.subr.bf16.mxu0 %v4106
      %4407 = vmatpush1.bf16.msra.mxu0 %v4105
      %4408 = vmatprep.subr.bf16.mxu0 %v4110
      %4409 = vmatpush1.bf16.msra.mxu0 %v4109
      %4410 = vmatprep.subr.bf16.mxu0 %v4114
      %4411 = vmatpush1.bf16.msra.mxu0 %v4113
      %4412 = vmatprep.subr.bf16.mxu0 %v4118
      %4413 = vmatpush1.bf16.msra.mxu0 %v4117
      %4414 = vmatprep.subr.bf16.mxu0 %v4122
      %4415 = vmatpush1.bf16.msra.mxu0 %v4121
      %4416 = vmatprep.subr.bf16.mxu0 %v4126
      %4417 = vmatpush1.bf16.msra.mxu0 %v4125
      %4418 = vmatprep.subr.bf16.mxu0 %v4130
      %4419 = vmatpush1.bf16.msra.mxu0 %v4129
      %4420 = vmatprep.subr.bf16.mxu0 %v4134
      %4421 = vmatpush1.bf16.msra.mxu0 %v4133
      %4422 = vmatprep.subr.bf16.mxu0 %v4138
      %4423 = vmatpush1.bf16.msra.mxu0 %v4137
      %4424 = vmatprep.subr.bf16.mxu0 %v4142
      %4425 = vmatpush1.bf16.msra.mxu0 %v4141
      %4426 = vmatprep.mubr.bf16.mxu0 %v3626
      %4427 = vmatmul.mubr.bf16.gmra.mrb[0].mxu0 %v3625
      %v4428 = vpop.f32.mrb[0].mxu0
      %v4429 = vadd.f32 %v4388, %v4428
      %v4430 = vpop.f32.mrb[0].mxu0
      %v4431 = vadd.f32 %v4390, %v4430
      %v4432 = vpop.f32.mrb[0].mxu0
      %v4433 = vpop.f32.mrb[0].mxu0
      %4434 = vdwg.mxu0
      %v4435 = vld [vmem:[#allocation3] sm:$0xee]
      %v4436 = vld [vmem:[#allocation3 + $0x8] sm:$0xee]
      %s4437 = scalar_lea.vmem %s2, 2048
      %v4438 = vld [vmem:[%s4437] sm:$0xff]
      %v4439 = vld [vmem:[%s4437 + $0x8] sm:$0xff]
      %v4440 = vld [vmem:[%s4437 + $0x10] sm:$0xff]
      %v4441 = vld [vmem:[%s4437 + $0x18] sm:$0xff]
      %v4442 = vld [vmem:[%s4437 + $0x20] sm:$0xff]
      %v4443 = vld [vmem:[%s4437 + $0x28] sm:$0xff]
      %v4444 = vld [vmem:[%s4437 + $0x30] sm:$0xff]
      %v4445 = vld [vmem:[%s4437 + $0x38] sm:$0xff]
      %v4446 = vld [vmem:[%s4437 + $0x40] sm:$0xff]
      %v4447 = vld [vmem:[%s4437 + $0x48] sm:$0xff]
      %v4448 = vld [vmem:[%s4437 + $0x50] sm:$0xff]
      %v4449 = vld [vmem:[%s4437 + $0x58] sm:$0xff]
      %v4450 = vld [vmem:[%s4437 + $0x60] sm:$0xff]
      %v4451 = vld [vmem:[%s4437 + $0x68] sm:$0xff]
      %v4452 = vld [vmem:[%s4437 + $0x70] sm:$0xff]
      %v4453 = vld [vmem:[%s4437 + $0x78] sm:$0xff]
      %v4454 = vld [vmem:[%s4437 + $0x80] sm:$0xff]
      %v4455 = vld [vmem:[%s4437 + $0x88] sm:$0xff]
      %v4456 = vld [vmem:[%s4437 + $0x90] sm:$0xff]
      %v4457 = vld [vmem:[%s4437 + $0x98] sm:$0xff]
      %v4458 = vld [vmem:[%s4437 + $0xa0] sm:$0xff]
      %v4459 = vld [vmem:[%s4437 + $0xa8] sm:$0xff]
      %v4460 = vld [vmem:[%s4437 + $0xb0] sm:$0xff]
      %v4461 = vld [vmem:[%s4437 + $0xb8] sm:$0xff]
      %v4462 = vld [vmem:[%s4437 + $0xc0] sm:$0xff]
      %v4463 = vld [vmem:[%s4437 + $0xc8] sm:$0xff]
      %v4464 = vld [vmem:[%s4437 + $0xd0] sm:$0xff]
      %v4465 = vld [vmem:[%s4437 + $0xd8] sm:$0xff]
      %v4466 = vld [vmem:[%s4437 + $0xe0] sm:$0xff]
      %v4467 = vld [vmem:[%s4437 + $0xe8] sm:$0xff]
      %v4468 = vld [vmem:[%s4437 + $0xf0] sm:$0xff]
      %v4469 = vld [vmem:[%s4437 + $0xf8] sm:$0xff]
      %v4470 = vld [vmem:[%s4437 + $0x100] sm:$0xff]
      %v4471 = vld [vmem:[%s4437 + $0x108] sm:$0xff]
      %v4472 = vld [vmem:[%s4437 + $0x110] sm:$0xff]
      %v4473 = vld [vmem:[%s4437 + $0x118] sm:$0xff]
      %v4474 = vld [vmem:[%s4437 + $0x120] sm:$0xff]
      %v4475 = vld [vmem:[%s4437 + $0x128] sm:$0xff]
      %v4476 = vld [vmem:[%s4437 + $0x130] sm:$0xff]
      %v4477 = vld [vmem:[%s4437 + $0x138] sm:$0xff]
      %v4478 = vld [vmem:[%s4437 + $0x140] sm:$0xff]
      %v4479 = vld [vmem:[%s4437 + $0x148] sm:$0xff]
      %v4480 = vld [vmem:[%s4437 + $0x150] sm:$0xff]
      %v4481 = vld [vmem:[%s4437 + $0x158] sm:$0xff]
      %v4482 = vld [vmem:[%s4437 + $0x160] sm:$0xff]
      %v4483 = vld [vmem:[%s4437 + $0x168] sm:$0xff]
      %v4484 = vld [vmem:[%s4437 + $0x170] sm:$0xff]
      %v4485 = vld [vmem:[%s4437 + $0x178] sm:$0xff]
      %v4486 = vld [vmem:[%s4437 + $0x180] sm:$0xff]
      %v4487 = vld [vmem:[%s4437 + $0x188] sm:$0xff]
      %v4488 = vld [vmem:[%s4437 + $0x190] sm:$0xff]
      %v4489 = vld [vmem:[%s4437 + $0x198] sm:$0xff]
      %v4490 = vld [vmem:[%s4437 + $0x1a0] sm:$0xff]
      %v4491 = vld [vmem:[%s4437 + $0x1a8] sm:$0xff]
      %v4492 = vld [vmem:[%s4437 + $0x1b0] sm:$0xff]
      %v4493 = vld [vmem:[%s4437 + $0x1b8] sm:$0xff]
      %v4494 = vld [vmem:[%s4437 + $0x1c0] sm:$0xff]
      %v4495 = vld [vmem:[%s4437 + $0x1c8] sm:$0xff]
      %v4496 = vld [vmem:[%s4437 + $0x1d0] sm:$0xff]
      %v4497 = vld [vmem:[%s4437 + $0x1d8] sm:$0xff]
      %v4498 = vld [vmem:[%s4437 + $0x1e0] sm:$0xff]
      %v4499 = vld [vmem:[%s4437 + $0x1e8] sm:$0xff]
      %v4500 = vld [vmem:[%s4437 + $0x1f0] sm:$0xff]
      %v4501 = vld [vmem:[%s4437 + $0x1f8] sm:$0xff]
      %v4502 = vld [vmem:[%s4437 + $0x200] sm:$0xff]
      %v4503 = vld [vmem:[%s4437 + $0x208] sm:$0xff]
      %v4504 = vld [vmem:[%s4437 + $0x210] sm:$0xff]
      %v4505 = vld [vmem:[%s4437 + $0x218] sm:$0xff]
      %v4506 = vld [vmem:[%s4437 + $0x220] sm:$0xff]
      %v4507 = vld [vmem:[%s4437 + $0x228] sm:$0xff]
      %v4508 = vld [vmem:[%s4437 + $0x230] sm:$0xff]
      %v4509 = vld [vmem:[%s4437 + $0x238] sm:$0xff]
      %v4510 = vld [vmem:[%s4437 + $0x240] sm:$0xff]
      %v4511 = vld [vmem:[%s4437 + $0x248] sm:$0xff]
      %v4512 = vld [vmem:[%s4437 + $0x250] sm:$0xff]
      %v4513 = vld [vmem:[%s4437 + $0x258] sm:$0xff]
      %v4514 = vld [vmem:[%s4437 + $0x260] sm:$0xff]
      %v4515 = vld [vmem:[%s4437 + $0x268] sm:$0xff]
      %v4516 = vld [vmem:[%s4437 + $0x270] sm:$0xff]
      %v4517 = vld [vmem:[%s4437 + $0x278] sm:$0xff]
      %v4518 = vld [vmem:[%s4437 + $0x280] sm:$0xff]
      %v4519 = vld [vmem:[%s4437 + $0x288] sm:$0xff]
      %v4520 = vld [vmem:[%s4437 + $0x290] sm:$0xff]
      %v4521 = vld [vmem:[%s4437 + $0x298] sm:$0xff]
      %v4522 = vld [vmem:[%s4437 + $0x2a0] sm:$0xff]
      %v4523 = vld [vmem:[%s4437 + $0x2a8] sm:$0xff]
      %v4524 = vld [vmem:[%s4437 + $0x2b0] sm:$0xff]
      %v4525 = vld [vmem:[%s4437 + $0x2b8] sm:$0xff]
      %v4526 = vld [vmem:[%s4437 + $0x2c0] sm:$0xff]
      %v4527 = vld [vmem:[%s4437 + $0x2c8] sm:$0xff]
      %v4528 = vld [vmem:[%s4437 + $0x2d0] sm:$0xff]
      %v4529 = vld [vmem:[%s4437 + $0x2d8] sm:$0xff]
      %v4530 = vld [vmem:[%s4437 + $0x2e0] sm:$0xff]
      %v4531 = vld [vmem:[%s4437 + $0x2e8] sm:$0xff]
      %v4532 = vld [vmem:[%s4437 + $0x2f0] sm:$0xff]
      %v4533 = vld [vmem:[%s4437 + $0x2f8] sm:$0xff]
      %v4534 = vld [vmem:[%s4437 + $0x300] sm:$0xff]
      %v4535 = vld [vmem:[%s4437 + $0x308] sm:$0xff]
      %v4536 = vld [vmem:[%s4437 + $0x310] sm:$0xff]
      %v4537 = vld [vmem:[%s4437 + $0x318] sm:$0xff]
      %v4538 = vld [vmem:[%s4437 + $0x320] sm:$0xff]
      %v4539 = vld [vmem:[%s4437 + $0x328] sm:$0xff]
      %v4540 = vld [vmem:[%s4437 + $0x330] sm:$0xff]
      %v4541 = vld [vmem:[%s4437 + $0x338] sm:$0xff]
      %v4542 = vld [vmem:[%s4437 + $0x340] sm:$0xff]
      %v4543 = vld [vmem:[%s4437 + $0x348] sm:$0xff]
      %v4544 = vld [vmem:[%s4437 + $0x350] sm:$0xff]
      %v4545 = vld [vmem:[%s4437 + $0x358] sm:$0xff]
      %v4546 = vld [vmem:[%s4437 + $0x360] sm:$0xff]
      %v4547 = vld [vmem:[%s4437 + $0x368] sm:$0xff]
      %v4548 = vld [vmem:[%s4437 + $0x370] sm:$0xff]
      %v4549 = vld [vmem:[%s4437 + $0x378] sm:$0xff]
      %v4550 = vld [vmem:[%s4437 + $0x380] sm:$0xff]
      %v4551 = vld [vmem:[%s4437 + $0x388] sm:$0xff]
      %v4552 = vld [vmem:[%s4437 + $0x390] sm:$0xff]
      %v4553 = vld [vmem:[%s4437 + $0x398] sm:$0xff]
      %v4554 = vld [vmem:[%s4437 + $0x3a0] sm:$0xff]
      %v4555 = vld [vmem:[%s4437 + $0x3a8] sm:$0xff]
      %v4556 = vld [vmem:[%s4437 + $0x3b0] sm:$0xff]
      %v4557 = vld [vmem:[%s4437 + $0x3b8] sm:$0xff]
      %v4558 = vld [vmem:[%s4437 + $0x3c0] sm:$0xff]
      %v4559 = vld [vmem:[%s4437 + $0x3c8] sm:$0xff]
      %v4560 = vld [vmem:[%s4437 + $0x3d0] sm:$0xff]
      %v4561 = vld [vmem:[%s4437 + $0x3d8] sm:$0xff]
      %v4562 = vld [vmem:[%s4437 + $0x3e0] sm:$0xff]
      %v4563 = vld [vmem:[%s4437 + $0x3e8] sm:$0xff]
      %v4564 = vld [vmem:[%s4437 + $0x3f0] sm:$0xff]
      %v4565 = vld [vmem:[%s4437 + $0x3f8] sm:$0xff]
      %v4568 = vunpack.c.l.b16 %v4435
      %v4569 = vunpack.c.h.b16 %v4435
      %v4570 = vunpack.c.l.b16 %v4436
      %v4571 = vunpack.c.h.b16 %v4436
      %v4572 = vpack.c.b16 %v2779, %v4568
      %v4573 = vpack.c.b16 %v2780, %v4569
      %v4574 = vpack.c.b16 %v2781, %v4570
      %v4575 = vpack.c.b16 %v2782, %v4571
      %v4576 = vrot.slane %v4572, 1
      %v4577 = vrot.slane %v4573, 1
      %v4578 = vrot.slane %v4574, 1
      %v4579 = vrot.slane %v4575, 1
      %v4712 = vunpack.c.l.b16 %v4438
      %v4713 = vunpack.c.h.b16 %v4438
      %v4714 = vunpack.c.l.b16 %v4439
      %v4715 = vunpack.c.h.b16 %v4439
      %v4716 = vunpack.c.l.b16 %v4440
      %v4717 = vunpack.c.h.b16 %v4440
      %v4718 = vunpack.c.l.b16 %v4441
      %v4719 = vunpack.c.h.b16 %v4441
      %v4720 = vunpack.c.l.b16 %v4442
      %v4721 = vunpack.c.h.b16 %v4442
      %v4722 = vunpack.c.l.b16 %v4443
      %v4723 = vunpack.c.h.b16 %v4443
      %v4724 = vunpack.c.l.b16 %v4444
      %v4725 = vunpack.c.h.b16 %v4444
      %v4726 = vunpack.c.l.b16 %v4445
      %v4727 = vunpack.c.h.b16 %v4445
      %v4728 = vunpack.c.l.b16 %v4446
      %v4729 = vunpack.c.h.b16 %v4446
      %v4730 = vunpack.c.l.b16 %v4447
      %v4731 = vunpack.c.h.b16 %v4447
      %v4732 = vunpack.c.l.b16 %v4448
      %v4733 = vunpack.c.h.b16 %v4448
      %v4734 = vunpack.c.l.b16 %v4449
      %v4735 = vunpack.c.h.b16 %v4449
      %v4736 = vunpack.c.l.b16 %v4450
      %v4737 = vunpack.c.h.b16 %v4450
      %v4738 = vunpack.c.l.b16 %v4451
      %v4739 = vunpack.c.h.b16 %v4451
      %v4740 = vunpack.c.l.b16 %v4452
      %v4741 = vunpack.c.h.b16 %v4452
      %v4742 = vunpack.c.l.b16 %v4453
      %v4743 = vunpack.c.h.b16 %v4453
      %v4744 = vunpack.c.l.b16 %v4454
      %v4745 = vunpack.c.h.b16 %v4454
      %v4746 = vunpack.c.l.b16 %v4455
      %v4747 = vunpack.c.h.b16 %v4455
      %v4748 = vunpack.c.l.b16 %v4456
      %v4749 = vunpack.c.h.b16 %v4456
      %v4750 = vunpack.c.l.b16 %v4457
      %v4751 = vunpack.c.h.b16 %v4457
      %v4752 = vunpack.c.l.b16 %v4458
      %v4753 = vunpack.c.h.b16 %v4458
      %v4754 = vunpack.c.l.b16 %v4459
      %v4755 = vunpack.c.h.b16 %v4459
      %v4756 = vunpack.c.l.b16 %v4460
      %v4757 = vunpack.c.h.b16 %v4460
      %v4758 = vunpack.c.l.b16 %v4461
      %v4759 = vunpack.c.h.b16 %v4461
      %v4760 = vunpack.c.l.b16 %v4462
      %v4761 = vunpack.c.h.b16 %v4462
      %v4762 = vunpack.c.l.b16 %v4463
      %v4763 = vunpack.c.h.b16 %v4463
      %v4764 = vunpack.c.l.b16 %v4464
      %v4765 = vunpack.c.h.b16 %v4464
      %v4766 = vunpack.c.l.b16 %v4465
      %v4767 = vunpack.c.h.b16 %v4465
      %v4768 = vunpack.c.l.b16 %v4466
      %v4769 = vunpack.c.h.b16 %v4466
      %v4770 = vunpack.c.l.b16 %v4467
      %v4771 = vunpack.c.h.b16 %v4467
      %v4772 = vunpack.c.l.b16 %v4468
      %v4773 = vunpack.c.h.b16 %v4468
      %v4774 = vunpack.c.l.b16 %v4469
      %v4775 = vunpack.c.h.b16 %v4469
      %v4776 = vunpack.c.l.b16 %v4470
      %v4777 = vunpack.c.h.b16 %v4470
      %v4778 = vunpack.c.l.b16 %v4471
      %v4779 = vunpack.c.h.b16 %v4471
      %v4780 = vunpack.c.l.b16 %v4472
      %v4781 = vunpack.c.h.b16 %v4472
      %v4782 = vunpack.c.l.b16 %v4473
      %v4783 = vunpack.c.h.b16 %v4473
      %v4784 = vunpack.c.l.b16 %v4474
      %v4785 = vunpack.c.h.b16 %v4474
      %v4786 = vunpack.c.l.b16 %v4475
      %v4787 = vunpack.c.h.b16 %v4475
      %v4788 = vunpack.c.l.b16 %v4476
      %v4789 = vunpack.c.h.b16 %v4476
      %v4790 = vunpack.c.l.b16 %v4477
      %v4791 = vunpack.c.h.b16 %v4477
      %v4792 = vunpack.c.l.b16 %v4478
      %v4793 = vunpack.c.h.b16 %v4478
      %v4794 = vunpack.c.l.b16 %v4479
      %v4795 = vunpack.c.h.b16 %v4479
      %v4796 = vunpack.c.l.b16 %v4480
      %v4797 = vunpack.c.h.b16 %v4480
      %v4798 = vunpack.c.l.b16 %v4481
      %v4799 = vunpack.c.h.b16 %v4481
      %v4800 = vunpack.c.l.b16 %v4482
      %v4801 = vunpack.c.h.b16 %v4482
      %v4802 = vunpack.c.l.b16 %v4483
      %v4803 = vunpack.c.h.b16 %v4483
      %v4804 = vunpack.c.l.b16 %v4484
      %v4805 = vunpack.c.h.b16 %v4484
      %v4806 = vunpack.c.l.b16 %v4485
      %v4807 = vunpack.c.h.b16 %v4485
      %v4808 = vunpack.c.l.b16 %v4486
      %v4809 = vunpack.c.h.b16 %v4486
      %v4810 = vunpack.c.l.b16 %v4487
      %v4811 = vunpack.c.h.b16 %v4487
      %v4812 = vunpack.c.l.b16 %v4488
      %v4813 = vunpack.c.h.b16 %v4488
      %v4814 = vunpack.c.l.b16 %v4489
      %v4815 = vunpack.c.h.b16 %v4489
      %v4816 = vunpack.c.l.b16 %v4490
      %v4817 = vunpack.c.h.b16 %v4490
      %v4818 = vunpack.c.l.b16 %v4491
      %v4819 = vunpack.c.h.b16 %v4491
      %v4820 = vunpack.c.l.b16 %v4492
      %v4821 = vunpack.c.h.b16 %v4492
      %v4822 = vunpack.c.l.b16 %v4493
      %v4823 = vunpack.c.h.b16 %v4493
      %v4824 = vunpack.c.l.b16 %v4494
      %v4825 = vunpack.c.h.b16 %v4494
      %v4826 = vunpack.c.l.b16 %v4495
      %v4827 = vunpack.c.h.b16 %v4495
      %v4828 = vunpack.c.l.b16 %v4496
      %v4829 = vunpack.c.h.b16 %v4496
      %v4830 = vunpack.c.l.b16 %v4497
      %v4831 = vunpack.c.h.b16 %v4497
      %v4832 = vunpack.c.l.b16 %v4498
      %v4833 = vunpack.c.h.b16 %v4498
      %v4834 = vunpack.c.l.b16 %v4499
      %v4835 = vunpack.c.h.b16 %v4499
      %v4836 = vunpack.c.l.b16 %v4500
      %v4837 = vunpack.c.h.b16 %v4500
      %v4838 = vunpack.c.l.b16 %v4501
      %v4839 = vunpack.c.h.b16 %v4501
      %v4840 = vunpack.c.l.b16 %v4502
      %v4841 = vunpack.c.h.b16 %v4502
      %v4842 = vunpack.c.l.b16 %v4503
      %v4843 = vunpack.c.h.b16 %v4503
      %v4844 = vunpack.c.l.b16 %v4504
      %v4845 = vunpack.c.h.b16 %v4504
      %v4846 = vunpack.c.l.b16 %v4505
      %v4847 = vunpack.c.h.b16 %v4505
      %v4848 = vunpack.c.l.b16 %v4506
      %v4849 = vunpack.c.h.b16 %v4506
      %v4850 = vunpack.c.l.b16 %v4507
      %v4851 = vunpack.c.h.b16 %v4507
      %v4852 = vunpack.c.l.b16 %v4508
      %v4853 = vunpack.c.h.b16 %v4508
      %v4854 = vunpack.c.l.b16 %v4509
      %v4855 = vunpack.c.h.b16 %v4509
      %v4856 = vunpack.c.l.b16 %v4510
      %v4857 = vunpack.c.h.b16 %v4510
      %v4858 = vunpack.c.l.b16 %v4511
      %v4859 = vunpack.c.h.b16 %v4511
      %v4860 = vunpack.c.l.b16 %v4512
      %v4861 = vunpack.c.h.b16 %v4512
      %v4862 = vunpack.c.l.b16 %v4513
      %v4863 = vunpack.c.h.b16 %v4513
      %v4864 = vunpack.c.l.b16 %v4514
      %v4865 = vunpack.c.h.b16 %v4514
      %v4866 = vunpack.c.l.b16 %v4515
      %v4867 = vunpack.c.h.b16 %v4515
      %v4868 = vunpack.c.l.b16 %v4516
      %v4869 = vunpack.c.h.b16 %v4516
      %v4870 = vunpack.c.l.b16 %v4517
      %v4871 = vunpack.c.h.b16 %v4517
      %v4872 = vunpack.c.l.b16 %v4518
      %v4873 = vunpack.c.h.b16 %v4518
      %v4874 = vunpack.c.l.b16 %v4519
      %v4875 = vunpack.c.h.b16 %v4519
      %v4876 = vunpack.c.l.b16 %v4520
      %v4877 = vunpack.c.h.b16 %v4520
      %v4878 = vunpack.c.l.b16 %v4521
      %v4879 = vunpack.c.h.b16 %v4521
      %v4880 = vunpack.c.l.b16 %v4522
      %v4881 = vunpack.c.h.b16 %v4522
      %v4882 = vunpack.c.l.b16 %v4523
      %v4883 = vunpack.c.h.b16 %v4523
      %v4884 = vunpack.c.l.b16 %v4524
      %v4885 = vunpack.c.h.b16 %v4524
      %v4886 = vunpack.c.l.b16 %v4525
      %v4887 = vunpack.c.h.b16 %v4525
      %v4888 = vunpack.c.l.b16 %v4526
      %v4889 = vunpack.c.h.b16 %v4526
      %v4890 = vunpack.c.l.b16 %v4527
      %v4891 = vunpack.c.h.b16 %v4527
      %v4892 = vunpack.c.l.b16 %v4528
      %v4893 = vunpack.c.h.b16 %v4528
      %v4894 = vunpack.c.l.b16 %v4529
      %v4895 = vunpack.c.h.b16 %v4529
      %v4896 = vunpack.c.l.b16 %v4530
      %v4897 = vunpack.c.h.b16 %v4530
      %v4898 = vunpack.c.l.b16 %v4531
      %v4899 = vunpack.c.h.b16 %v4531
      %v4900 = vunpack.c.l.b16 %v4532
      %v4901 = vunpack.c.h.b16 %v4532
      %v4902 = vunpack.c.l.b16 %v4533
      %v4903 = vunpack.c.h.b16 %v4533
      %v4904 = vunpack.c.l.b16 %v4534
      %v4905 = vunpack.c.h.b16 %v4534
      %v4906 = vunpack.c.l.b16 %v4535
      %v4907 = vunpack.c.h.b16 %v4535
      %v4908 = vunpack.c.l.b16 %v4536
      %v4909 = vunpack.c.h.b16 %v4536
      %v4910 = vunpack.c.l.b16 %v4537
      %v4911 = vunpack.c.h.b16 %v4537
      %v4912 = vunpack.c.l.b16 %v4538
      %v4913 = vunpack.c.h.b16 %v4538
      %v4914 = vunpack.c.l.b16 %v4539
      %v4915 = vunpack.c.h.b16 %v4539
      %v4916 = vunpack.c.l.b16 %v4540
      %v4917 = vunpack.c.h.b16 %v4540
      %v4918 = vunpack.c.l.b16 %v4541
      %v4919 = vunpack.c.h.b16 %v4541
      %v4920 = vunpack.c.l.b16 %v4542
      %v4921 = vunpack.c.h.b16 %v4542
      %v4922 = vunpack.c.l.b16 %v4543
      %v4923 = vunpack.c.h.b16 %v4543
      %v4924 = vunpack.c.l.b16 %v4544
      %v4925 = vunpack.c.h.b16 %v4544
      %v4926 = vunpack.c.l.b16 %v4545
      %v4927 = vunpack.c.h.b16 %v4545
      %v4928 = vunpack.c.l.b16 %v4546
      %v4929 = vunpack.c.h.b16 %v4546
      %v4930 = vunpack.c.l.b16 %v4547
      %v4931 = vunpack.c.h.b16 %v4547
      %v4932 = vunpack.c.l.b16 %v4548
      %v4933 = vunpack.c.h.b16 %v4548
      %v4934 = vunpack.c.l.b16 %v4549
      %v4935 = vunpack.c.h.b16 %v4549
      %v4936 = vunpack.c.l.b16 %v4550
      %v4937 = vunpack.c.h.b16 %v4550
      %v4938 = vunpack.c.l.b16 %v4551
      %v4939 = vunpack.c.h.b16 %v4551
      %v4940 = vunpack.c.l.b16 %v4552
      %v4941 = vunpack.c.h.b16 %v4552
      %v4942 = vunpack.c.l.b16 %v4553
      %v4943 = vunpack.c.h.b16 %v4553
      %v4944 = vunpack.c.l.b16 %v4554
      %v4945 = vunpack.c.h.b16 %v4554
      %v4946 = vunpack.c.l.b16 %v4555
      %v4947 = vunpack.c.h.b16 %v4555
      %v4948 = vunpack.c.l.b16 %v4556
      %v4949 = vunpack.c.h.b16 %v4556
      %v4950 = vunpack.c.l.b16 %v4557
      %v4951 = vunpack.c.h.b16 %v4557
      %v4952 = vunpack.c.l.b16 %v4558
      %v4953 = vunpack.c.h.b16 %v4558
      %v4954 = vunpack.c.l.b16 %v4559
      %v4955 = vunpack.c.h.b16 %v4559
      %v4956 = vunpack.c.l.b16 %v4560
      %v4957 = vunpack.c.h.b16 %v4560
      %v4958 = vunpack.c.l.b16 %v4561
      %v4959 = vunpack.c.h.b16 %v4561
      %v4960 = vunpack.c.l.b16 %v4562
      %v4961 = vunpack.c.h.b16 %v4562
      %v4962 = vunpack.c.l.b16 %v4563
      %v4963 = vunpack.c.h.b16 %v4563
      %v4964 = vunpack.c.l.b16 %v4564
      %v4965 = vunpack.c.h.b16 %v4564
      %v4966 = vunpack.c.l.b16 %v4565
      %v4967 = vunpack.c.h.b16 %v4565
      %v4968 = vpack.c.b16 %v4716, %v4712
      %v4969 = vpack.c.b16 %v4717, %v4713
      %v4970 = vpack.c.b16 %v4718, %v4714
      %v4971 = vpack.c.b16 %v4719, %v4715
      %v4972 = vpack.c.b16 %v4724, %v4720
      %v4973 = vpack.c.b16 %v4725, %v4721
      %v4974 = vpack.c.b16 %v4726, %v4722
      %v4975 = vpack.c.b16 %v4727, %v4723
      %v4976 = vpack.c.b16 %v4732, %v4728
      %v4977 = vpack.c.b16 %v4733, %v4729
      %v4978 = vpack.c.b16 %v4734, %v4730
      %v4979 = vpack.c.b16 %v4735, %v4731
      %v4980 = vpack.c.b16 %v4740, %v4736
      %v4981 = vpack.c.b16 %v4741, %v4737
      %v4982 = vpack.c.b16 %v4742, %v4738
      %v4983 = vpack.c.b16 %v4743, %v4739
      %v4984 = vpack.c.b16 %v4748, %v4744
      %v4985 = vpack.c.b16 %v4749, %v4745
      %v4986 = vpack.c.b16 %v4750, %v4746
      %v4987 = vpack.c.b16 %v4751, %v4747
      %v4988 = vpack.c.b16 %v4756, %v4752
      %v4989 = vpack.c.b16 %v4757, %v4753
      %v4990 = vpack.c.b16 %v4758, %v4754
      %v4991 = vpack.c.b16 %v4759, %v4755
      %v4992 = vpack.c.b16 %v4764, %v4760
      %v4993 = vpack.c.b16 %v4765, %v4761
      %v4994 = vpack.c.b16 %v4766, %v4762
      %v4995 = vpack.c.b16 %v4767, %v4763
      %v4996 = vpack.c.b16 %v4772, %v4768
      %v4997 = vpack.c.b16 %v4773, %v4769
      %v4998 = vpack.c.b16 %v4774, %v4770
      %v4999 = vpack.c.b16 %v4775, %v4771
      %v5000 = vpack.c.b16 %v4780, %v4776
      %v5001 = vpack.c.b16 %v4781, %v4777
      %v5002 = vpack.c.b16 %v4782, %v4778
      %v5003 = vpack.c.b16 %v4783, %v4779
      %v5004 = vpack.c.b16 %v4788, %v4784
      %v5005 = vpack.c.b16 %v4789, %v4785
      %v5006 = vpack.c.b16 %v4790, %v4786
      %v5007 = vpack.c.b16 %v4791, %v4787
      %v5008 = vpack.c.b16 %v4796, %v4792
      %v5009 = vpack.c.b16 %v4797, %v4793
      %v5010 = vpack.c.b16 %v4798, %v4794
      %v5011 = vpack.c.b16 %v4799, %v4795
      %v5012 = vpack.c.b16 %v4804, %v4800
      %v5013 = vpack.c.b16 %v4805, %v4801
      %v5014 = vpack.c.b16 %v4806, %v4802
      %v5015 = vpack.c.b16 %v4807, %v4803
      %v5016 = vpack.c.b16 %v4812, %v4808
      %v5017 = vpack.c.b16 %v4813, %v4809
      %v5018 = vpack.c.b16 %v4814, %v4810
      %v5019 = vpack.c.b16 %v4815, %v4811
      %v5020 = vpack.c.b16 %v4820, %v4816
      %v5021 = vpack.c.b16 %v4821, %v4817
      %v5022 = vpack.c.b16 %v4822, %v4818
      %v5023 = vpack.c.b16 %v4823, %v4819
      %v5024 = vpack.c.b16 %v4828, %v4824
      %v5025 = vpack.c.b16 %v4829, %v4825
      %v5026 = vpack.c.b16 %v4830, %v4826
      %v5027 = vpack.c.b16 %v4831, %v4827
      %v5028 = vpack.c.b16 %v4836, %v4832
      %v5029 = vpack.c.b16 %v4837, %v4833
      %v5030 = vpack.c.b16 %v4838, %v4834
      %v5031 = vpack.c.b16 %v4839, %v4835
      %v5032 = vpack.c.b16 %v4844, %v4840
      %v5033 = vpack.c.b16 %v4845, %v4841
      %v5034 = vpack.c.b16 %v4846, %v4842
      %v5035 = vpack.c.b16 %v4847, %v4843
      %v5036 = vpack.c.b16 %v4852, %v4848
      %v5037 = vpack.c.b16 %v4853, %v4849
      %v5038 = vpack.c.b16 %v4854, %v4850
      %v5039 = vpack.c.b16 %v4855, %v4851
      %v5040 = vpack.c.b16 %v4860, %v4856
      %v5041 = vpack.c.b16 %v4861, %v4857
      %v5042 = vpack.c.b16 %v4862, %v4858
      %v5043 = vpack.c.b16 %v4863, %v4859
      %v5044 = vpack.c.b16 %v4868, %v4864
      %v5045 = vpack.c.b16 %v4869, %v4865
      %v5046 = vpack.c.b16 %v4870, %v4866
      %v5047 = vpack.c.b16 %v4871, %v4867
      %v5048 = vpack.c.b16 %v4876, %v4872
      %v5049 = vpack.c.b16 %v4877, %v4873
      %v5050 = vpack.c.b16 %v4878, %v4874
      %v5051 = vpack.c.b16 %v4879, %v4875
      %v5052 = vpack.c.b16 %v4884, %v4880
      %v5053 = vpack.c.b16 %v4885, %v4881
      %v5054 = vpack.c.b16 %v4886, %v4882
      %v5055 = vpack.c.b16 %v4887, %v4883
      %v5056 = vpack.c.b16 %v4892, %v4888
      %v5057 = vpack.c.b16 %v4893, %v4889
      %v5058 = vpack.c.b16 %v4894, %v4890
      %v5059 = vpack.c.b16 %v4895, %v4891
      %v5060 = vpack.c.b16 %v4900, %v4896
      %v5061 = vpack.c.b16 %v4901, %v4897
      %v5062 = vpack.c.b16 %v4902, %v4898
      %v5063 = vpack.c.b16 %v4903, %v4899
      %v5064 = vpack.c.b16 %v4908, %v4904
      %v5065 = vpack.c.b16 %v4909, %v4905
      %v5066 = vpack.c.b16 %v4910, %v4906
      %v5067 = vpack.c.b16 %v4911, %v4907
      %v5068 = vpack.c.b16 %v4916, %v4912
      %v5069 = vpack.c.b16 %v4917, %v4913
      %v5070 = vpack.c.b16 %v4918, %v4914
      %v5071 = vpack.c.b16 %v4919, %v4915
      %v5072 = vpack.c.b16 %v4924, %v4920
      %v5073 = vpack.c.b16 %v4925, %v4921
      %v5074 = vpack.c.b16 %v4926, %v4922
      %v5075 = vpack.c.b16 %v4927, %v4923
      %v5076 = vpack.c.b16 %v4932, %v4928
      %v5077 = vpack.c.b16 %v4933, %v4929
      %v5078 = vpack.c.b16 %v4934, %v4930
      %v5079 = vpack.c.b16 %v4935, %v4931
      %v5080 = vpack.c.b16 %v4940, %v4936
      %v5081 = vpack.c.b16 %v4941, %v4937
      %v5082 = vpack.c.b16 %v4942, %v4938
      %v5083 = vpack.c.b16 %v4943, %v4939
      %v5084 = vpack.c.b16 %v4948, %v4944
      %v5085 = vpack.c.b16 %v4949, %v4945
      %v5086 = vpack.c.b16 %v4950, %v4946
      %v5087 = vpack.c.b16 %v4951, %v4947
      %v5088 = vpack.c.b16 %v4956, %v4952
      %v5089 = vpack.c.b16 %v4957, %v4953
      %v5090 = vpack.c.b16 %v4958, %v4954
      %v5091 = vpack.c.b16 %v4959, %v4955
      %v5092 = vpack.c.b16 %v4964, %v4960
      %v5093 = vpack.c.b16 %v4965, %v4961
      %v5094 = vpack.c.b16 %v4966, %v4962
      %v5095 = vpack.c.b16 %v4967, %v4963
      %5224 = vmatprep.subr.bf16.mxu0 %v4969
      %5225 = vmatpush1.bf16.msra.mxu0 %v4968
      %5226 = vmatprep.subr.bf16.mxu0 %v4973
      %5227 = vmatpush1.bf16.msra.mxu0 %v4972
      %5228 = vmatprep.subr.bf16.mxu0 %v4977
      %5229 = vmatpush1.bf16.msra.mxu0 %v4976
      %5230 = vmatprep.subr.bf16.mxu0 %v4981
      %5231 = vmatpush1.bf16.msra.mxu0 %v4980
      %5232 = vmatprep.subr.bf16.mxu0 %v4985
      %5233 = vmatpush1.bf16.msra.mxu0 %v4984
      %5234 = vmatprep.subr.bf16.mxu0 %v4989
      %5235 = vmatpush1.bf16.msra.mxu0 %v4988
      %5236 = vmatprep.subr.bf16.mxu0 %v4993
      %5237 = vmatpush1.bf16.msra.mxu0 %v4992
      %5238 = vmatprep.subr.bf16.mxu0 %v4997
      %5239 = vmatpush1.bf16.msra.mxu0 %v4996
      %5240 = vmatprep.subr.bf16.mxu0 %v5001
      %5241 = vmatpush1.bf16.msra.mxu0 %v5000
      %5242 = vmatprep.subr.bf16.mxu0 %v5005
      %5243 = vmatpush1.bf16.msra.mxu0 %v5004
      %5244 = vmatprep.subr.bf16.mxu0 %v5009
      %5245 = vmatpush1.bf16.msra.mxu0 %v5008
      %5246 = vmatprep.subr.bf16.mxu0 %v5013
      %5247 = vmatpush1.bf16.msra.mxu0 %v5012
      %5248 = vmatprep.subr.bf16.mxu0 %v5017
      %5249 = vmatpush1.bf16.msra.mxu0 %v5016
      %5250 = vmatprep.subr.bf16.mxu0 %v5021
      %5251 = vmatpush1.bf16.msra.mxu0 %v5020
      %5252 = vmatprep.subr.bf16.mxu0 %v5025
      %5253 = vmatpush1.bf16.msra.mxu0 %v5024
      %5254 = vmatprep.subr.bf16.mxu0 %v5029
      %5255 = vmatpush1.bf16.msra.mxu0 %v5028
      %5256 = vmatprep.mubr.bf16.mxu0 %v4577
      %5257 = vmatmul.mubr.bf16.gmra.mrb[0].mxu0 %v4576
      %v5258 = vpop.f32.mrb[0].mxu0
      %v5259 = vadd.f32 0.0, %v5258
      %v5260 = vpop.f32.mrb[0].mxu0
      %v5261 = vadd.f32 0.0, %v5260
      %v5262 = vpop.f32.mrb[0].mxu0
      %v5263 = vpop.f32.mrb[0].mxu0
      %5264 = vdwg.mxu0
      %5265 = vmatprep.subr.bf16.mxu0 %v5033
      %5266 = vmatpush1.bf16.msra.mxu0 %v5032
      %5267 = vmatprep.subr.bf16.mxu0 %v5037
      %5268 = vmatpush1.bf16.msra.mxu0 %v5036
      %5269 = vmatprep.subr.bf16.mxu0 %v5041
      %5270 = vmatpush1.bf16.msra.mxu0 %v5040
      %5271 = vmatprep.subr.bf16.mxu0 %v5045
      %5272 = vmatpush1.bf16.msra.mxu0 %v5044
      %5273 = vmatprep.subr.bf16.mxu0 %v5049
      %5274 = vmatpush1.bf16.msra.mxu0 %v5048
      %5275 = vmatprep.subr.bf16.mxu0 %v5053
      %5276 = vmatpush1.bf16.msra.mxu0 %v5052
      %5277 = vmatprep.subr.bf16.mxu0 %v5057
      %5278 = vmatpush1.bf16.msra.mxu0 %v5056
      %5279 = vmatprep.subr.bf16.mxu0 %v5061
      %5280 = vmatpush1.bf16.msra.mxu0 %v5060
      %5281 = vmatprep.subr.bf16.mxu0 %v5065
      %5282 = vmatpush1.bf16.msra.mxu0 %v5064
      %5283 = vmatprep.subr.bf16.mxu0 %v5069
      %5284 = vmatpush1.bf16.msra.mxu0 %v5068
      %5285 = vmatprep.subr.bf16.mxu0 %v5073
      %5286 = vmatpush1.bf16.msra.mxu0 %v5072
      %5287 = vmatprep.subr.bf16.mxu0 %v5077
      %5288 = vmatpush1.bf16.msra.mxu0 %v5076
      %5289 = vmatprep.subr.bf16.mxu0 %v5081
      %5290 = vmatpush1.bf16.msra.mxu0 %v5080
      %5291 = vmatprep.subr.bf16.mxu0 %v5085
      %5292 = vmatpush1.bf16.msra.mxu0 %v5084
      %5293 = vmatprep.subr.bf16.mxu0 %v5089
      %5294 = vmatpush1.bf16.msra.mxu0 %v5088
      %5295 = vmatprep.subr.bf16.mxu0 %v5093
      %5296 = vmatpush1.bf16.msra.mxu0 %v5092
      %5297 = vmatprep.mubr.bf16.mxu0 %v4579
      %5298 = vmatmul.mubr.bf16.gmra.mrb[0].mxu0 %v4578
      %v5299 = vpop.f32.mrb[0].mxu0
      %v5300 = vadd.f32 %v5259, %v5299
      %v5301 = vpop.f32.mrb[0].mxu0
      %v5302 = vadd.f32 %v5261, %v5301
      %v5303 = vpop.f32.mrb[0].mxu0
      %v5304 = vpop.f32.mrb[0].mxu0
      %5305 = vdwg.mxu0
      %5306 = vmatprep.subr.bf16.mxu0 %v4971
      %5307 = vmatpush1.bf16.msra.mxu0 %v4970
      %5308 = vmatprep.subr.bf16.mxu0 %v4975
      %5309 = vmatpush1.bf16.msra.mxu0 %v4974
      %5310 = vmatprep.subr.bf16.mxu0 %v4979
      %5311 = vmatpush1.bf16.msra.mxu0 %v4978
      %5312 = vmatprep.subr.bf16.mxu0 %v4983
      %5313 = vmatpush1.bf16.msra.mxu0 %v4982
      %5314 = vmatprep.subr.bf16.mxu0 %v4987
      %5315 = vmatpush1.bf16.msra.mxu0 %v4986
      %5316 = vmatprep.subr.bf16.mxu0 %v4991
      %5317 = vmatpush1.bf16.msra.mxu0 %v4990
      %5318 = vmatprep.subr.bf16.mxu0 %v4995
      %5319 = vmatpush1.bf16.msra.mxu0 %v4994
      %5320 = vmatprep.subr.bf16.mxu0 %v4999
      %5321 = vmatpush1.bf16.msra.mxu0 %v4998
      %5322 = vmatprep.subr.bf16.mxu0 %v5003
      %5323 = vmatpush1.bf16.msra.mxu0 %v5002
      %5324 = vmatprep.subr.bf16.mxu0 %v5007
      %5325 = vmatpush1.bf16.msra.mxu0 %v5006
      %5326 = vmatprep.subr.bf16.mxu0 %v5011
      %5327 = vmatpush1.bf16.msra.mxu0 %v5010
      %5328 = vmatprep.subr.bf16.mxu0 %v5015
      %5329 = vmatpush1.bf16.msra.mxu0 %v5014
      %5330 = vmatprep.subr.bf16.mxu0 %v5019
      %5331 = vmatpush1.bf16.msra.mxu0 %v5018
      %5332 = vmatprep.subr.bf16.mxu0 %v5023
      %5333 = vmatpush1.bf16.msra.mxu0 %v5022
      %5334 = vmatprep.subr.bf16.mxu0 %v5027
      %5335 = vmatpush1.bf16.msra.mxu0 %v5026
      %5336 = vmatprep.subr.bf16.mxu0 %v5031
      %5337 = vmatpush1.bf16.msra.mxu0 %v5030
      %5338 = vmatprep.mubr.bf16.mxu0 %v4577
      %5339 = vmatmul.mubr.bf16.gmra.mrb[0].mxu0 %v4576
      %v5340 = vpop.f32.mrb[0].mxu0
      %v5341 = vadd.f32 0.0, %v5340
      %v5342 = vpop.f32.mrb[0].mxu0
      %v5343 = vadd.f32 0.0, %v5342
      %v5344 = vpop.f32.mrb[0].mxu0
      %v5345 = vpop.f32.mrb[0].mxu0
      %5346 = vdwg.mxu0
      %5347 = vmatprep.subr.bf16.mxu0 %v5035
      %5348 = vmatpush1.bf16.msra.mxu0 %v5034
      %5349 = vmatprep.subr.bf16.mxu0 %v5039
      %5350 = vmatpush1.bf16.msra.mxu0 %v5038
      %5351 = vmatprep.subr.bf16.mxu0 %v5043
      %5352 = vmatpush1.bf16.msra.mxu0 %v5042
      %5353 = vmatprep.subr.bf16.mxu0 %v5047
      %5354 = vmatpush1.bf16.msra.mxu0 %v5046
      %5355 = vmatprep.subr.bf16.mxu0 %v5051
      %5356 = vmatpush1.bf16.msra.mxu0 %v5050
      %5357 = vmatprep.subr.bf16.mxu0 %v5055
      %5358 = vmatpush1.bf16.msra.mxu0 %v5054
      %5359 = vmatprep.subr.bf16.mxu0 %v5059
      %5360 = vmatpush1.bf16.msra.mxu0 %v5058
      %5361 = vmatprep.subr.bf16.mxu0 %v5063
      %5362 = vmatpush1.bf16.msra.mxu0 %v5062
      %5363 = vmatprep.subr.bf16.mxu0 %v5067
      %5364 = vmatpush1.bf16.msra.mxu0 %v5066
      %5365 = vmatprep.subr.bf16.mxu0 %v5071
      %5366 = vmatpush1.bf16.msra.mxu0 %v5070
      %5367 = vmatprep.subr.bf16.mxu0 %v5075
      %5368 = vmatpush1.bf16.msra.mxu0 %v5074
      %5369 = vmatprep.subr.bf16.mxu0 %v5079
      %5370 = vmatpush1.bf16.msra.mxu0 %v5078
      %5371 = vmatprep.subr.bf16.mxu0 %v5083
      %5372 = vmatpush1.bf16.msra.mxu0 %v5082
      %5373 = vmatprep.subr.bf16.mxu0 %v5087
      %5374 = vmatpush1.bf16.msra.mxu0 %v5086
      %5375 = vmatprep.subr.bf16.mxu0 %v5091
      %5376 = vmatpush1.bf16.msra.mxu0 %v5090
      %5377 = vmatprep.subr.bf16.mxu0 %v5095
      %5378 = vmatpush1.bf16.msra.mxu0 %v5094
      %5379 = vmatprep.mubr.bf16.mxu0 %v4579
      %5380 = vmatmul.mubr.bf16.gmra.mrb[0].mxu0 %v4578
      %v5381 = vpop.f32.mrb[0].mxu0
      %v5382 = vadd.f32 %v5341, %v5381
      %v5383 = vpop.f32.mrb[0].mxu0
      %v5384 = vadd.f32 %v5343, %v5383
      %v5385 = vpop.f32.mrb[0].mxu0
      %v5386 = vpop.f32.mrb[0].mxu0
      %5387 = vdwg.mxu0
      %v5388 = vadd.f32 %v4347, %v5300
      %v5389 = vadd.f32 %v4349, %v5302
      %v5390 = vadd.f32 %v4429, %v5382
      %v5391 = vadd.f32 %v4431, %v5384
      %v5392 = vrot.slane %v5388, 4
      %v5393 = vadd.f32 %v5388, %v5392
      %v5394 = vrot.slane %v5393, 2
      %v5395 = vadd.f32 %v5393, %v5394
      %v5396 = vrot.slane %v5395, 1
      %v5397 = vadd.f32 %v5395, %v5396
      %v5398 = vrot.slane %v5389, 4
      %v5399 = vadd.f32 %v5389, %v5398
      %v5400 = vrot.slane %v5399, 2
      %v5401 = vadd.f32 %v5399, %v5400
      %v5402 = vrot.slane %v5401, 1
      %v5403 = vadd.f32 %v5401, %v5402
      %v5404 = vrot.slane %v5390, 4
      %v5405 = vadd.f32 %v5390, %v5404
      %v5406 = vrot.slane %v5405, 2
      %v5407 = vadd.f32 %v5405, %v5406
      %v5408 = vrot.slane %v5407, 1
      %v5409 = vadd.f32 %v5407, %v5408
      %v5410 = vrot.slane %v5391, 4
      %v5411 = vadd.f32 %v5391, %v5410
      %v5412 = vrot.slane %v5411, 2
      %v5413 = vadd.f32 %v5411, %v5412
      %v5414 = vrot.slane %v5413, 1
      %v5415 = vadd.f32 %v5413, %v5414
      %v5416 = vmul.f32 %v5388, %v5388
      %v5417 = vmul.f32 %v5389, %v5389
      %v5418 = vmul.f32 %v5390, %v5390
      %v5419 = vmul.f32 %v5391, %v5391
      %v5420 = vrot.slane %v5416, 4
      %v5421 = vadd.f32 %v5416, %v5420
      %v5422 = vrot.slane %v5421, 2
      %v5423 = vadd.f32 %v5421, %v5422
      %v5424 = vrot.slane %v5423, 1
      %v5425 = vadd.f32 %v5423, %v5424
      %v5426 = vrot.slane %v5417, 4
      %v5427 = vadd.f32 %v5417, %v5426
      %v5428 = vrot.slane %v5427, 2
      %v5429 = vadd.f32 %v5427, %v5428
      %v5430 = vrot.slane %v5429, 1
      %v5431 = vadd.f32 %v5429, %v5430
      %v5432 = vrot.slane %v5418, 4
      %v5433 = vadd.f32 %v5418, %v5432
      %v5434 = vrot.slane %v5433, 2
      %v5435 = vadd.f32 %v5433, %v5434
      %v5436 = vrot.slane %v5435, 1
      %v5437 = vadd.f32 %v5435, %v5436
      %v5438 = vrot.slane %v5419, 4
      %v5439 = vadd.f32 %v5419, %v5438
      %v5440 = vrot.slane %v5439, 2
      %v5441 = vadd.f32 %v5439, %v5440
      %v5442 = vrot.slane %v5441, 1
      %v5443 = vadd.f32 %v5441, %v5442
      %5444 = vmatprep.subr.mxu0 0.0
      %5445 = vmatpush1.msra.mxu0 %v226
      %5446 = vmatprep.subr.mxu0 0.0
      %5447 = vmatpush1.msra.mxu0 %v227
      %5448 = vmatprep.subr.mxu0 0.0
      %5449 = vmatpush1.msra.mxu0 %v228
      %5450 = vmatprep.subr.mxu0 0.0
      %5451 = vmatpush1.msra.mxu0 %v229
      %5452 = vmatprep.subr.mxu0 0.0
      %5453 = vmatpush1.msra.mxu0 %v230
      %5454 = vmatprep.subr.mxu0 0.0
      %5455 = vmatpush1.msra.mxu0 %v231
      %5456 = vmatprep.subr.mxu0 0.0
      %5457 = vmatpush1.msra.mxu0 %v232
      %5458 = vmatprep.subr.mxu0 0.0
      %5459 = vmatpush1.msra.mxu0 %v233
      %5460 = vmatprep.subr.mxu0 0.0
      %5461 = vmatpush1.msra.mxu0 %v234
      %5462 = vmatprep.subr.mxu0 0.0
      %5463 = vmatpush1.msra.mxu0 %v235
      %5464 = vmatprep.subr.mxu0 0.0
      %5465 = vmatpush1.msra.mxu0 %v236
      %5466 = vmatprep.subr.mxu0 0.0
      %5467 = vmatpush1.msra.mxu0 %v237
      %5468 = vmatprep.subr.mxu0 0.0
      %5469 = vmatpush1.msra.mxu0 %v238
      %5470 = vmatprep.subr.mxu0 0.0
      %5471 = vmatpush1.msra.mxu0 %v239
      %5472 = vmatprep.subr.mxu0 0.0
      %5473 = vmatpush1.msra.mxu0 %v240
      %5474 = vmatprep.subr.mxu0 0.0
      %5475 = vmatpush1.msra.mxu0 %v241
      %5476 = vmatprep.subr.mxu0 0.0
      %5477 = vmatpush1.msra.mxu0 %v242
      %5478 = vmatprep.subr.mxu0 0.0
      %5479 = vmatpush1.msra.mxu0 %v243
      %5480 = vmatprep.subr.mxu0 0.0
      %5481 = vmatpush1.msra.mxu0 %v244
      %5482 = vmatprep.subr.mxu0 0.0
      %5483 = vmatpush1.msra.mxu0 %v245
      %5484 = vmatprep.subr.mxu0 0.0
      %5485 = vmatpush1.msra.mxu0 %v246
      %5486 = vmatprep.subr.mxu0 0.0
      %5487 = vmatpush1.msra.mxu0 %v247
      %5488 = vmatprep.subr.mxu0 0.0
      %5489 = vmatpush1.msra.mxu0 %v248
      %5490 = vmatprep.subr.mxu0 0.0
      %5491 = vmatpush1.msra.mxu0 %v249
      %5492 = vmatprep.subr.mxu0 0.0
      %5493 = vmatpush1.msra.mxu0 %v250
      %5494 = vmatprep.subr.mxu0 0.0
      %5495 = vmatpush1.msra.mxu0 %v251
      %5496 = vmatprep.subr.mxu0 0.0
      %5497 = vmatpush1.msra.mxu0 %v252
      %5498 = vmatprep.subr.mxu0 0.0
      %5499 = vmatpush1.msra.mxu0 %v253
      %5500 = vmatprep.subr.mxu0 0.0
      %5501 = vmatpush1.msra.mxu0 %v254
      %5502 = vmatprep.subr.mxu0 0.0
      %5503 = vmatpush1.msra.mxu0 %v255
      %5504 = vmatprep.subr.mxu0 0.0
      %5505 = vmatpush1.msra.mxu0 %v256
      %5506 = vmatprep.subr.mxu0 0.0
      %5507 = vmatpush1.msra.mxu0 %v257
      %5508 = vmatprep.mubr.f32.mxu0 %v5403
      %5509 = vmatmul.mubr.f32.gmra.mrb[0].mxu0 %v5397
      %v5510 = vpop.f32.mrb[0].mxu0
      %v5511 = vadd.f32 0.0, %v5510
      %v5512 = vpop.f32.mrb[0].mxu0
      %5513 = vdwg.mxu0
      %5514 = vmatprep.subr.mxu0 0.0
      %5515 = vmatpush1.msra.mxu0 %v258
      %5516 = vmatprep.subr.mxu0 0.0
      %5517 = vmatpush1.msra.mxu0 %v259
      %5518 = vmatprep.subr.mxu0 0.0
      %5519 = vmatpush1.msra.mxu0 %v260
      %5520 = vmatprep.subr.mxu0 0.0
      %5521 = vmatpush1.msra.mxu0 %v261
      %5522 = vmatprep.subr.mxu0 0.0
      %5523 = vmatpush1.msra.mxu0 %v262
      %5524 = vmatprep.subr.mxu0 0.0
      %5525 = vmatpush1.msra.mxu0 %v263
      %5526 = vmatprep.subr.mxu0 0.0
      %5527 = vmatpush1.msra.mxu0 %v264
      %5528 = vmatprep.subr.mxu0 0.0
      %5529 = vmatpush1.msra.mxu0 %v265
      %5530 = vmatprep.subr.mxu0 0.0
      %5531 = vmatpush1.msra.mxu0 %v266
      %5532 = vmatprep.subr.mxu0 0.0
      %5533 = vmatpush1.msra.mxu0 %v267
      %5534 = vmatprep.subr.mxu0 0.0
      %5535 = vmatpush1.msra.mxu0 %v268
      %5536 = vmatprep.subr.mxu0 0.0
      %5537 = vmatpush1.msra.mxu0 %v269
      %5538 = vmatprep.subr.mxu0 0.0
      %5539 = vmatpush1.msra.mxu0 %v270
      %5540 = vmatprep.subr.mxu0 0.0
      %5541 = vmatpush1.msra.mxu0 %v271
      %5542 = vmatprep.subr.mxu0 0.0
      %5543 = vmatpush1.msra.mxu0 %v272
      %5544 = vmatprep.subr.mxu0 0.0
      %5545 = vmatpush1.msra.mxu0 %v273
      %5546 = vmatprep.subr.mxu0 0.0
      %5547 = vmatpush1.msra.mxu0 %v274
      %5548 = vmatprep.subr.mxu0 0.0
      %5549 = vmatpush1.msra.mxu0 %v275
      %5550 = vmatprep.subr.mxu0 0.0
      %5551 = vmatpush1.msra.mxu0 %v276
      %5552 = vmatprep.subr.mxu0 0.0
      %5553 = vmatpush1.msra.mxu0 %v277
      %5554 = vmatprep.subr.mxu0 0.0
      %5555 = vmatpush1.msra.mxu0 %v278
      %5556 = vmatprep.subr.mxu0 0.0
      %5557 = vmatpush1.msra.mxu0 %v279
      %5558 = vmatprep.subr.mxu0 0.0
      %5559 = vmatpush1.msra.mxu0 %v280
      %5560 = vmatprep.subr.mxu0 0.0
      %5561 = vmatpush1.msra.mxu0 %v281
      %5562 = vmatprep.subr.mxu0 0.0
      %5563 = vmatpush1.msra.mxu0 %v282
      %5564 = vmatprep.subr.mxu0 0.0
      %5565 = vmatpush1.msra.mxu0 %v283
      %5566 = vmatprep.subr.mxu0 0.0
      %5567 = vmatpush1.msra.mxu0 %v284
      %5568 = vmatprep.subr.mxu0 0.0
      %5569 = vmatpush1.msra.mxu0 %v285
      %5570 = vmatprep.subr.mxu0 0.0
      %5571 = vmatpush1.msra.mxu0 %v286
      %5572 = vmatprep.subr.mxu0 0.0
      %5573 = vmatpush1.msra.mxu0 %v287
      %5574 = vmatprep.subr.mxu0 0.0
      %5575 = vmatpush1.msra.mxu0 %v288
      %5576 = vmatprep.subr.mxu0 0.0
      %5577 = vmatpush1.msra.mxu0 %v289
      %5578 = vmatprep.mubr.f32.mxu0 %v5415
      %5579 = vmatmul.mubr.f32.gmra.mrb[0].mxu0 %v5409
      %v5580 = vpop.f32.mrb[0].mxu0
      %v5581 = vadd.f32 %v5511, %v5580
      %v5582 = vpop.f32.mrb[0].mxu0
      %5583 = vdwg.mxu0
      %v5584 = vmul.f32 %v5581, 0.001953125
      %5585 = vmatprep.subr.mxu0 0.0
      %5586 = vmatpush1.msra.mxu0 %v226
      %5587 = vmatprep.subr.mxu0 0.0
      %5588 = vmatpush1.msra.mxu0 %v227
      %5589 = vmatprep.subr.mxu0 0.0
      %5590 = vmatpush1.msra.mxu0 %v228
      %5591 = vmatprep.subr.mxu0 0.0
      %5592 = vmatpush1.msra.mxu0 %v229
      %5593 = vmatprep.subr.mxu0 0.0
      %5594 = vmatpush1.msra.mxu0 %v230
      %5595 = vmatprep.subr.mxu0 0.0
      %5596 = vmatpush1.msra.mxu0 %v231
      %5597 = vmatprep.subr.mxu0 0.0
      %5598 = vmatpush1.msra.mxu0 %v232
      %5599 = vmatprep.subr.mxu0 0.0
      %5600 = vmatpush1.msra.mxu0 %v233
      %5601 = vmatprep.subr.mxu0 0.0
      %5602 = vmatpush1.msra.mxu0 %v234
      %5603 = vmatprep.subr.mxu0 0.0
      %5604 = vmatpush1.msra.mxu0 %v235
      %5605 = vmatprep.subr.mxu0 0.0
      %5606 = vmatpush1.msra.mxu0 %v236
      %5607 = vmatprep.subr.mxu0 0.0
      %5608 = vmatpush1.msra.mxu0 %v237
      %5609 = vmatprep.subr.mxu0 0.0
      %5610 = vmatpush1.msra.mxu0 %v238
      %5611 = vmatprep.subr.mxu0 0.0
      %5612 = vmatpush1.msra.mxu0 %v239
      %5613 = vmatprep.subr.mxu0 0.0
      %5614 = vmatpush1.msra.mxu0 %v240
      %5615 = vmatprep.subr.mxu0 0.0
      %5616 = vmatpush1.msra.mxu0 %v241
      %5617 = vmatprep.subr.mxu0 0.0
      %5618 = vmatpush1.msra.mxu0 %v242
      %5619 = vmatprep.subr.mxu0 0.0
      %5620 = vmatpush1.msra.mxu0 %v243
      %5621 = vmatprep.subr.mxu0 0.0
      %5622 = vmatpush1.msra.mxu0 %v244
      %5623 = vmatprep.subr.mxu0 0.0
      %5624 = vmatpush1.msra.mxu0 %v245
      %5625 = vmatprep.subr.mxu0 0.0
      %5626 = vmatpush1.msra.mxu0 %v246
      %5627 = vmatprep.subr.mxu0 0.0
      %5628 = vmatpush1.msra.mxu0 %v247
      %5629 = vmatprep.subr.mxu0 0.0
      %5630 = vmatpush1.msra.mxu0 %v248
      %5631 = vmatprep.subr.mxu0 0.0
      %5632 = vmatpush1.msra.mxu0 %v249
      %5633 = vmatprep.subr.mxu0 0.0
      %5634 = vmatpush1.msra.mxu0 %v250
      %5635 = vmatprep.subr.mxu0 0.0
      %5636 = vmatpush1.msra.mxu0 %v251
      %5637 = vmatprep.subr.mxu0 0.0
      %5638 = vmatpush1.msra.mxu0 %v252
      %5639 = vmatprep.subr.mxu0 0.0
      %5640 = vmatpush1.msra.mxu0 %v253
      %5641 = vmatprep.subr.mxu0 0.0
      %5642 = vmatpush1.msra.mxu0 %v254
      %5643 = vmatprep.subr.mxu0 0.0
      %5644 = vmatpush1.msra.mxu0 %v255
      %5645 = vmatprep.subr.mxu0 0.0
      %5646 = vmatpush1.msra.mxu0 %v256
      %5647 = vmatprep.subr.mxu0 0.0
      %5648 = vmatpush1.msra.mxu0 %v257
      %5649 = vmatprep.mubr.f32.mxu0 %v5431
      %5650 = vmatmul.mubr.f32.gmra.mrb[0].mxu0 %v5425
      %v5651 = vpop.f32.mrb[0].mxu0
      %v5652 = vadd.f32 0.0, %v5651
      %v5653 = vpop.f32.mrb[0].mxu0
      %5654 = vdwg.mxu0
      %5655 = vmatprep.subr.mxu0 0.0
      %5656 = vmatpush1.msra.mxu0 %v258
      %5657 = vmatprep.subr.mxu0 0.0
      %5658 = vmatpush1.msra.mxu0 %v259
      %5659 = vmatprep.subr.mxu0 0.0
      %5660 = vmatpush1.msra.mxu0 %v260
      %5661 = vmatprep.subr.mxu0 0.0
      %5662 = vmatpush1.msra.mxu0 %v261
      %5663 = vmatprep.subr.mxu0 0.0
      %5664 = vmatpush1.msra.mxu0 %v262
      %5665 = vmatprep.subr.mxu0 0.0
      %5666 = vmatpush1.msra.mxu0 %v263
      %5667 = vmatprep.subr.mxu0 0.0
      %5668 = vmatpush1.msra.mxu0 %v264
      %5669 = vmatprep.subr.mxu0 0.0
      %5670 = vmatpush1.msra.mxu0 %v265
      %5671 = vmatprep.subr.mxu0 0.0
      %5672 = vmatpush1.msra.mxu0 %v266
      %5673 = vmatprep.subr.mxu0 0.0
      %5674 = vmatpush1.msra.mxu0 %v267
      %5675 = vmatprep.subr.mxu0 0.0
      %5676 = vmatpush1.msra.mxu0 %v268
      %5677 = vmatprep.subr.mxu0 0.0
      %5678 = vmatpush1.msra.mxu0 %v269
      %5679 = vmatprep.subr.mxu0 0.0
      %5680 = vmatpush1.msra.mxu0 %v270
      %5681 = vmatprep.subr.mxu0 0.0
      %5682 = vmatpush1.msra.mxu0 %v271
      %5683 = vmatprep.subr.mxu0 0.0
      %5684 = vmatpush1.msra.mxu0 %v272
      %5685 = vmatprep.subr.mxu0 0.0
      %5686 = vmatpush1.msra.mxu0 %v273
      %5687 = vmatprep.subr.mxu0 0.0
      %5688 = vmatpush1.msra.mxu0 %v274
      %5689 = vmatprep.subr.mxu0 0.0
      %5690 = vmatpush1.msra.mxu0 %v275
      %5691 = vmatprep.subr.mxu0 0.0
      %5692 = vmatpush1.msra.mxu0 %v276
      %5693 = vmatprep.subr.mxu0 0.0
      %5694 = vmatpush1.msra.mxu0 %v277
      %5695 = vmatprep.subr.mxu0 0.0
      %5696 = vmatpush1.msra.mxu0 %v278
      %5697 = vmatprep.subr.mxu0 0.0
      %5698 = vmatpush1.msra.mxu0 %v279
      %5699 = vmatprep.subr.mxu0 0.0
      %5700 = vmatpush1.msra.mxu0 %v280
      %5701 = vmatprep.subr.mxu0 0.0
      %5702 = vmatpush1.msra.mxu0 %v281
      %5703 = vmatprep.subr.mxu0 0.0
      %5704 = vmatpush1.msra.mxu0 %v282
      %5705 = vmatprep.subr.mxu0 0.0
      %5706 = vmatpush1.msra.mxu0 %v283
      %5707 = vmatprep.subr.mxu0 0.0
      %5708 = vmatpush1.msra.mxu0 %v284
      %5709 = vmatprep.subr.mxu0 0.0
      %5710 = vmatpush1.msra.mxu0 %v285
      %5711 = vmatprep.subr.mxu0 0.0
      %5712 = vmatpush1.msra.mxu0 %v286
      %5713 = vmatprep.subr.mxu0 0.0
      %5714 = vmatpush1.msra.mxu0 %v287
      %5715 = vmatprep.subr.mxu0 0.0
      %5716 = vmatpush1.msra.mxu0 %v288
      %5717 = vmatprep.subr.mxu0 0.0
      %5718 = vmatpush1.msra.mxu0 %v289
      %5719 = vmatprep.mubr.f32.mxu0 %v5443
      %5720 = vmatmul.mubr.f32.gmra.mrb[0].mxu0 %v5437
      %v5721 = vpop.f32.mrb[0].mxu0
      %v5722 = vadd.f32 %v5652, %v5721
      %v5723 = vpop.f32.mrb[0].mxu0
      %5724 = vdwg.mxu0
      %v5725 = vmul.f32 %v5722, 0.001953125
      %v5726 = vmul.f32 %v5584, %v5584
      %v5727 = vsub.f32 %v5725, %v5726
      %v5728 = vadd.f32 %v5727, 1e-05
      %v5729 = vrsqrt.pop %v5728
      %v5730 = vmul.f32 %v5584, %v5729
      %v5732 = vsel %vm2129, %v5729, 0
      %5734 = vmatprep.subr.mxu0 %v291
      %5735 = vmatpush1.msra.mxu0 %v290
      %5736 = vmatprep.subr.mxu0 0.0
      %5737 = vmatpush1.msra.mxu0 0.0
      %5738 = vmatprep.subr.mxu0 0.0
      %5739 = vmatpush1.msra.mxu0 0.0
      %5740 = vmatprep.subr.mxu0 0.0
      %5741 = vmatpush1.msra.mxu0 0.0
      %5742 = vmatprep.subr.mxu0 0.0
      %5743 = vmatpush1.msra.mxu0 0.0
      %5744 = vmatprep.subr.mxu0 0.0
      %5745 = vmatpush1.msra.mxu0 0.0
      %5746 = vmatprep.subr.mxu0 0.0
      %5747 = vmatpush1.msra.mxu0 0.0
      %5748 = vmatprep.subr.mxu0 0.0
      %5749 = vmatpush1.msra.mxu0 0.0
      %5750 = vmatprep.subr.mxu0 0.0
      %5751 = vmatpush1.msra.mxu0 0.0
      %5752 = vmatprep.subr.mxu0 0.0
      %5753 = vmatpush1.msra.mxu0 0.0
      %5754 = vmatprep.subr.mxu0 0.0
      %5755 = vmatpush1.msra.mxu0 0.0
      %5756 = vmatprep.subr.mxu0 0.0
      %5757 = vmatpush1.msra.mxu0 0.0
      %5758 = vmatprep.subr.mxu0 0.0
      %5759 = vmatpush1.msra.mxu0 0.0
      %5760 = vmatprep.subr.mxu0 0.0
      %5761 = vmatpush1.msra.mxu0 0.0
      %5762 = vmatprep.subr.mxu0 0.0
      %5763 = vmatpush1.msra.mxu0 0.0
      %5764 = vmatprep.subr.mxu0 0.0
      %5765 = vmatpush1.msra.mxu0 0.0
      %5766 = vmatprep.subr.mxu0 0.0
      %5767 = vmatpush1.msra.mxu0 0.0
      %5768 = vmatprep.subr.mxu0 0.0
      %5769 = vmatpush1.msra.mxu0 0.0
      %5770 = vmatprep.subr.mxu0 0.0
      %5771 = vmatpush1.msra.mxu0 0.0
      %5772 = vmatprep.subr.mxu0 0.0
      %5773 = vmatpush1.msra.mxu0 0.0
      %5774 = vmatprep.subr.mxu0 0.0
      %5775 = vmatpush1.msra.mxu0 0.0
      %5776 = vmatprep.subr.mxu0 0.0
      %5777 = vmatpush1.msra.mxu0 0.0
      %5778 = vmatprep.subr.mxu0 0.0
      %5779 = vmatpush1.msra.mxu0 0.0
      %5780 = vmatprep.subr.mxu0 0.0
      %5781 = vmatpush1.msra.mxu0 0.0
      %5782 = vmatprep.subr.mxu0 0.0
      %5783 = vmatpush1.msra.mxu0 0.0
      %5784 = vmatprep.subr.mxu0 0.0
      %5785 = vmatpush1.msra.mxu0 0.0
      %5786 = vmatprep.subr.mxu0 0.0
      %5787 = vmatpush1.msra.mxu0 0.0
      %5788 = vmatprep.subr.mxu0 0.0
      %5789 = vmatpush1.msra.mxu0 0.0
      %5790 = vmatprep.subr.mxu0 0.0
      %5791 = vmatpush1.msra.mxu0 0.0
      %5792 = vmatprep.subr.mxu0 0.0
      %5793 = vmatpush1.msra.mxu0 0.0
      %5794 = vmatprep.subr.mxu0 0.0
      %5795 = vmatpush1.msra.mxu0 0.0
      %5796 = vmatprep.subr.mxu0 0.0
      %5797 = vmatpush1.msra.mxu0 0.0
      %5798 = vmatprep.mubr.f32.mxu0 0.0
      %5799 = vmatmul.mubr.f32.gmra.mrb[0].mxu0 %v5732
      %v5800 = vpop.f32.mrb[0].mxu0
      %v5801 = vadd.f32 0.0, %v5800
      %v5802 = vpop.f32.mrb[0].mxu0
      %v5803 = vadd.f32 0.0, %v5802
      %5804 = vdwg.mxu0
      %5805 = vmatprep.subr.mxu0 %v293
      %5806 = vmatpush1.msra.mxu0 %v292
      %5807 = vmatprep.subr.mxu0 0.0
      %5808 = vmatpush1.msra.mxu0 0.0
      %5809 = vmatprep.subr.mxu0 0.0
      %5810 = vmatpush1.msra.mxu0 0.0
      %5811 = vmatprep.subr.mxu0 0.0
      %5812 = vmatpush1.msra.mxu0 0.0
      %5813 = vmatprep.subr.mxu0 0.0
      %5814 = vmatpush1.msra.mxu0 0.0
      %5815 = vmatprep.subr.mxu0 0.0
      %5816 = vmatpush1.msra.mxu0 0.0
      %5817 = vmatprep.subr.mxu0 0.0
      %5818 = vmatpush1.msra.mxu0 0.0
      %5819 = vmatprep.subr.mxu0 0.0
      %5820 = vmatpush1.msra.mxu0 0.0
      %5821 = vmatprep.subr.mxu0 0.0
      %5822 = vmatpush1.msra.mxu0 0.0
      %5823 = vmatprep.subr.mxu0 0.0
      %5824 = vmatpush1.msra.mxu0 0.0
      %5825 = vmatprep.subr.mxu0 0.0
      %5826 = vmatpush1.msra.mxu0 0.0
      %5827 = vmatprep.subr.mxu0 0.0
      %5828 = vmatpush1.msra.mxu0 0.0
      %5829 = vmatprep.subr.mxu0 0.0
      %5830 = vmatpush1.msra.mxu0 0.0
      %5831 = vmatprep.subr.mxu0 0.0
      %5832 = vmatpush1.msra.mxu0 0.0
      %5833 = vmatprep.subr.mxu0 0.0
      %5834 = vmatpush1.msra.mxu0 0.0
      %5835 = vmatprep.subr.mxu0 0.0
      %5836 = vmatpush1.msra.mxu0 0.0
      %5837 = vmatprep.subr.mxu0 0.0
      %5838 = vmatpush1.msra.mxu0 0.0
      %5839 = vmatprep.subr.mxu0 0.0
      %5840 = vmatpush1.msra.mxu0 0.0
      %5841 = vmatprep.subr.mxu0 0.0
      %5842 = vmatpush1.msra.mxu0 0.0
      %5843 = vmatprep.subr.mxu0 0.0
      %5844 = vmatpush1.msra.mxu0 0.0
      %5845 = vmatprep.subr.mxu0 0.0
      %5846 = vmatpush1.msra.mxu0 0.0
      %5847 = vmatprep.subr.mxu0 0.0
      %5848 = vmatpush1.msra.mxu0 0.0
      %5849 = vmatprep.subr.mxu0 0.0
      %5850 = vmatpush1.msra.mxu0 0.0
      %5851 = vmatprep.subr.mxu0 0.0
      %5852 = vmatpush1.msra.mxu0 0.0
      %5853 = vmatprep.subr.mxu0 0.0
      %5854 = vmatpush1.msra.mxu0 0.0
      %5855 = vmatprep.subr.mxu0 0.0
      %5856 = vmatpush1.msra.mxu0 0.0
      %5857 = vmatprep.subr.mxu0 0.0
      %5858 = vmatpush1.msra.mxu0 0.0
      %5859 = vmatprep.subr.mxu0 0.0
      %5860 = vmatpush1.msra.mxu0 0.0
      %5861 = vmatprep.subr.mxu0 0.0
      %5862 = vmatpush1.msra.mxu0 0.0
      %5863 = vmatprep.subr.mxu0 0.0
      %5864 = vmatpush1.msra.mxu0 0.0
      %5865 = vmatprep.subr.mxu0 0.0
      %5866 = vmatpush1.msra.mxu0 0.0
      %5867 = vmatprep.subr.mxu0 0.0
      %5868 = vmatpush1.msra.mxu0 0.0
      %5869 = vmatprep.mubr.f32.mxu0 0.0
      %5870 = vmatmul.mubr.f32.gmra.mrb[0].mxu0 %v5732
      %v5871 = vpop.f32.mrb[0].mxu0
      %v5872 = vadd.f32 0.0, %v5871
      %v5873 = vpop.f32.mrb[0].mxu0
      %v5874 = vadd.f32 0.0, %v5873
      %5875 = vdwg.mxu0
      %v5877 = vsel %vm2129, %v5730, 0
      %5879 = vmatprep.subr.mxu0 %v291
      %5880 = vmatpush1.msra.mxu0 %v290
      %5881 = vmatprep.subr.mxu0 0.0
      %5882 = vmatpush1.msra.mxu0 0.0
      %5883 = vmatprep.subr.mxu0 0.0
      %5884 = vmatpush1.msra.mxu0 0.0
      %5885 = vmatprep.subr.mxu0 0.0
      %5886 = vmatpush1.msra.mxu0 0.0
      %5887 = vmatprep.subr.mxu0 0.0
      %5888 = vmatpush1.msra.mxu0 0.0
      %5889 = vmatprep.subr.mxu0 0.0
      %5890 = vmatpush1.msra.mxu0 0.0
      %5891 = vmatprep.subr.mxu0 0.0
      %5892 = vmatpush1.msra.mxu0 0.0
      %5893 = vmatprep.subr.mxu0 0.0
      %5894 = vmatpush1.msra.mxu0 0.0
      %5895 = vmatprep.subr.mxu0 0.0
      %5896 = vmatpush1.msra.mxu0 0.0
      %5897 = vmatprep.subr.mxu0 0.0
      %5898 = vmatpush1.msra.mxu0 0.0
      %5899 = vmatprep.subr.mxu0 0.0
      %5900 = vmatpush1.msra.mxu0 0.0
      %5901 = vmatprep.subr.mxu0 0.0
      %5902 = vmatpush1.msra.mxu0 0.0
      %5903 = vmatprep.subr.mxu0 0.0
      %5904 = vmatpush1.msra.mxu0 0.0
      %5905 = vmatprep.subr.mxu0 0.0
      %5906 = vmatpush1.msra.mxu0 0.0
      %5907 = vmatprep.subr.mxu0 0.0
      %5908 = vmatpush1.msra.mxu0 0.0
      %5909 = vmatprep.subr.mxu0 0.0
      %5910 = vmatpush1.msra.mxu0 0.0
      %5911 = vmatprep.subr.mxu0 0.0
      %5912 = vmatpush1.msra.mxu0 0.0
      %5913 = vmatprep.subr.mxu0 0.0
      %5914 = vmatpush1.msra.mxu0 0.0
      %5915 = vmatprep.subr.mxu0 0.0
      %5916 = vmatpush1.msra.mxu0 0.0
      %5917 = vmatprep.subr.mxu0 0.0
      %5918 = vmatpush1.msra.mxu0 0.0
      %5919 = vmatprep.subr.mxu0 0.0
      %5920 = vmatpush1.msra.mxu0 0.0
      %5921 = vmatprep.subr.mxu0 0.0
      %5922 = vmatpush1.msra.mxu0 0.0
      %5923 = vmatprep.subr.mxu0 0.0
      %5924 = vmatpush1.msra.mxu0 0.0
      %5925 = vmatprep.subr.mxu0 0.0
      %5926 = vmatpush1.msra.mxu0 0.0
      %5927 = vmatprep.subr.mxu0 0.0
      %5928 = vmatpush1.msra.mxu0 0.0
      %5929 = vmatprep.subr.mxu0 0.0
      %5930 = vmatpush1.msra.mxu0 0.0
      %5931 = vmatprep.subr.mxu0 0.0
      %5932 = vmatpush1.msra.mxu0 0.0
      %5933 = vmatprep.subr.mxu0 0.0
      %5934 = vmatpush1.msra.mxu0 0.0
      %5935 = vmatprep.subr.mxu0 0.0
      %5936 = vmatpush1.msra.mxu0 0.0
      %5937 = vmatprep.subr.mxu0 0.0
      %5938 = vmatpush1.msra.mxu0 0.0
      %5939 = vmatprep.subr.mxu0 0.0
      %5940 = vmatpush1.msra.mxu0 0.0
      %5941 = vmatprep.subr.mxu0 0.0
      %5942 = vmatpush1.msra.mxu0 0.0
      %5943 = vmatprep.mubr.f32.mxu0 0.0
      %5944 = vmatmul.mubr.f32.gmra.mrb[0].mxu0 %v5877
      %v5945 = vpop.f32.mrb[0].mxu0
      %v5946 = vadd.f32 0.0, %v5945
      %v5947 = vpop.f32.mrb[0].mxu0
      %v5948 = vadd.f32 0.0, %v5947
      %5949 = vdwg.mxu0
      %5950 = vmatprep.subr.mxu0 %v293
      %5951 = vmatpush1.msra.mxu0 %v292
      %5952 = vmatprep.subr.mxu0 0.0
      %5953 = vmatpush1.msra.mxu0 0.0
      %5954 = vmatprep.subr.mxu0 0.0
      %5955 = vmatpush1.msra.mxu0 0.0
      %5956 = vmatprep.subr.mxu0 0.0
      %5957 = vmatpush1.msra.mxu0 0.0
      %5958 = vmatprep.subr.mxu0 0.0
      %5959 = vmatpush1.msra.mxu0 0.0
      %5960 = vmatprep.subr.mxu0 0.0
      %5961 = vmatpush1.msra.mxu0 0.0
      %5962 = vmatprep.subr.mxu0 0.0
      %5963 = vmatpush1.msra.mxu0 0.0
      %5964 = vmatprep.subr.mxu0 0.0
      %5965 = vmatpush1.msra.mxu0 0.0
      %5966 = vmatprep.subr.mxu0 0.0
      %5967 = vmatpush1.msra.mxu0 0.0
      %5968 = vmatprep.subr.mxu0 0.0
      %5969 = vmatpush1.msra.mxu0 0.0
      %5970 = vmatprep.subr.mxu0 0.0
      %5971 = vmatpush1.msra.mxu0 0.0
      %5972 = vmatprep.subr.mxu0 0.0
      %5973 = vmatpush1.msra.mxu0 0.0
      %5974 = vmatprep.subr.mxu0 0.0
      %5975 = vmatpush1.msra.mxu0 0.0
      %5976 = vmatprep.subr.mxu0 0.0
      %5977 = vmatpush1.msra.mxu0 0.0
      %5978 = vmatprep.subr.mxu0 0.0
      %5979 = vmatpush1.msra.mxu0 0.0
      %5980 = vmatprep.subr.mxu0 0.0
      %5981 = vmatpush1.msra.mxu0 0.0
      %5982 = vmatprep.subr.mxu0 0.0
      %5983 = vmatpush1.msra.mxu0 0.0
      %5984 = vmatprep.subr.mxu0 0.0
      %5985 = vmatpush1.msra.mxu0 0.0
      %5986 = vmatprep.subr.mxu0 0.0
      %5987 = vmatpush1.msra.mxu0 0.0
      %5988 = vmatprep.subr.mxu0 0.0
      %5989 = vmatpush1.msra.mxu0 0.0
      %5990 = vmatprep.subr.mxu0 0.0
      %5991 = vmatpush1.msra.mxu0 0.0
      %5992 = vmatprep.subr.mxu0 0.0
      %5993 = vmatpush1.msra.mxu0 0.0
      %5994 = vmatprep.subr.mxu0 0.0
      %5995 = vmatpush1.msra.mxu0 0.0
      %5996 = vmatprep.subr.mxu0 0.0
      %5997 = vmatpush1.msra.mxu0 0.0
      %5998 = vmatprep.subr.mxu0 0.0
      %5999 = vmatpush1.msra.mxu0 0.0
      %6000 = vmatprep.subr.mxu0 0.0
      %6001 = vmatpush1.msra.mxu0 0.0
      %6002 = vmatprep.subr.mxu0 0.0
      %6003 = vmatpush1.msra.mxu0 0.0
      %6004 = vmatprep.subr.mxu0 0.0
      %6005 = vmatpush1.msra.mxu0 0.0
      %6006 = vmatprep.subr.mxu0 0.0
      %6007 = vmatpush1.msra.mxu0 0.0
      %6008 = vmatprep.subr.mxu0 0.0
      %6009 = vmatpush1.msra.mxu0 0.0
      %6010 = vmatprep.subr.mxu0 0.0
      %6011 = vmatpush1.msra.mxu0 0.0
      %6012 = vmatprep.subr.mxu0 0.0
      %6013 = vmatpush1.msra.mxu0 0.0
      %6014 = vmatprep.mubr.f32.mxu0 0.0
      %6015 = vmatmul.mubr.f32.gmra.mrb[0].mxu0 %v5877
      %v6016 = vpop.f32.mrb[0].mxu0
      %v6017 = vadd.f32 0.0, %v6016
      %v6018 = vpop.f32.mrb[0].mxu0
      %v6019 = vadd.f32 0.0, %v6018
      %6020 = vdwg.mxu0
      %v6021 = vlaneseq
      %v6022 = vshrl.u32 %v6021, 7
      %v6023 = vsub.s32 0, %v6022
      %v6024 = vrot.slane %v5801, %v6023
      %v6025 = vlaneseq
      %v6026 = vshrl.u32 %v6025, 7
      %v6027 = vsub.s32 0, %v6026
      %v6028 = vrot.slane %v5803, %v6027
      %v6029 = vlaneseq
      %v6030 = vshrl.u32 %v6029, 7
      %v6031 = vsub.s32 0, %v6030
      %v6032 = vrot.slane %v5872, %v6031
      %v6033 = vlaneseq
      %v6034 = vshrl.u32 %v6033, 7
      %v6035 = vsub.s32 0, %v6034
      %v6036 = vrot.slane %v5874, %v6035
      %v6037 = vmul.f32 %v5388, %v6024
      %v6038 = vmul.f32 %v5389, %v6028
      %v6039 = vmul.f32 %v5390, %v6032
      %v6040 = vmul.f32 %v5391, %v6036
      %v6041 = vlaneseq
      %v6042 = vshrl.u32 %v6041, 7
      %v6043 = vsub.s32 0, %v6042
      %v6044 = vrot.slane %v5946, %v6043
      %v6045 = vlaneseq
      %v6046 = vshrl.u32 %v6045, 7
      %v6047 = vsub.s32 0, %v6046
      %v6048 = vrot.slane %v5948, %v6047
      %v6049 = vlaneseq
      %v6050 = vshrl.u32 %v6049, 7
      %v6051 = vsub.s32 0, %v6050
      %v6052 = vrot.slane %v6017, %v6051
      %v6053 = vlaneseq
      %v6054 = vshrl.u32 %v6053, 7
      %v6055 = vsub.s32 0, %v6054
      %v6056 = vrot.slane %v6019, %v6055
      %v6057 = vsub.f32 %v6037, %v6044
      %v6058 = vsub.f32 %v6038, %v6048
      %v6059 = vsub.f32 %v6039, %v6052
      %v6060 = vsub.f32 %v6040, %v6056
      %v6061 = vmax.f32 %v6057, 0.0
      %v6062 = vmax.f32 %v6058, 0.0
      %v6063 = vmax.f32 %v6059, 0.0
      %v6064 = vmax.f32 %v6060, 0.0
      %6065 = vst [vmem:[%s224] sm:$0xff] %v6061
      %6066 = vst [vmem:[%s224 + $0x8] sm:$0xff] %v6062
      %6067 = vst [vmem:[%s224 + $0x10] sm:$0xff] %v6063
      %6068 = vst [vmem:[%s224 + $0x18] sm:$0xff] %v6064
      %p6069 = scmp.lt.s32.totalorder %s16, 1
      %s6070 = scalar_select %p6069, %s16, 1
      %s6071 = smul.addr %s6070, 4
      %s6072 = smul.addr %s6071, 8
      %s6073 = scalar_lea.vmem %s5, %s6072
      // Predicated region
      $region41: #{conv_block_3d_fwd.1} parent=39 // pred_check
        %p6074 = pneg %p144
      $region42: #{conv_block_3d_fwd.1} parent=39 // pred_check_branch
        %6076 = sbr.rel (%p6074) target = $region44
      $region43: #{conv_block_3d_fwd.1} parent=39 // pred_region
        _
      $region44: #{conv_block_3d_fwd.1} parent=39 // pred_fallthru
        _
    $region40: #{conv_block_3d_fwd.1} parent=5 // pred_fallthru
      _
    %p6077 = scmp.le.s32.totalorder 2, %s11
    // Predicated region
    $region45: #{conv_block_3d_fwd.1} parent=5 // pred_check
      %p6078 = pneg %p6077
    $region46: #{conv_block_3d_fwd.1} parent=5 // pred_check_branch
      %6080 = sbr.rel (%p6078) target = $region48
    $region47: #{conv_block_3d_fwd.1} parent=5 // pred_region
      %s6081 = ssub.s32 %s11, 2
      // Predicated region
      $region49: #{conv_block_3d_fwd.1} parent=47 // pred_check
        %p6082 = pneg %p150
      $region50: #{conv_block_3d_fwd.1} parent=47 // pred_check_branch
        %6084 = sbr.rel (%p6082) target = $region52
      $region51: #{conv_block_3d_fwd.1} parent=47 // pred_region
        %p6085 = scmp.lt.s32.totalorder %s17, 1
        %s6086 = scalar_select %p6085, %s17, 1
        %s6087 = smul.addr %s6086, 4
        %s6088 = smul.addr %s6087, 8
        %s6089 = scalar_lea.vmem %s5, %s6088
      $region52: #{conv_block_3d_fwd.1} parent=47 // pred_fallthru
        _
    $region48: #{conv_block_3d_fwd.1} parent=5 // pred_fallthru
      _
  $region6: #{conv_block_3d_fwd.1} parent=0 // loop_footer
    %s15 = sadd.s32 1, %s11
  $region7: #{conv_block_3d_fwd.1} parent=0 // loop_footer_branch
    %10 = sbr.rel target = $region3
  $region8: #{conv_block_3d_fwd.1} parent=0 // loop_exit
    _

</llo_original>
